<compile_context>
chip_gen: v6e
topology: v6e:2x2x1
jax: 0.10.0
libtpu: 0.0.40
codegen_flags: <defaults>
</compile_context>

<pallas_src>
import functools

import jax
import jax.numpy as jnp
from jax import lax
from jax.experimental import pallas as pl
from jax.experimental.pallas import tpu as pltpu


def _round_up(v, m):
    return ((v + m - 1) // m) * m


# ------------------------------ Pallas kernel ------------------------------ #
def _basic_block_kernel(x_ref, w1_ref, b1_ref, w2_ref, wsc_ref, b2_ref, o_ref,
                        h1_ref, p2_ref, *, taps1, sc_off, Ho, Wo, C1, C2, W0):
    """Whole ResNet BasicBlock for one image, fully fused in VMEM.

    x_ref  : (P*Hq, Wq, C1)        bf16  phase-arranged, spatially padded input
    w1_ref : (9, C1, C2)           bf16  conv1 weights (BN1 scale folded)
    b1_ref : (1, C2)               f32   folded BN1 bias
    w2_ref : (9*C2, C2)            bf16  conv2 weights, tap-packed (BN2 folded)
    wsc_ref: (C1, C2)              bf16  1x1 projection (BN folded) or identity
    b2_ref : (1, C2)               f32   folded BN2 (+ shortcut BN) bias
    o_ref  : (Ho*Wo, C2)           f32   block output
    h1_ref : (Ho+2, Wo+2*W0, C2)   f32   zero-halo staging of the intermediate
    p2_ref : (Ho*Wo, 9*C2)         bf16  in-VMEM im2col patches for conv2
    """
    m = Ho * Wo

    # ---- conv1 + bn1 + relu: per-tap MXU matmuls accumulated as a value ----
    acc = None
    for t, (r0, c0) in enumerate(taps1):
        patch = x_ref[pl.ds(r0, Ho), pl.ds(c0, Wo), :].reshape(m, C1)
        d = jnp.dot(patch, w1_ref[t], preferred_element_type=jnp.float32)
        acc = d if acc is None else acc + d
    h1 = jnp.maximum(acc + b1_ref[...], 0.0)                      # (m, C2) f32

    # ---- stage the intermediate with a zero halo in VMEM (no HBM round trip)
    # Interior is stored at sublane offset W0 (multiple of 8) => aligned store.
    h1_ref[...] = jnp.zeros_like(h1_ref)
    h1_ref[pl.ds(1, Ho), pl.ds(W0, Wo), :] = h1.reshape(Ho, Wo, C2)

    # ---- conv2: in-VMEM im2col (lane-aligned 128-wide packing) + one matmul
    taps2 = [(kh, kw) for kh in range(3) for kw in range(3)]
    for t, (kh, kw) in enumerate(taps2):
        win = h1_ref[pl.ds(kh, Ho), pl.ds(W0 - 1 + kw, Wo), :]    # (Ho, Wo, C2)
        p2_ref[:, pl.ds(t * C2, C2)] = win.reshape(m, C2).astype(p2_ref.dtype)
    out = jnp.dot(p2_ref[...], w2_ref[...], preferred_element_type=jnp.float32)

    # ---- fused shortcut tap (1x1 projection / identity) from the same x tile
    sr, sc = sc_off
    xs = x_ref[pl.ds(sr, Ho), pl.ds(sc, Wo), :].reshape(m, C1)
    out = out + jnp.dot(xs, wsc_ref[...], preferred_element_type=jnp.float32)

    out = jnp.maximum(out + b2_ref[...], 0.0)                     # bias + relu
    o_ref[...] = out.astype(o_ref.dtype)


# ------------------------------- JAX wrapper -------------------------------- #
def _space_to_depth(x, ksize, stride, padding):
    """Zero-pad spatially and rearrange into stride phases so every conv tap
    (and the strided 1x1 shortcut) is a contiguous, unstrided slice."""
    N, H, W, C = x.shape
    Ho = (H + 2 * padding - ksize) // stride + 1
    Wo = (W + 2 * padding - ksize) // stride + 1
    Hq = Ho + (ksize - 1) // stride
    Wq = Wo + (ksize - 1) // stride
    xp = jnp.pad(x, ((0, 0), (padding, padding), (padding, padding), (0, 0)))
    ph = max(Hq * stride - (H + 2 * padding), 0)
    pw = max(Wq * stride - (W + 2 * padding), 0)
    xp = jnp.pad(xp, ((0, 0), (0, ph), (0, pw), (0, 0)))
    xp = xp[:, :Hq * stride, :Wq * stride, :]
    xph = xp.reshape(N, Hq, stride, Wq, stride, C).transpose(0, 2, 4, 1, 3, 5)
    return xph.reshape(N, stride * stride * Hq, Wq, C), Hq, Wq, Ho, Wo


def _fold_bn(w_oihw, gamma, beta, mean, var, eps):
    """Fold inference-mode BN into the conv: returns (w[KH,KW,Ci,Co], bias[Co])."""
    scale = gamma.astype(jnp.float32) / jnp.sqrt(var.astype(jnp.float32) + eps)
    bias = beta.astype(jnp.float32) - mean.astype(jnp.float32) * scale
    w = jnp.transpose(w_oihw.astype(jnp.float32), (2, 3, 1, 0)) * scale
    return w, bias


def basic_block_forward(x_nchw, params, stride, eps=1e-5):
    ksize = 3
    x = jnp.transpose(x_nchw, (0, 2, 3, 1)).astype(jnp.float32)    # NHWC
    N, H, W, Cin = x.shape
    planes = params["w1"].shape[0]
    C1 = _round_up(Cin, 8)           # input-channel (contraction) padding
    C2 = _round_up(planes, 128)      # lane-dense intermediate / output channels
    W0 = 8                           # sublane-aligned interior offset in h1 halo

    # conv1 + bn1 : per-tap weights (9, C1, C2), BN scale folded, bf16
    w1, b1 = _fold_bn(params["w1"], params["bn1_g"], params["bn1_b"],
                      params["bn1_m"], params["bn1_v"], eps)
    w1 = jnp.pad(w1, ((0, 0), (0, 0), (0, C1 - Cin), (0, C2 - planes)))
    w1 = w1.reshape(ksize * ksize, C1, C2).astype(jnp.bfloat16)
    b1 = jnp.pad(b1, (0, C2 - planes)).reshape(1, C2)

    # conv2 + bn2 : tap-packed weights (9*C2, C2) matching the im2col layout
    w2, b2 = _fold_bn(params["w2"], params["bn2_g"], params["bn2_b"],
                      params["bn2_m"], params["bn2_v"], eps)
    w2 = jnp.pad(w2, ((0, 0), (0, 0), (0, C2 - planes), (0, C2 - planes)))
    w2 = w2.reshape(ksize * ksize * C2, C2).astype(jnp.bfloat16)

    # shortcut: 1x1 projection (+BN) fused as an extra contraction, or identity
    if stride != 1 or Cin != planes:
        wsc, bsc = _fold_bn(params["wsc"], params["bnsc_g"], params["bnsc_b"],
                            params["bnsc_m"], params["bnsc_v"], eps)
        wsc = jnp.pad(wsc.reshape(Cin, planes), ((0, C1 - Cin), (0, C2 - planes)))
        b2 = b2 + bsc
    else:
        wsc = jnp.eye(C1, C2, dtype=jnp.float32)
    wsc = wsc.astype(jnp.bfloat16)
    b2 = jnp.pad(b2, (0, C2 - planes)).reshape(1, C2)

    # input: bf16, channel-padded, spatially padded + stride-phase arranged
    xb = x.astype(jnp.bfloat16)
    if C1 != Cin:
        xb = jnp.pad(xb, ((0, 0), (0, 0), (0, 0), (0, C1 - Cin)))
    x4, Hq, Wq, Ho, Wo = _space_to_depth(xb, ksize, stride, padding=1)
    m = Ho * Wo
    taps1 = tuple((((kh % stride) * stride + (kw % stride)) * Hq + kh // stride,
                   kw // stride)
                  for kh in range(ksize) for kw in range(ksize))
    q, r = 1 // stride, 1 % stride                 # strided 1x1 / identity tap
    sc_off = ((r * stride + r) * Hq + q, q)

    kernel = functools.partial(_basic_block_kernel, taps1=taps1, sc_off=sc_off,
                               Ho=Ho, Wo=Wo, C1=C1, C2=C2, W0=W0)

    cost = pl.CostEstimate(
        flops=int(2 * N * m * C2 * (ksize * ksize * (C1 + C2) + C1)),
        transcendentals=0,
        bytes_accessed=int(x4.size * 2 + w1.size * 2 + w2.size * 2 +
                           wsc.size * 2 + b1.size * 4 + b2.size * 4 +
                           N * m * C2 * 4))

    out = pl.pallas_call(
        kernel,
        out_shape=jax.ShapeDtypeStruct((N, m, C2), jnp.float32),
        grid_spec=pltpu.PrefetchScalarGridSpec(
            num_scalar_prefetch=0,
            grid=(N,),
            in_specs=[
                pl.BlockSpec((None, stride * stride * Hq, Wq, C1),
                             lambda n: (n, 0, 0, 0)),              # per-image x
                pl.BlockSpec((ksize * ksize, C1, C2), lambda n: (0, 0, 0)),
                pl.BlockSpec((1, C2), lambda n: (0, 0)),
                pl.BlockSpec((ksize * ksize * C2, C2), lambda n: (0, 0)),
                pl.BlockSpec((C1, C2), lambda n: (0, 0)),
                pl.BlockSpec((1, C2), lambda n: (0, 0)),
            ],
            out_specs=pl.BlockSpec((None, m, C2), lambda n: (n, 0, 0)),
            scratch_shapes=[
                pltpu.VMEM((Ho + 2, Wo + 2 * W0, C2), jnp.float32),  # halo'd h1
                pltpu.VMEM((m, ksize * ksize * C2), jnp.bfloat16),   # im2col
            ],
        ),
        compiler_params=pltpu.CompilerParams(
            dimension_semantics=("parallel",),
            vmem_limit_bytes=48 * 1024 * 1024),
        cost_estimate=cost,
    )(x4, w1, b1, w2, wsc, b2)

    out = out.reshape(N, Ho, Wo, C2)[:, :, :, :planes]
    return jnp.transpose(out, (0, 3, 1, 2))                        # back to NCHW


# ----------------------------- pure-JAX reference --------------------------- #
def ref_forward(x, params, stride, eps=1e-5):
    def conv(x, w, s, pad):
        return lax.conv_general_dilated(
            x, w, (s, s), [(pad, pad), (pad, pad)],
            dimension_numbers=("NCHW", "OIHW", "NCHW"),
            precision=lax.Precision.HIGHEST)

    def bn(y, g, b, m, v):
        g, b, m, v = (t[None, :, None, None] for t in (g, b, m, v))
        return (y - m) / jnp.sqrt(v + eps) * g + b

    out = jax.nn.relu(bn(conv(x, params["w1"], stride, 1),
                         params["bn1_g"], params["bn1_b"],
                         params["bn1_m"], params["bn1_v"]))
    out = bn(conv(out, params["w2"], 1, 1),
             params["bn2_g"], params["bn2_b"], params["bn2_m"], params["bn2_v"])
    in_planes, planes = x.shape[1], params["w1"].shape[0]
    if stride != 1 or in_planes != planes:
        sc = bn(conv(x, params["wsc"], stride, 0),
                params["bnsc_g"], params["bnsc_b"],
                params["bnsc_m"], params["bnsc_v"])
    else:
        sc = x
    return jax.nn.relu(out + sc)


def make_params(key, in_planes, planes, stride):
    ks = jax.random.split(key, 6)

    def bn(k, c):
        k1, k2, k3, k4 = jax.random.split(k, 4)
        return (jax.random.normal(k1, (c,)) * 0.1 + 1.0,     # gamma
                jax.random.normal(k2, (c,)) * 0.1,           # beta
                jax.random.normal(k3, (c,)) * 0.1,           # running_mean
                jnp.abs(jax.random.normal(k4, (c,))) + 0.5)  # running_var

    p = {"w1": jax.random.normal(ks[0], (planes, in_planes, 3, 3), jnp.float32) * 0.1,
         "w2": jax.random.normal(ks[1], (planes, planes, 3, 3), jnp.float32) * 0.1}
    p["bn1_g"], p["bn1_b"], p["bn1_m"], p["bn1_v"] = bn(ks[2], planes)
    p["bn2_g"], p["bn2_b"], p["bn2_m"], p["bn2_v"] = bn(ks[3], planes)
    if stride != 1 or in_planes != planes:
        p["wsc"] = jax.random.normal(ks[4], (planes, in_planes, 1, 1), jnp.float32) * 0.1
        p["bnsc_g"], p["bnsc_b"], p["bnsc_m"], p["bnsc_v"] = bn(ks[5], planes)
    return p


# ----------------------------------- main ----------------------------------- #
if __name__ == "__main__":
    key = jax.random.PRNGKey(0)
    k_x1, k_p1, k_x2, k_p2 = jax.random.split(key, 4)

    # 1) projection shortcut: stride 2, in_planes != planes
    N, Cin, H, W, planes, stride = 2, 4, 16, 16, 8, 2
    x1 = jax.random.normal(k_x1, (N, Cin, H, W), jnp.float32)
    p1 = make_params(k_p1, Cin, planes, stride)
    fwd1 = jax.jit(functools.partial(basic_block_forward, stride=stride))
    out1 = jax.block_until_ready(fwd1(x1, p1))
    ref1 = jax.block_until_ready(ref_forward(x1, p1, stride))
    assert out1.shape == ref1.shape == (N, planes, H // stride, W // stride)
    err1 = float(jnp.max(jnp.abs(out1 - ref1)))
    assert jnp.allclose(out1, ref1, rtol=5e-2, atol=5e-2), err1

    # 2) identity shortcut: stride 1, in_planes == planes
    N2, Ci2, H2, W2 = 2, 8, 8, 8
    x2 = jax.random.normal(k_x2, (N2, Ci2, H2, W2), jnp.float32)
    p2 = make_params(k_p2, Ci2, Ci2, 1)
    fwd2 = jax.jit(functools.partial(basic_block_forward, stride=1))
    out2 = jax.block_until_ready(fwd2(x2, p2))
    ref2 = jax.block_until_ready(ref_forward(x2, p2, 1))
    assert out2.shape == ref2.shape == (N2, Ci2, H2, W2)
    err2 = float(jnp.max(jnp.abs(out2 - ref2)))
    assert jnp.allclose(out2, ref2, rtol=5e-2, atol=5e-2), err2

    print("KERNEL_OK")
</pallas_src>

<mosaic_0001>
module attributes {stable_mosaic.version = 11 : i64} {
  func.func @_basic_block_kernel(%arg0: i32, %arg1: memref<1x36x9x8xbf16, #tpu.memory_space<vmem>>, %arg2: memref<9x8x128xbf16, #tpu.memory_space<vmem>>, %arg3: memref<1x128xf32, #tpu.memory_space<vmem>>, %arg4: memref<1152x128xbf16, #tpu.memory_space<vmem>>, %arg5: memref<8x128xbf16, #tpu.memory_space<vmem>>, %arg6: memref<1x128xf32, #tpu.memory_space<vmem>>, %arg7: memref<1x64x128xf32, #tpu.memory_space<vmem>>, %arg8: memref<10x24x128xf32, #tpu.memory_space<vmem>>, %arg9: memref<64x1152xbf16, #tpu.memory_space<vmem>>) attributes {dimension_semantics = [#tpu.dimension_semantics<parallel>], iteration_bounds = array<i64: 2>, scalar_prefetch = 0 : i64, scratch_operands = 2 : i64, tpu.core_type = #tpu.core_type<tc>, window_params = [{transform_indices = @transform_0, window_bounds = array<i64: 1, 36, 9, 8>}, {pipeline_mode = #tpu.pipeline_mode<synchronous>, transform_indices = @transform_1, window_bounds = array<i64: 9, 8, 128>}, {pipeline_mode = #tpu.pipeline_mode<synchronous>, transform_indices = @transform_2, window_bounds = array<i64: 1, 128>}, {pipeline_mode = #tpu.pipeline_mode<synchronous>, transform_indices = @transform_3, window_bounds = array<i64: 1152, 128>}, {pipeline_mode = #tpu.pipeline_mode<synchronous>, transform_indices = @transform_4, window_bounds = array<i64: 8, 128>}, {pipeline_mode = #tpu.pipeline_mode<synchronous>, transform_indices = @transform_5, window_bounds = array<i64: 1, 128>}, {transform_indices = @transform_6, window_bounds = array<i64: 1, 64, 128>}]} {
    %c0 = arith.constant 0 : index
    %c0_0 = arith.constant 0 : index
    %c0_1 = arith.constant 0 : index
    %c0_2 = arith.constant 0 : index
    %0 = vector.load %arg1[%c0, %c0_0, %c0_1, %c0_2] : memref<1x36x9x8xbf16, #tpu.memory_space<vmem>>, vector<1x8x8x8xbf16>
    %1 = vector.shape_cast %0 : vector<1x8x8x8xbf16> to vector<8x8x8xbf16>
    %2 = vector.shape_cast %1 : vector<8x8x8xbf16> to vector<64x8xbf16>
    %c0_3 = arith.constant 0 : index
    %c0_4 = arith.constant 0 : index
    %c0_5 = arith.constant 0 : index
    %3 = vector.load %arg2[%c0_3, %c0_4, %c0_5] : memref<9x8x128xbf16, #tpu.memory_space<vmem>>, vector<1x8x128xbf16>
    %4 = vector.shape_cast %3 : vector<1x8x128xbf16> to vector<8x128xbf16>
    %cst = arith.constant dense<0.000000e+00> : vector<64x128xf32>
    %5 = tpu.matmul %2, %4, %cst {dimension_numbers = #tpu.dot_dimension_numbers<[1], [0], [0], [1], [0, 0, 1, 1], [], []>} : vector<64x8xbf16>, vector<8x128xbf16>, vector<64x128xf32> -> vector<64x128xf32>
    %c0_6 = arith.constant 0 : index
    %c9 = arith.constant 9 : index
    %c0_7 = arith.constant 0 : index
    %c0_8 = arith.constant 0 : index
    %6 = vector.load %arg1[%c0_6, %c9, %c0_7, %c0_8] : memref<1x36x9x8xbf16, #tpu.memory_space<vmem>>, vector<1x8x8x8xbf16>
    %7 = vector.shape_cast %6 : vector<1x8x8x8xbf16> to vector<8x8x8xbf16>
    %8 = vector.shape_cast %7 : vector<8x8x8xbf16> to vector<64x8xbf16>
    %c1 = arith.constant 1 : index
    %c0_9 = arith.constant 0 : index
    %c0_10 = arith.constant 0 : index
    %9 = vector.load %arg2[%c1, %c0_9, %c0_10] : memref<9x8x128xbf16, #tpu.memory_space<vmem>>, vector<1x8x128xbf16>
    %10 = vector.shape_cast %9 : vector<1x8x128xbf16> to vector<8x128xbf16>
    %cst_11 = arith.constant dense<0.000000e+00> : vector<64x128xf32>
    %11 = tpu.matmul %8, %10, %cst_11 {dimension_numbers = #tpu.dot_dimension_numbers<[1], [0], [0], [1], [0, 0, 1, 1], [], []>} : vector<64x8xbf16>, vector<8x128xbf16>, vector<64x128xf32> -> vector<64x128xf32>
    %12 = arith.addf %5, %11 : vector<64x128xf32>
    %c0_12 = arith.constant 0 : index
    %c0_13 = arith.constant 0 : index
    %c1_14 = arith.constant 1 : index
    %c0_15 = arith.constant 0 : index
    %13 = vector.load %arg1[%c0_12, %c0_13, %c1_14, %c0_15] : memref<1x36x9x8xbf16, #tpu.memory_space<vmem>>, vector<1x8x8x8xbf16>
    %14 = vector.shape_cast %13 : vector<1x8x8x8xbf16> to vector<8x8x8xbf16>
    %15 = vector.shape_cast %14 : vector<8x8x8xbf16> to vector<64x8xbf16>
    %c2 = arith.constant 2 : index
    %c0_16 = arith.constant 0 : index
    %c0_17 = arith.constant 0 : index
    %16 = vector.load %arg2[%c2, %c0_16, %c0_17] : memref<9x8x128xbf16, #tpu.memory_space<vmem>>, vector<1x8x128xbf16>
    %17 = vector.shape_cast %16 : vector<1x8x128xbf16> to vector<8x128xbf16>
    %cst_18 = arith.constant dense<0.000000e+00> : vector<64x128xf32>
    %18 = tpu.matmul %15, %17, %cst_18 {dimension_numbers = #tpu.dot_dimension_numbers<[1], [0], [0], [1], [0, 0, 1, 1], [], []>} : vector<64x8xbf16>, vector<8x128xbf16>, vector<64x128xf32> -> vector<64x128xf32>
    %19 = arith.addf %12, %18 : vector<64x128xf32>
    %c0_19 = arith.constant 0 : index
    %c18 = arith.constant 18 : index
    %c0_20 = arith.constant 0 : index
    %c0_21 = arith.constant 0 : index
    %20 = vector.load %arg1[%c0_19, %c18, %c0_20, %c0_21] : memref<1x36x9x8xbf16, #tpu.memory_space<vmem>>, vector<1x8x8x8xbf16>
    %21 = vector.shape_cast %20 : vector<1x8x8x8xbf16> to vector<8x8x8xbf16>
    %22 = vector.shape_cast %21 : vector<8x8x8xbf16> to vector<64x8xbf16>
    %c3 = arith.constant 3 : index
    %c0_22 = arith.constant 0 : index
    %c0_23 = arith.constant 0 : index
    %23 = vector.load %arg2[%c3, %c0_22, %c0_23] : memref<9x8x128xbf16, #tpu.memory_space<vmem>>, vector<1x8x128xbf16>
    %24 = vector.shape_cast %23 : vector<1x8x128xbf16> to vector<8x128xbf16>
    %cst_24 = arith.constant dense<0.000000e+00> : vector<64x128xf32>
    %25 = tpu.matmul %22, %24, %cst_24 {dimension_numbers = #tpu.dot_dimension_numbers<[1], [0], [0], [1], [0, 0, 1, 1], [], []>} : vector<64x8xbf16>, vector<8x128xbf16>, vector<64x128xf32> -> vector<64x128xf32>
    %26 = arith.addf %19, %25 : vector<64x128xf32>
    %c0_25 = arith.constant 0 : index
    %c27 = arith.constant 27 : index
    %c0_26 = arith.constant 0 : index
    %c0_27 = arith.constant 0 : index
    %27 = vector.load %arg1[%c0_25, %c27, %c0_26, %c0_27] : memref<1x36x9x8xbf16, #tpu.memory_space<vmem>>, vector<1x8x8x8xbf16>
    %28 = vector.shape_cast %27 : vector<1x8x8x8xbf16> to vector<8x8x8xbf16>
    %29 = vector.shape_cast %28 : vector<8x8x8xbf16> to vector<64x8xbf16>
    %c4 = arith.constant 4 : index
    %c0_28 = arith.constant 0 : index
    %c0_29 = arith.constant 0 : index
    %30 = vector.load %arg2[%c4, %c0_28, %c0_29] : memref<9x8x128xbf16, #tpu.memory_space<vmem>>, vector<1x8x128xbf16>
    %31 = vector.shape_cast %30 : vector<1x8x128xbf16> to vector<8x128xbf16>
    %cst_30 = arith.constant dense<0.000000e+00> : vector<64x128xf32>
    %32 = tpu.matmul %29, %31, %cst_30 {dimension_numbers = #tpu.dot_dimension_numbers<[1], [0], [0], [1], [0, 0, 1, 1], [], []>} : vector<64x8xbf16>, vector<8x128xbf16>, vector<64x128xf32> -> vector<64x128xf32>
    %33 = arith.addf %26, %32 : vector<64x128xf32>
    %c0_31 = arith.constant 0 : index
    %c18_32 = arith.constant 18 : index
    %c1_33 = arith.constant 1 : index
    %c0_34 = arith.constant 0 : index
    %34 = vector.load %arg1[%c0_31, %c18_32, %c1_33, %c0_34] : memref<1x36x9x8xbf16, #tpu.memory_space<vmem>>, vector<1x8x8x8xbf16>
    %35 = vector.shape_cast %34 : vector<1x8x8x8xbf16> to vector<8x8x8xbf16>
    %36 = vector.shape_cast %35 : vector<8x8x8xbf16> to vector<64x8xbf16>
    %c5 = arith.constant 5 : index
    %c0_35 = arith.constant 0 : index
    %c0_36 = arith.constant 0 : index
    %37 = vector.load %arg2[%c5, %c0_35, %c0_36] : memref<9x8x128xbf16, #tpu.memory_space<vmem>>, vector<1x8x128xbf16>
    %38 = vector.shape_cast %37 : vector<1x8x128xbf16> to vector<8x128xbf16>
    %cst_37 = arith.constant dense<0.000000e+00> : vector<64x128xf32>
    %39 = tpu.matmul %36, %38, %cst_37 {dimension_numbers = #tpu.dot_dimension_numbers<[1], [0], [0], [1], [0, 0, 1, 1], [], []>} : vector<64x8xbf16>, vector<8x128xbf16>, vector<64x128xf32> -> vector<64x128xf32>
    %40 = arith.addf %33, %39 : vector<64x128xf32>
    %c0_38 = arith.constant 0 : index
    %c1_39 = arith.constant 1 : index
    %c0_40 = arith.constant 0 : index
    %c0_41 = arith.constant 0 : index
    %41 = vector.load %arg1[%c0_38, %c1_39, %c0_40, %c0_41] : memref<1x36x9x8xbf16, #tpu.memory_space<vmem>>, vector<1x8x8x8xbf16>
    %42 = vector.shape_cast %41 : vector<1x8x8x8xbf16> to vector<8x8x8xbf16>
    %43 = vector.shape_cast %42 : vector<8x8x8xbf16> to vector<64x8xbf16>
    %c6 = arith.constant 6 : index
    %c0_42 = arith.constant 0 : index
    %c0_43 = arith.constant 0 : index
    %44 = vector.load %arg2[%c6, %c0_42, %c0_43] : memref<9x8x128xbf16, #tpu.memory_space<vmem>>, vector<1x8x128xbf16>
    %45 = vector.shape_cast %44 : vector<1x8x128xbf16> to vector<8x128xbf16>
    %cst_44 = arith.constant dense<0.000000e+00> : vector<64x128xf32>
    %46 = tpu.matmul %43, %45, %cst_44 {dimension_numbers = #tpu.dot_dimension_numbers<[1], [0], [0], [1], [0, 0, 1, 1], [], []>} : vector<64x8xbf16>, vector<8x128xbf16>, vector<64x128xf32> -> vector<64x128xf32>
    %47 = arith.addf %40, %46 : vector<64x128xf32>
    %c0_45 = arith.constant 0 : index
    %c10 = arith.constant 10 : index
    %c0_46 = arith.constant 0 : index
    %c0_47 = arith.constant 0 : index
    %48 = vector.load %arg1[%c0_45, %c10, %c0_46, %c0_47] : memref<1x36x9x8xbf16, #tpu.memory_space<vmem>>, vector<1x8x8x8xbf16>
    %49 = vector.shape_cast %48 : vector<1x8x8x8xbf16> to vector<8x8x8xbf16>
    %50 = vector.shape_cast %49 : vector<8x8x8xbf16> to vector<64x8xbf16>
    %c7 = arith.constant 7 : index
    %c0_48 = arith.constant 0 : index
    %c0_49 = arith.constant 0 : index
    %51 = vector.load %arg2[%c7, %c0_48, %c0_49] : memref<9x8x128xbf16, #tpu.memory_space<vmem>>, vector<1x8x128xbf16>
    %52 = vector.shape_cast %51 : vector<1x8x128xbf16> to vector<8x128xbf16>
    %cst_50 = arith.constant dense<0.000000e+00> : vector<64x128xf32>
    %53 = tpu.matmul %50, %52, %cst_50 {dimension_numbers = #tpu.dot_dimension_numbers<[1], [0], [0], [1], [0, 0, 1, 1], [], []>} : vector<64x8xbf16>, vector<8x128xbf16>, vector<64x128xf32> -> vector<64x128xf32>
    %54 = arith.addf %47, %53 : vector<64x128xf32>
    %c0_51 = arith.constant 0 : index
    %c1_52 = arith.constant 1 : index
    %c1_53 = arith.constant 1 : index
    %c0_54 = arith.constant 0 : index
    %55 = vector.load %arg1[%c0_51, %c1_52, %c1_53, %c0_54] : memref<1x36x9x8xbf16, #tpu.memory_space<vmem>>, vector<1x8x8x8xbf16>
    %56 = vector.shape_cast %55 : vector<1x8x8x8xbf16> to vector<8x8x8xbf16>
    %57 = vector.shape_cast %56 : vector<8x8x8xbf16> to vector<64x8xbf16>
    %c8 = arith.constant 8 : index
    %c0_55 = arith.constant 0 : index
    %c0_56 = arith.constant 0 : index
    %58 = vector.load %arg2[%c8, %c0_55, %c0_56] : memref<9x8x128xbf16, #tpu.memory_space<vmem>>, vector<1x8x128xbf16>
    %59 = vector.shape_cast %58 : vector<1x8x128xbf16> to vector<8x128xbf16>
    %cst_57 = arith.constant dense<0.000000e+00> : vector<64x128xf32>
    %60 = tpu.matmul %57, %59, %cst_57 {dimension_numbers = #tpu.dot_dimension_numbers<[1], [0], [0], [1], [0, 0, 1, 1], [], []>} : vector<64x8xbf16>, vector<8x128xbf16>, vector<64x128xf32> -> vector<64x128xf32>
    %61 = arith.addf %54, %60 : vector<64x128xf32>
    %c0_58 = arith.constant 0 : index
    %c0_59 = arith.constant 0 : index
    %62 = vector.load %arg3[%c0_58, %c0_59] : memref<1x128xf32, #tpu.memory_space<vmem>>, vector<1x128xf32>
    %63 = vector.broadcast %62 : vector<1x128xf32> to vector<64x128xf32>
    %64 = arith.addf %61, %63 : vector<64x128xf32>
    %cst_60 = arith.constant 0.000000e+00 : f32
    %65 = vector.broadcast %cst_60 : f32 to vector<64x128xf32>
    %66 = arith.maximumf %64, %65 : vector<64x128xf32>
    %cst_61 = arith.constant 0.000000e+00 : f32
    %67 = vector.broadcast %cst_61 : f32 to vector<10x24x128xf32>
    %c0_62 = arith.constant 0 : index
    %c0_63 = arith.constant 0 : index
    %c0_64 = arith.constant 0 : index
    %68 = vector.load %arg8[%c0_62, %c0_63, %c0_64] : memref<10x24x128xf32, #tpu.memory_space<vmem>>, vector<10x24x128xf32>
    tpu.vector_store %arg8[%c0_62, %c0_63, %c0_64], %67 {strides = array<i32>} : memref<10x24x128xf32, #tpu.memory_space<vmem>>, vector<10x24x128xf32>,
    %69 = vector.shape_cast %66 : vector<64x128xf32> to vector<8x8x128xf32>
    %c1_65 = arith.constant 1 : index
    %c8_66 = arith.constant 8 : index
    %c0_67 = arith.constant 0 : index
    %70 = vector.load %arg8[%c1_65, %c8_66, %c0_67] : memref<10x24x128xf32, #tpu.memory_space<vmem>>, vector<8x8x128xf32>
    tpu.vector_store %arg8[%c1_65, %c8_66, %c0_67], %69 {strides = array<i32>} : memref<10x24x128xf32, #tpu.memory_space<vmem>>, vector<8x8x128xf32>,
    %c0_68 = arith.constant 0 : index
    %c7_69 = arith.constant 7 : index
    %c0_70 = arith.constant 0 : index
    %71 = vector.load %arg8[%c0_68, %c7_69, %c0_70] : memref<10x24x128xf32, #tpu.memory_space<vmem>>, vector<8x8x128xf32>
    %72 = vector.shape_cast %71 : vector<8x8x128xf32> to vector<64x128xf32>
    %73 = arith.truncf %72 : vector<64x128xf32> to vector<64x128xbf16>
    %c0_71 = arith.constant 0 : index
    %c0_72 = arith.constant 0 : index
    %74 = vector.load %arg9[%c0_71, %c0_72] : memref<64x1152xbf16, #tpu.memory_space<vmem>>, vector<64x128xbf16>
    tpu.vector_store %arg9[%c0_71, %c0_72], %73 {strides = array<i32>} : memref<64x1152xbf16, #tpu.memory_space<vmem>>, vector<64x128xbf16>,
    %c0_73 = arith.constant 0 : index
    %c8_74 = arith.constant 8 : index
    %c0_75 = arith.constant 0 : index
    %75 = vector.load %arg8[%c0_73, %c8_74, %c0_75] : memref<10x24x128xf32, #tpu.memory_space<vmem>>, vector<8x8x128xf32>
    %76 = vector.shape_cast %75 : vector<8x8x128xf32> to vector<64x128xf32>
    %77 = arith.truncf %76 : vector<64x128xf32> to vector<64x128xbf16>
    %c0_76 = arith.constant 0 : index
    %c128 = arith.constant 128 : index
    %78 = vector.load %arg9[%c0_76, %c128] : memref<64x1152xbf16, #tpu.memory_space<vmem>>, vector<64x128xbf16>
    tpu.vector_store %arg9[%c0_76, %c128], %77 {strides = array<i32>} : memref<64x1152xbf16, #tpu.memory_space<vmem>>, vector<64x128xbf16>,
    %c0_77 = arith.constant 0 : index
    %c9_78 = arith.constant 9 : index
    %c0_79 = arith.constant 0 : index
    %79 = vector.load %arg8[%c0_77, %c9_78, %c0_79] : memref<10x24x128xf32, #tpu.memory_space<vmem>>, vector<8x8x128xf32>
    %80 = vector.shape_cast %79 : vector<8x8x128xf32> to vector<64x128xf32>
    %81 = arith.truncf %80 : vector<64x128xf32> to vector<64x128xbf16>
    %c0_80 = arith.constant 0 : index
    %c256 = arith.constant 256 : index
    %82 = vector.load %arg9[%c0_80, %c256] : memref<64x1152xbf16, #tpu.memory_space<vmem>>, vector<64x128xbf16>
    tpu.vector_store %arg9[%c0_80, %c256], %81 {strides = array<i32>} : memref<64x1152xbf16, #tpu.memory_space<vmem>>, vector<64x128xbf16>,
    %c1_81 = arith.constant 1 : index
    %c7_82 = arith.constant 7 : index
    %c0_83 = arith.constant 0 : index
    %83 = vector.load %arg8[%c1_81, %c7_82, %c0_83] : memref<10x24x128xf32, #tpu.memory_space<vmem>>, vector<8x8x128xf32>
    %84 = vector.shape_cast %83 : vector<8x8x128xf32> to vector<64x128xf32>
    %85 = arith.truncf %84 : vector<64x128xf32> to vector<64x128xbf16>
    %c0_84 = arith.constant 0 : index
    %c384 = arith.constant 384 : index
    %86 = vector.load %arg9[%c0_84, %c384] : memref<64x1152xbf16, #tpu.memory_space<vmem>>, vector<64x128xbf16>
    tpu.vector_store %arg9[%c0_84, %c384], %85 {strides = array<i32>} : memref<64x1152xbf16, #tpu.memory_space<vmem>>, vector<64x128xbf16>,
    %c1_85 = arith.constant 1 : index
    %c8_86 = arith.constant 8 : index
    %c0_87 = arith.constant 0 : index
    %87 = vector.load %arg8[%c1_85, %c8_86, %c0_87] : memref<10x24x128xf32, #tpu.memory_space<vmem>>, vector<8x8x128xf32>
    %88 = vector.shape_cast %87 : vector<8x8x128xf32> to vector<64x128xf32>
    %89 = arith.truncf %88 : vector<64x128xf32> to vector<64x128xbf16>
    %c0_88 = arith.constant 0 : index
    %c512 = arith.constant 512 : index
    %90 = vector.load %arg9[%c0_88, %c512] : memref<64x1152xbf16, #tpu.memory_space<vmem>>, vector<64x128xbf16>
    tpu.vector_store %arg9[%c0_88, %c512], %89 {strides = array<i32>} : memref<64x1152xbf16, #tpu.memory_space<vmem>>, vector<64x128xbf16>,
    %c1_89 = arith.constant 1 : index
    %c9_90 = arith.constant 9 : index
    %c0_91 = arith.constant 0 : index
    %91 = vector.load %arg8[%c1_89, %c9_90, %c0_91] : memref<10x24x128xf32, #tpu.memory_space<vmem>>, vector<8x8x128xf32>
    %92 = vector.shape_cast %91 : vector<8x8x128xf32> to vector<64x128xf32>
    %93 = arith.truncf %92 : vector<64x128xf32> to vector<64x128xbf16>
    %c0_92 = arith.constant 0 : index
    %c640 = arith.constant 640 : index
    %94 = vector.load %arg9[%c0_92, %c640] : memref<64x1152xbf16, #tpu.memory_space<vmem>>, vector<64x128xbf16>
    tpu.vector_store %arg9[%c0_92, %c640], %93 {strides = array<i32>} : memref<64x1152xbf16, #tpu.memory_space<vmem>>, vector<64x128xbf16>,
    %c2_93 = arith.constant 2 : index
    %c7_94 = arith.constant 7 : index
    %c0_95 = arith.constant 0 : index
    %95 = vector.load %arg8[%c2_93, %c7_94, %c0_95] : memref<10x24x128xf32, #tpu.memory_space<vmem>>, vector<8x8x128xf32>
    %96 = vector.shape_cast %95 : vector<8x8x128xf32> to vector<64x128xf32>
    %97 = arith.truncf %96 : vector<64x128xf32> to vector<64x128xbf16>
    %c0_96 = arith.constant 0 : index
    %c768 = arith.constant 768 : index
    %98 = vector.load %arg9[%c0_96, %c768] : memref<64x1152xbf16, #tpu.memory_space<vmem>>, vector<64x128xbf16>
    tpu.vector_store %arg9[%c0_96, %c768], %97 {strides = array<i32>} : memref<64x1152xbf16, #tpu.memory_space<vmem>>, vector<64x128xbf16>,
    %c2_97 = arith.constant 2 : index
    %c8_98 = arith.constant 8 : index
    %c0_99 = arith.constant 0 : index
    %99 = vector.load %arg8[%c2_97, %c8_98, %c0_99] : memref<10x24x128xf32, #tpu.memory_space<vmem>>, vector<8x8x128xf32>
    %100 = vector.shape_cast %99 : vector<8x8x128xf32> to vector<64x128xf32>
    %101 = arith.truncf %100 : vector<64x128xf32> to vector<64x128xbf16>
    %c0_100 = arith.constant 0 : index
    %c896 = arith.constant 896 : index
    %102 = vector.load %arg9[%c0_100, %c896] : memref<64x1152xbf16, #tpu.memory_space<vmem>>, vector<64x128xbf16>
    tpu.vector_store %arg9[%c0_100, %c896], %101 {strides = array<i32>} : memref<64x1152xbf16, #tpu.memory_space<vmem>>, vector<64x128xbf16>,
    %c2_101 = arith.constant 2 : index
    %c9_102 = arith.constant 9 : index
    %c0_103 = arith.constant 0 : index
    %103 = vector.load %arg8[%c2_101, %c9_102, %c0_103] : memref<10x24x128xf32, #tpu.memory_space<vmem>>, vector<8x8x128xf32>
    %104 = vector.shape_cast %103 : vector<8x8x128xf32> to vector<64x128xf32>
    %105 = arith.truncf %104 : vector<64x128xf32> to vector<64x128xbf16>
    %c0_104 = arith.constant 0 : index
    %c1024 = arith.constant 1024 : index
    %106 = vector.load %arg9[%c0_104, %c1024] : memref<64x1152xbf16, #tpu.memory_space<vmem>>, vector<64x128xbf16>
    tpu.vector_store %arg9[%c0_104, %c1024], %105 {strides = array<i32>} : memref<64x1152xbf16, #tpu.memory_space<vmem>>, vector<64x128xbf16>,
    %c0_105 = arith.constant 0 : index
    %c0_106 = arith.constant 0 : index
    %107 = vector.load %arg9[%c0_105, %c0_106] : memref<64x1152xbf16, #tpu.memory_space<vmem>>, vector<64x1152xbf16>
    %c0_107 = arith.constant 0 : index
    %c0_108 = arith.constant 0 : index
    %108 = vector.load %arg4[%c0_107, %c0_108] : memref<1152x128xbf16, #tpu.memory_space<vmem>>, vector<1152x128xbf16>
    %cst_109 = arith.constant dense<0.000000e+00> : vector<64x128xf32>
    %109 = tpu.matmul %107, %108, %cst_109 {dimension_numbers = #tpu.dot_dimension_numbers<[1], [0], [0], [1], [0, 0, 1, 1], [], []>} : vector<64x1152xbf16>, vector<1152x128xbf16>, vector<64x128xf32> -> vector<64x128xf32>
    %c0_110 = arith.constant 0 : index
    %c27_111 = arith.constant 27 : index
    %c0_112 = arith.constant 0 : index
    %c0_113 = arith.constant 0 : index
    %110 = vector.load %arg1[%c0_110, %c27_111, %c0_112, %c0_113] : memref<1x36x9x8xbf16, #tpu.memory_space<vmem>>, vector<1x8x8x8xbf16>
    %111 = vector.shape_cast %110 : vector<1x8x8x8xbf16> to vector<8x8x8xbf16>
    %112 = vector.shape_cast %111 : vector<8x8x8xbf16> to vector<64x8xbf16>
    %c0_114 = arith.constant 0 : index
    %c0_115 = arith.constant 0 : index
    %113 = vector.load %arg5[%c0_114, %c0_115] : memref<8x128xbf16, #tpu.memory_space<vmem>>, vector<8x128xbf16>
    %cst_116 = arith.constant dense<0.000000e+00> : vector<64x128xf32>
    %114 = tpu.matmul %112, %113, %cst_116 {dimension_numbers = #tpu.dot_dimension_numbers<[1], [0], [0], [1], [0, 0, 1, 1], [], []>} : vector<64x8xbf16>, vector<8x128xbf16>, vector<64x128xf32> -> vector<64x128xf32>
    %115 = arith.addf %109, %114 : vector<64x128xf32>
    %c0_117 = arith.constant 0 : index
    %c0_118 = arith.constant 0 : index
    %116 = vector.load %arg6[%c0_117, %c0_118] : memref<1x128xf32, #tpu.memory_space<vmem>>, vector<1x128xf32>
    %117 = vector.broadcast %116 : vector<1x128xf32> to vector<64x128xf32>
    %118 = arith.addf %115, %117 : vector<64x128xf32>
    %cst_119 = arith.constant 0.000000e+00 : f32
    %119 = vector.broadcast %cst_119 : f32 to vector<64x128xf32>
    %120 = arith.maximumf %118, %119 : vector<64x128xf32>
    %c0_120 = arith.constant 0 : index
    %c0_121 = arith.constant 0 : index
    %c0_122 = arith.constant 0 : index
    %121 = vector.load %arg7[%c0_120, %c0_121, %c0_122] : memref<1x64x128xf32, #tpu.memory_space<vmem>>, vector<1x64x128xf32>
    %122 = vector.shape_cast %121 : vector<1x64x128xf32> to vector<64x128xf32>
    %123 = vector.shape_cast %120 : vector<64x128xf32> to vector<1x64x128xf32>
    tpu.vector_store %arg7[%c0_120, %c0_121, %c0_122], %123 {strides = array<i32>} : memref<1x64x128xf32, #tpu.memory_space<vmem>>, vector<1x64x128xf32>,
    return
  }
  func.func @transform_0(%arg0: i32) -> (i32, i32, i32, i32) {
    %c0_i32 = arith.constant 0 : i32
    %c0_i32_0 = arith.constant 0 : i32
    %c0_i32_1 = arith.constant 0 : i32
    %c0_i32_2 = arith.constant 0 : i32
    return %arg0, %c0_i32, %c0_i32_0, %c0_i32_1 : i32, i32, i32, i32
  }
  func.func @transform_1(%arg0: i32) -> (i32, i32, i32) {
    %c0_i32 = arith.constant 0 : i32
    %c0_i32_0 = arith.constant 0 : i32
    %c0_i32_1 = arith.constant 0 : i32
    %c0_i32_2 = arith.constant 0 : i32
    return %c0_i32, %c0_i32_0, %c0_i32_1 : i32, i32, i32
  }
  func.func @transform_2(%arg0: i32) -> (i32, i32) {
    %c0_i32 = arith.constant 0 : i32
    %c0_i32_0 = arith.constant 0 : i32
    %c0_i32_1 = arith.constant 0 : i32
    return %c0_i32, %c0_i32_0 : i32, i32
  }
  func.func @transform_3(%arg0: i32) -> (i32, i32) {
    %c0_i32 = arith.constant 0 : i32
    %c0_i32_0 = arith.constant 0 : i32
    %c0_i32_1 = arith.constant 0 : i32
    return %c0_i32, %c0_i32_0 : i32, i32
  }
  func.func @transform_4(%arg0: i32) -> (i32, i32) {
    %c0_i32 = arith.constant 0 : i32
    %c0_i32_0 = arith.constant 0 : i32
    %c0_i32_1 = arith.constant 0 : i32
    return %c0_i32, %c0_i32_0 : i32, i32
  }
  func.func @transform_5(%arg0: i32) -> (i32, i32) {
    %c0_i32 = arith.constant 0 : i32
    %c0_i32_0 = arith.constant 0 : i32
    %c0_i32_1 = arith.constant 0 : i32
    return %c0_i32, %c0_i32_0 : i32, i32
  }
  func.func @transform_6(%arg0: i32) -> (i32, i32, i32) {
    %c0_i32 = arith.constant 0 : i32
    %c0_i32_0 = arith.constant 0 : i32
    %c0_i32_1 = arith.constant 0 : i32
    return %arg0, %c0_i32, %c0_i32_0 : i32, i32, i32
  }
}

</mosaic_0001>

<llo_original>
// kernel: basic_block_forward.1
$region0: #{basic_block_forward.1}
  #allocation0 [shape = 'u32[]', space=smem, size = 0x4, offset = 0x4, fixed_abs, tag = 'smem constant byte address 0x4 - core index']
  #allocation1 [shape = 'u32[144,128]{1,0:T(1,128)}', space=vmem, size = 0x12000, scoped, tag = 'internal scratch']
  #allocation2 [shape = 'f32[10,24,128]{2,1,0:T(8,128)}', space=vmem, size = 0x1e000, scoped, tag = 'scratch operand']
  #allocation3 [shape = 'bf16[64,1152]{1,0:T(8,128)(2,1)}', space=vmem, size = 0x24000, scoped, tag = 'scratch operand']
  %s0 = inlined_call_operand.vmem [shape: bf16[2,36,9,8], index: 0, kind: input, shape index: {}]
  %s1 = inlined_call_operand.vmem [shape: bf16[9,8,128], index: 1, kind: input, shape index: {}]
  %s2 = inlined_call_operand.vmem [shape: f32[1,128], index: 2, kind: input, shape index: {}]
  %s3 = inlined_call_operand.vmem [shape: bf16[1152,128], index: 3, kind: input, shape index: {}]
  %s4 = inlined_call_operand.vmem [shape: bf16[8,128], index: 4, kind: input, shape index: {}]
  %s5 = inlined_call_operand.vmem [shape: f32[1,128], index: 5, kind: input, shape index: {}]
  %s6 = inlined_call_operand.vmem [shape: f32[2,64,128], index: 6, kind: output, shape index: {}]
  %s7 = sld [smem:[#allocation0]]
  $region57: #{basic_block_forward.1} parent=0
    _
  %s9 = ssub.s32 1, %s7
  %s10 = scalar_select 0, %s9, %s7
  loop: start=0, step=1, limit=4
  $region2: #{basic_block_forward.1} parent=0 // loop_pre_header
    _
  $region3: #{basic_block_forward.1} parent=0 // loop_header
    %s12 = sphi 0, %s16
    %p13 = scmp.ge.s32.totalorder %s12, 4
    %s22 = sphi 0, %s24
    %s25 = sphi 0, %s22
    %s26 = sphi 0, %s25
    %s42 = sphi 0, %s26
    %s46 = sphi 0, %s46
    %s48 = sphi 0, %s46
    %s49 = sphi 0, %s48
    %s63 = sphi 0, %s49
    %s67 = sphi 0, %s67
    %s69 = sphi 0, %s67
    %s70 = sphi 0, %s69
    %s84 = sphi 0, %s70
    %s88 = sphi 0, %s88
    %s90 = sphi 0, %s88
    %s91 = sphi 0, %s90
    %s105 = sphi 0, %s91
    %s109 = sphi 0, %s109
    %s111 = sphi 0, %s109
    %s112 = sphi 0, %s111
    %s126 = sphi 0, %s112
    %s130 = sphi 0, %s130
    %s132 = sphi 0, %s130
    %s133 = sphi 0, %s132
    %s147 = sphi 0, %s133
    %s153 = sphi 0, %s155
    %s156 = sphi 0, %s153
    %s157 = sphi 0, %s156
    %s173 = sphi 0, %s157
  $region4: #{basic_block_forward.1} parent=0 // loop_header_branch
    %15 = sbr.rel (%p13) target = $region8
  $region5: #{basic_block_forward.1} parent=0 // loop_body
    %s17 = ssub.s32 %s12, 1
    %s18 = ssub.s32 %s12, 2
    %s19 = sadd.s32 %s12, 1
    %s20 = ssub.s32 %s12, %s19
    %p21 = scmp.eq.s32.totalorder %s20, 0
    %s23 = sadd.s32 %s22, 1
    %s24 = scalar_select %p21, %s22, %s23
    %p27 = pneg %p21
    %p28 = scmp.eq.s32.totalorder %s12, 1
    %p29 = por %p27, %p28
    %p30 = scmp.ne.s32.totalorder %s22, %s25
    %p31 = scmp.eq.s32.totalorder %s12, 0
    %p32 = por %p30, %p31
    %p33 = scmp.ne.s32.totalorder %s22, %s25
    %p34 = scmp.eq.s32.totalorder %s17, 1
    %p35 = por %p33, %p34
    %p36 = scmp.ne.s32.totalorder %s25, %s26
    %p37 = scmp.eq.s32.totalorder %s17, 0
    %p38 = por %p36, %p37
    %p39 = scmp.ne.s32.totalorder %s25, %s26
    %p40 = scmp.eq.s32.totalorder %s18, 1
    %p41 = por %p39, %p40
    %p43 = scmp.ne.s32.totalorder %s26, %s42
    %p44 = scmp.eq.s32.totalorder %s18, 0
    %p45 = por %p43, %p44
    %s47 = sadd.s32 %s46, 1
    %p50 = scmp.eq.s32.totalorder %s12, 1
    %p51 = scmp.ne.s32.totalorder %s46, %s48
    %p52 = scmp.eq.s32.totalorder %s12, 0
    %p53 = por %p51, %p52
    %p54 = scmp.ne.s32.totalorder %s46, %s48
    %p55 = scmp.eq.s32.totalorder %s17, 1
    %p56 = por %p54, %p55
    %p57 = scmp.ne.s32.totalorder %s48, %s49
    %p58 = scmp.eq.s32.totalorder %s17, 0
    %p59 = por %p57, %p58
    %p60 = scmp.ne.s32.totalorder %s48, %s49
    %p61 = scmp.eq.s32.totalorder %s18, 1
    %p62 = por %p60, %p61
    %p64 = scmp.ne.s32.totalorder %s49, %s63
    %p65 = scmp.eq.s32.totalorder %s18, 0
    %p66 = por %p64, %p65
    %s68 = sadd.s32 %s67, 1
    %p71 = scmp.eq.s32.totalorder %s12, 1
    %p72 = scmp.ne.s32.totalorder %s67, %s69
    %p73 = scmp.eq.s32.totalorder %s12, 0
    %p74 = por %p72, %p73
    %p75 = scmp.ne.s32.totalorder %s67, %s69
    %p76 = scmp.eq.s32.totalorder %s17, 1
    %p77 = por %p75, %p76
    %p78 = scmp.ne.s32.totalorder %s69, %s70
    %p79 = scmp.eq.s32.totalorder %s17, 0
    %p80 = por %p78, %p79
    %p81 = scmp.ne.s32.totalorder %s69, %s70
    %p82 = scmp.eq.s32.totalorder %s18, 1
    %p83 = por %p81, %p82
    %p85 = scmp.ne.s32.totalorder %s70, %s84
    %p86 = scmp.eq.s32.totalorder %s18, 0
    %p87 = por %p85, %p86
    %s89 = sadd.s32 %s88, 1
    %p92 = scmp.eq.s32.totalorder %s12, 1
    %p93 = scmp.ne.s32.totalorder %s88, %s90
    %p94 = scmp.eq.s32.totalorder %s12, 0
    %p95 = por %p93, %p94
    %p96 = scmp.ne.s32.totalorder %s88, %s90
    %p97 = scmp.eq.s32.totalorder %s17, 1
    %p98 = por %p96, %p97
    %p99 = scmp.ne.s32.totalorder %s90, %s91
    %p100 = scmp.eq.s32.totalorder %s17, 0
    %p101 = por %p99, %p100
    %p102 = scmp.ne.s32.totalorder %s90, %s91
    %p103 = scmp.eq.s32.totalorder %s18, 1
    %p104 = por %p102, %p103
    %p106 = scmp.ne.s32.totalorder %s91, %s105
    %p107 = scmp.eq.s32.totalorder %s18, 0
    %p108 = por %p106, %p107
    %s110 = sadd.s32 %s109, 1
    %p113 = scmp.eq.s32.totalorder %s12, 1
    %p114 = scmp.ne.s32.totalorder %s109, %s111
    %p115 = scmp.eq.s32.totalorder %s12, 0
    %p116 = por %p114, %p115
    %p117 = scmp.ne.s32.totalorder %s109, %s111
    %p118 = scmp.eq.s32.totalorder %s17, 1
    %p119 = por %p117, %p118
    %p120 = scmp.ne.s32.totalorder %s111, %s112
    %p121 = scmp.eq.s32.totalorder %s17, 0
    %p122 = por %p120, %p121
    %p123 = scmp.ne.s32.totalorder %s111, %s112
    %p124 = scmp.eq.s32.totalorder %s18, 1
    %p125 = por %p123, %p124
    %p127 = scmp.ne.s32.totalorder %s112, %s126
    %p128 = scmp.eq.s32.totalorder %s18, 0
    %p129 = por %p127, %p128
    %s131 = sadd.s32 %s130, 1
    %p134 = scmp.eq.s32.totalorder %s12, 1
    %p135 = scmp.ne.s32.totalorder %s130, %s132
    %p136 = scmp.eq.s32.totalorder %s12, 0
    %p137 = por %p135, %p136
    %p138 = scmp.ne.s32.totalorder %s130, %s132
    %p139 = scmp.eq.s32.totalorder %s17, 1
    %p140 = por %p138, %p139
    %p141 = scmp.ne.s32.totalorder %s132, %s133
    %p142 = scmp.eq.s32.totalorder %s17, 0
    %p143 = por %p141, %p142
    %p144 = scmp.ne.s32.totalorder %s132, %s133
    %p145 = scmp.eq.s32.totalorder %s18, 1
    %p146 = por %p144, %p145
    %p148 = scmp.ne.s32.totalorder %s133, %s147
    %p149 = scmp.eq.s32.totalorder %s18, 0
    %p150 = por %p148, %p149
    %s151 = ssub.s32 %s12, %s19
    %p152 = scmp.eq.s32.totalorder %s151, 0
    %s154 = sadd.s32 %s153, 1
    %s155 = scalar_select %p152, %s153, %s154
    %p158 = pneg %p152
    %p159 = scmp.eq.s32.totalorder %s12, 1
    %p160 = por %p158, %p159
    %p161 = scmp.ne.s32.totalorder %s153, %s156
    %p162 = scmp.eq.s32.totalorder %s12, 0
    %p163 = por %p161, %p162
    %p164 = scmp.ne.s32.totalorder %s153, %s156
    %p165 = scmp.eq.s32.totalorder %s17, 1
    %p166 = por %p164, %p165
    %p167 = scmp.ne.s32.totalorder %s156, %s157
    %p168 = scmp.eq.s32.totalorder %s17, 0
    %p169 = por %p167, %p168
    %p170 = scmp.ne.s32.totalorder %s156, %s157
    %p171 = scmp.eq.s32.totalorder %s18, 1
    %p172 = por %p170, %p171
    %p174 = scmp.ne.s32.totalorder %s157, %s173
    %p175 = scmp.eq.s32.totalorder %s18, 0
    %p176 = por %p174, %p175
    %p177 = scmp.le.s32.totalorder 1, %s12
    %p178 = scmp.lt.s32.totalorder %s12, 3
    %p179 = pnand %p177, %p178
    %p180 = pneg %p179
    // Predicated region
    $region9: #{basic_block_forward.1} parent=5 // pred_check
      _
    $region10: #{basic_block_forward.1} parent=5 // pred_check_branch
      %182 = sbr.rel (%p179) target = $region12
    $region11: #{basic_block_forward.1} parent=5 // pred_region
      %s183 = ssub.s32 %s12, 1
      // Predicated region
      $region13: #{basic_block_forward.1} parent=11 // pred_check
        %p184 = pneg %p59
      $region14: #{basic_block_forward.1} parent=11 // pred_check_branch
        %186 = sbr.rel (%p184) target = $region16
      $region15: #{basic_block_forward.1} parent=11 // pred_region
        _
      $region16: #{basic_block_forward.1} parent=11 // pred_fallthru
        _
      // Predicated region
      $region17: #{basic_block_forward.1} parent=11 // pred_check
        %p187 = pneg %p80
      $region18: #{basic_block_forward.1} parent=11 // pred_check_branch
        %189 = sbr.rel (%p187) target = $region20
      $region19: #{basic_block_forward.1} parent=11 // pred_region
        _
      $region20: #{basic_block_forward.1} parent=11 // pred_fallthru
        _
      // Predicated region
      $region21: #{basic_block_forward.1} parent=11 // pred_check
        %p190 = pneg %p101
      $region22: #{basic_block_forward.1} parent=11 // pred_check_branch
        %192 = sbr.rel (%p190) target = $region24
      $region23: #{basic_block_forward.1} parent=11 // pred_region
        _
      $region24: #{basic_block_forward.1} parent=11 // pred_fallthru
        _
      // Predicated region
      $region25: #{basic_block_forward.1} parent=11 // pred_check
        %p193 = pneg %p122
      $region26: #{basic_block_forward.1} parent=11 // pred_check_branch
        %195 = sbr.rel (%p193) target = $region28
      $region27: #{basic_block_forward.1} parent=11 // pred_region
        _
      $region28: #{basic_block_forward.1} parent=11 // pred_fallthru
        _
      // Predicated region
      $region29: #{basic_block_forward.1} parent=11 // pred_check
        %p196 = pneg %p143
      $region30: #{basic_block_forward.1} parent=11 // pred_check_branch
        %198 = sbr.rel (%p196) target = $region32
      $region31: #{basic_block_forward.1} parent=11 // pred_region
        _
      $region32: #{basic_block_forward.1} parent=11 // pred_fallthru
        _
    $region12: #{basic_block_forward.1} parent=5 // pred_fallthru
      _
    %p199 = scmp.lt.s32.totalorder %s12, 2
    // Predicated region
    $region33: #{basic_block_forward.1} parent=5 // pred_check
      %p200 = pneg %p199
    $region34: #{basic_block_forward.1} parent=5 // pred_check_branch
      %202 = sbr.rel (%p200) target = $region36
    $region35: #{basic_block_forward.1} parent=5 // pred_region
      // Predicated region
      $region37: #{basic_block_forward.1} parent=35 // pred_check
        %p203 = pneg %p32
      $region38: #{basic_block_forward.1} parent=35 // pred_check_branch
        %205 = sbr.rel (%p203) target = $region40
      $region39: #{basic_block_forward.1} parent=35 // pred_region
        %p206 = scmp.lt.s32.totalorder %s12, 1
        %s207 = scalar_select %p206, %s12, 1
        %s208 = smul.addr %s207, 72
        %s209 = smul.addr %s208, 4
        %s210 = scalar_lea.vmem %s0, %s209
      $region40: #{basic_block_forward.1} parent=35 // pred_fallthru
        _
    $region36: #{basic_block_forward.1} parent=5 // pred_fallthru
      _
    %p211 = scmp.le.s32.totalorder 1, %s12
    %p212 = scmp.lt.s32.totalorder %s12, 3
    %p213 = pnand %p211, %p212
    %p214 = pneg %p213
    // Predicated region
    $region41: #{basic_block_forward.1} parent=5 // pred_check
      _
    $region42: #{basic_block_forward.1} parent=5 // pred_check_branch
      %216 = sbr.rel (%p213) target = $region44
    $region43: #{basic_block_forward.1} parent=5 // pred_region
      %s217 = ssub.s32 %s12, 1
      %p218 = scmp.lt.s32.totalorder %s17, 1
      %s219 = scalar_select %p218, %s17, 1
      %s220 = smul.addr %s219, 72
      %s221 = smul.addr %s220, 4
      %s222 = scalar_lea.vmem %s0, %s221
      %p223 = pneg %p38
      %p224 = pneg %p35
      %p225 = pneg %p59
      %p226 = pneg %p56
      %p227 = pneg %p80
      %p228 = pneg %p77
      %p229 = pneg %p101
      %p230 = pneg %p98
      %p231 = pneg %p122
      %p232 = pneg %p119
      %p233 = pneg %p143
      %p234 = pneg %p140
      %p235 = pneg %p169
      %p236 = pneg %p166
      %p237 = scmp.lt.s32.totalorder %s17, 1
      %s238 = scalar_select %p237, %s17, 1
      %s239 = smul.addr %s238, 8
      %s240 = smul.addr %s239, 8
      %s241 = scalar_lea.vmem %s6, %s240
      %p242 = scmp.lt.s32.totalorder %s17, 1
      %s243 = scalar_select %p242, %s17, 1
      %s244 = smul.addr %s243, 72
      %s245 = smul.addr %s244, 4
      %s246 = scalar_lea.vmem %s0, %s245
      %p247 = scmp.lt.s32.totalorder %s17, 1
      %s248 = scalar_select %p247, %s17, 1
      %s249 = smul.addr %s248, 8
      %s250 = smul.addr %s249, 8
      %s251 = scalar_lea.vmem %s6, %s250
      %v253 = vld [vmem:[%s246] sm:$0xf]
      %v254 = vld [vmem:[%s246 + $0x8] sm:$0xf]
      %v255 = vld [vmem:[%s246 + $0x10] sm:$0xf]
      %v256 = vld [vmem:[%s246 + $0x18] sm:$0xf]
      %v257 = vld [vmem:[%s246 + $0x20] sm:$0xf]
      %v258 = vld [vmem:[%s246 + $0x28] sm:$0xf]
      %v259 = vld [vmem:[%s246 + $0x30] sm:$0xf]
      %v260 = vld [vmem:[%s246 + $0x38] sm:$0xf]
      %v261 = vld [vmem:[%s1] sm:$0xf]
      %s262 = scalar_lea.vmem %s246, 72
      %v263 = vld [vmem:[%s262] sm:$0xf]
      %v264 = vld [vmem:[%s262 + $0x8] sm:$0xf]
      %v265 = vld [vmem:[%s262 + $0x10] sm:$0xf]
      %v266 = vld [vmem:[%s262 + $0x18] sm:$0xf]
      %v267 = vld [vmem:[%s262 + $0x20] sm:$0xf]
      %v268 = vld [vmem:[%s262 + $0x28] sm:$0xf]
      %v269 = vld [vmem:[%s262 + $0x30] sm:$0xf]
      %v270 = vld [vmem:[%s262 + $0x38] sm:$0xf]
      %s271 = scalar_lea.vmem %s1, 4
      %v272 = vld [vmem:[%s271] sm:$0xf]
      %v281 = vunpack.c.l.b16 %v263
      %v282 = vunpack.c.l.b16 %v264
      %v283 = vunpack.c.l.b16 %v265
      %v284 = vunpack.c.l.b16 %v266
      %v285 = vunpack.c.l.b16 %v267
      %v286 = vunpack.c.l.b16 %v268
      %v287 = vunpack.c.l.b16 %v269
      %v288 = vunpack.c.l.b16 %v270
      %v289 = vpack.c.b16 %v282, %v281
      %v290 = vpack.c.b16 %v284, %v283
      %v291 = vpack.c.b16 %v286, %v285
      %v292 = vpack.c.b16 %v288, %v287
      %vm293 = vcmask 64512
      %v295 = vsel %vm293, %v289, 0
      %v298 = vsel %vm293, %v290, 0
      %v301 = vsel %vm293, %v291, 0
      %v304 = vsel %vm293, %v292, 0
      %vm306 = vcmask 1043456
      %v308 = vsel %vm306, %v272, 0
      %310 = vmatprep.subr.bf16.mxu0 0
      %311 = vmatpush1.bf16.msra.mxu0 0
      %312 = vmatprep.subr.bf16.mxu0 0
      %313 = vmatpush1.bf16.msra.mxu0 0
      %314 = vmatprep.subr.bf16.mxu0 0
      %315 = vmatpush1.bf16.msra.mxu0 0
      %316 = vmatprep.subr.bf16.mxu0 0
      %317 = vmatpush1.bf16.msra.mxu0 0
      %318 = vmatprep.subr.bf16.mxu0 0
      %319 = vmatpush1.bf16.msra.mxu0 0
      %320 = vmatprep.subr.bf16.mxu0 0
      %321 = vmatpush1.bf16.msra.mxu0 0
      %322 = vmatprep.subr.bf16.mxu0 0
      %323 = vmatpush1.bf16.msra.mxu0 0
      %324 = vmatprep.subr.bf16.mxu0 0
      %325 = vmatpush1.bf16.msra.mxu0 %v308
      %326 = vmatprep.subr.bf16.mxu0 0
      %327 = vmatpush2.bf16.msra.mxu0 0
      %328 = vmatprep.subr.bf16.mxu0 0
      %329 = vmatpush2.bf16.msra.mxu0 0
      %330 = vmatprep.subr.bf16.mxu0 0
      %331 = vmatpush2.bf16.msra.mxu0 0
      %332 = vmatprep.subr.bf16.mxu0 0
      %333 = vmatpush2.bf16.msra.mxu0 0
      %334 = vmatprep.subr.bf16.mxu0 0
      %335 = vmatpush2.bf16.msra.mxu0 0
      %336 = vmatprep.subr.bf16.mxu0 0
      %337 = vmatpush2.bf16.msra.mxu0 0
      %338 = vmatprep.subr.bf16.mxu0 0
      %339 = vmatpush2.bf16.msra.mxu0 0
      %340 = vmatprep.subr.bf16.mxu0 0
      %341 = vmatpush2.bf16.msra.mxu0 0
      %342 = vmatprep.mubr.bf16.mxu0 0
      %343 = vmatmul.mubr.bf16.gmra.mxu0 %v295
      %v344 = vpop.f32.mrf.mxu0
      %v345 = vadd.f32 0.0, %v344
      %v346 = vpop.f32.mrf.mxu0
      %v347 = vpop.f32.mrf.mxu0
      %v348 = vadd.f32 0.0, %v347
      %v349 = vpop.f32.mrf.mxu0
      %350 = vmatprep.mubr.bf16.mxu0 0
      %351 = vmatmul.mubr.bf16.gmra.mxu0 %v298
      %v352 = vpop.f32.mrf.mxu0
      %v353 = vadd.f32 0.0, %v352
      %v354 = vpop.f32.mrf.mxu0
      %v355 = vpop.f32.mrf.mxu0
      %v356 = vadd.f32 0.0, %v355
      %v357 = vpop.f32.mrf.mxu0
      %358 = vmatprep.mubr.bf16.mxu0 0
      %359 = vmatmul.mubr.bf16.gmra.mxu0 %v301
      %v360 = vpop.f32.mrf.mxu0
      %v361 = vadd.f32 0.0, %v360
      %v362 = vpop.f32.mrf.mxu0
      %v363 = vpop.f32.mrf.mxu0
      %v364 = vadd.f32 0.0, %v363
      %v365 = vpop.f32.mrf.mxu0
      %366 = vmatprep.mubr.bf16.mxu0 0
      %367 = vmatmul.mubr.bf16.gmra.mxu0 %v304
      %v368 = vpop.f32.mrf.mxu0
      %v369 = vadd.f32 0.0, %v368
      %v370 = vpop.f32.mrf.mxu0
      %v371 = vpop.f32.mrf.mxu0
      %v372 = vadd.f32 0.0, %v371
      %v373 = vpop.f32.mrf.mxu0
      %374 = vdwg.mxu0
      %v383 = vunpack.c.l.b16 %v253
      %v384 = vunpack.c.l.b16 %v254
      %v385 = vunpack.c.l.b16 %v255
      %v386 = vunpack.c.l.b16 %v256
      %v387 = vunpack.c.l.b16 %v257
      %v388 = vunpack.c.l.b16 %v258
      %v389 = vunpack.c.l.b16 %v259
      %v390 = vunpack.c.l.b16 %v260
      %v391 = vpack.c.b16 %v384, %v383
      %v392 = vpack.c.b16 %v386, %v385
      %v393 = vpack.c.b16 %v388, %v387
      %v394 = vpack.c.b16 %v390, %v389
      %v396 = vsel %vm293, %v391, 0
      %v399 = vsel %vm293, %v392, 0
      %v402 = vsel %vm293, %v393, 0
      %v405 = vsel %vm293, %v394, 0
      %v408 = vsel %vm306, %v261, 0
      %410 = vmatprep.subr.bf16.mxu0 0
      %411 = vmatpush1.bf16.msra.mxu0 0
      %412 = vmatprep.subr.bf16.mxu0 0
      %413 = vmatpush1.bf16.msra.mxu0 0
      %414 = vmatprep.subr.bf16.mxu0 0
      %415 = vmatpush1.bf16.msra.mxu0 0
      %416 = vmatprep.subr.bf16.mxu0 0
      %417 = vmatpush1.bf16.msra.mxu0 0
      %418 = vmatprep.subr.bf16.mxu0 0
      %419 = vmatpush1.bf16.msra.mxu0 0
      %420 = vmatprep.subr.bf16.mxu0 0
      %421 = vmatpush1.bf16.msra.mxu0 0
      %422 = vmatprep.subr.bf16.mxu0 0
      %423 = vmatpush1.bf16.msra.mxu0 0
      %424 = vmatprep.subr.bf16.mxu0 0
      %425 = vmatpush1.bf16.msra.mxu0 %v408
      %426 = vmatprep.subr.bf16.mxu0 0
      %427 = vmatpush2.bf16.msra.mxu0 0
      %428 = vmatprep.subr.bf16.mxu0 0
      %429 = vmatpush2.bf16.msra.mxu0 0
      %430 = vmatprep.subr.bf16.mxu0 0
      %431 = vmatpush2.bf16.msra.mxu0 0
      %432 = vmatprep.subr.bf16.mxu0 0
      %433 = vmatpush2.bf16.msra.mxu0 0
      %434 = vmatprep.subr.bf16.mxu0 0
      %435 = vmatpush2.bf16.msra.mxu0 0
      %436 = vmatprep.subr.bf16.mxu0 0
      %437 = vmatpush2.bf16.msra.mxu0 0
      %438 = vmatprep.subr.bf16.mxu0 0
      %439 = vmatpush2.bf16.msra.mxu0 0
      %440 = vmatprep.subr.bf16.mxu0 0
      %441 = vmatpush2.bf16.msra.mxu0 0
      %442 = vmatprep.mubr.bf16.mxu0 0
      %443 = vmatmul.mubr.bf16.gmra.mxu0 %v396
      %v444 = vpop.f32.mrf.mxu0
      %v445 = vadd.f32 %v345, %v444
      %v446 = vpop.f32.mrf.mxu0
      %v447 = vpop.f32.mrf.mxu0
      %v448 = vadd.f32 %v348, %v447
      %v449 = vpop.f32.mrf.mxu0
      %450 = vmatprep.mubr.bf16.mxu0 0
      %451 = vmatmul.mubr.bf16.gmra.mxu0 %v399
      %v452 = vpop.f32.mrf.mxu0
      %v453 = vadd.f32 %v353, %v452
      %v454 = vpop.f32.mrf.mxu0
      %v455 = vpop.f32.mrf.mxu0
      %v456 = vadd.f32 %v356, %v455
      %v457 = vpop.f32.mrf.mxu0
      %458 = vmatprep.mubr.bf16.mxu0 0
      %459 = vmatmul.mubr.bf16.gmra.mxu0 %v402
      %v460 = vpop.f32.mrf.mxu0
      %v461 = vadd.f32 %v361, %v460
      %v462 = vpop.f32.mrf.mxu0
      %v463 = vpop.f32.mrf.mxu0
      %v464 = vadd.f32 %v364, %v463
      %v465 = vpop.f32.mrf.mxu0
      %466 = vmatprep.mubr.bf16.mxu0 0
      %467 = vmatmul.mubr.bf16.gmra.mxu0 %v405
      %v468 = vpop.f32.mrf.mxu0
      %v469 = vadd.f32 %v369, %v468
      %v470 = vpop.f32.mrf.mxu0
      %v471 = vpop.f32.mrf.mxu0
      %v472 = vadd.f32 %v372, %v471
      %v473 = vpop.f32.mrf.mxu0
      %474 = vdwg.mxu0
      %v475 = vld [vmem:[%s246] sm:$0xf]
      %v476 = vld [vmem:[%s246 + $0x4] sm:$0x1]
      %v477 = vld [vmem:[%s246 + $0x8] sm:$0xf]
      %v478 = vld [vmem:[%s246 + $0xc] sm:$0x1]
      %v479 = vld [vmem:[%s246 + $0x10] sm:$0xf]
      %v480 = vld [vmem:[%s246 + $0x14] sm:$0x1]
      %v481 = vld [vmem:[%s246 + $0x18] sm:$0xf]
      %v482 = vld [vmem:[%s246 + $0x1c] sm:$0x1]
      %v483 = vld [vmem:[%s246 + $0x20] sm:$0xf]
      %v484 = vld [vmem:[%s246 + $0x24] sm:$0x1]
      %v485 = vld [vmem:[%s246 + $0x28] sm:$0xf]
      %v486 = vld [vmem:[%s246 + $0x2c] sm:$0x1]
      %v487 = vld [vmem:[%s246 + $0x30] sm:$0xf]
      %v488 = vld [vmem:[%s246 + $0x34] sm:$0x1]
      %v489 = vld [vmem:[%s246 + $0x38] sm:$0xf]
      %v490 = vld [vmem:[%s246 + $0x3c] sm:$0x1]
      %vm491 = vsmask.f32 3328
      %vm492 = vsmask.f32 7440
      %vm493 = vmor %vm491, %vm492
      %v495 = vshrl.u32 %v475, 16
      %v497 = vrot.slane %v495, 4
      %v498 = vshll.u32 %v475, 16
      %v500 = vrot.slane %v498, 5
      %v501 = vor.u32 %v497, %v500
      %v502 = vrot.slane %v501, 4
      %v504 = vshll.u32 %v476, 16
      %v506 = vrot.slane %v504, 5
      %v507 = vsel %vm493, %v502, %v506
      %v509 = vshrl.u32 %v477, 16
      %v511 = vrot.slane %v509, 4
      %v512 = vshll.u32 %v477, 16
      %v514 = vrot.slane %v512, 5
      %v515 = vor.u32 %v511, %v514
      %v516 = vrot.slane %v515, 4
      %v518 = vshll.u32 %v478, 16
      %v520 = vrot.slane %v518, 5
      %v521 = vsel %vm493, %v516, %v520
      %v523 = vshrl.u32 %v479, 16
      %v525 = vrot.slane %v523, 4
      %v526 = vshll.u32 %v479, 16
      %v528 = vrot.slane %v526, 5
      %v529 = vor.u32 %v525, %v528
      %v530 = vrot.slane %v529, 4
      %v532 = vshll.u32 %v480, 16
      %v534 = vrot.slane %v532, 5
      %v535 = vsel %vm493, %v530, %v534
      %v537 = vshrl.u32 %v481, 16
      %v539 = vrot.slane %v537, 4
      %v540 = vshll.u32 %v481, 16
      %v542 = vrot.slane %v540, 5
      %v543 = vor.u32 %v539, %v542
      %v544 = vrot.slane %v543, 4
      %v546 = vshll.u32 %v482, 16
      %v548 = vrot.slane %v546, 5
      %v549 = vsel %vm493, %v544, %v548
      %v551 = vshrl.u32 %v483, 16
      %v553 = vrot.slane %v551, 4
      %v554 = vshll.u32 %v483, 16
      %v556 = vrot.slane %v554, 5
      %v557 = vor.u32 %v553, %v556
      %v558 = vrot.slane %v557, 4
      %v560 = vshll.u32 %v484, 16
      %v562 = vrot.slane %v560, 5
      %v563 = vsel %vm493, %v558, %v562
      %v565 = vshrl.u32 %v485, 16
      %v567 = vrot.slane %v565, 4
      %v568 = vshll.u32 %v485, 16
      %v570 = vrot.slane %v568, 5
      %v571 = vor.u32 %v567, %v570
      %v572 = vrot.slane %v571, 4
      %v574 = vshll.u32 %v486, 16
      %v576 = vrot.slane %v574, 5
      %v577 = vsel %vm493, %v572, %v576
      %v579 = vshrl.u32 %v487, 16
      %v581 = vrot.slane %v579, 4
      %v582 = vshll.u32 %v487, 16
      %v584 = vrot.slane %v582, 5
      %v585 = vor.u32 %v581, %v584
      %v586 = vrot.slane %v585, 4
      %v588 = vshll.u32 %v488, 16
      %v590 = vrot.slane %v588, 5
      %v591 = vsel %vm493, %v586, %v590
      %v593 = vshrl.u32 %v489, 16
      %v595 = vrot.slane %v593, 4
      %v596 = vshll.u32 %v489, 16
      %v598 = vrot.slane %v596, 5
      %v599 = vor.u32 %v595, %v598
      %v600 = vrot.slane %v599, 4
      %v602 = vshll.u32 %v490, 16
      %v604 = vrot.slane %v602, 5
      %v605 = vsel %vm493, %v600, %v604
      %s606 = scalar_lea.vmem %s1, 8
      %v607 = vld [vmem:[%s606] sm:$0xf]
      %v608 = vunpack.c.l.b16 %v507
      %v609 = vunpack.c.l.b16 %v521
      %v610 = vunpack.c.l.b16 %v535
      %v611 = vunpack.c.l.b16 %v549
      %v612 = vunpack.c.l.b16 %v563
      %v613 = vunpack.c.l.b16 %v577
      %v614 = vunpack.c.l.b16 %v591
      %v615 = vunpack.c.l.b16 %v605
      %v616 = vpack.c.b16 %v609, %v608
      %v617 = vpack.c.b16 %v611, %v610
      %v618 = vpack.c.b16 %v613, %v612
      %v619 = vpack.c.b16 %v615, %v614
      %v621 = vsel %vm293, %v616, 0
      %v624 = vsel %vm293, %v617, 0
      %v627 = vsel %vm293, %v618, 0
      %v630 = vsel %vm293, %v619, 0
      %v633 = vsel %vm306, %v607, 0
      %635 = vmatprep.subr.bf16.mxu0 0
      %636 = vmatpush1.bf16.msra.mxu0 0
      %637 = vmatprep.subr.bf16.mxu0 0
      %638 = vmatpush1.bf16.msra.mxu0 0
      %639 = vmatprep.subr.bf16.mxu0 0
      %640 = vmatpush1.bf16.msra.mxu0 0
      %641 = vmatprep.subr.bf16.mxu0 0
      %642 = vmatpush1.bf16.msra.mxu0 0
      %643 = vmatprep.subr.bf16.mxu0 0
      %644 = vmatpush1.bf16.msra.mxu0 0
      %645 = vmatprep.subr.bf16.mxu0 0
      %646 = vmatpush1.bf16.msra.mxu0 0
      %647 = vmatprep.subr.bf16.mxu0 0
      %648 = vmatpush1.bf16.msra.mxu0 0
      %649 = vmatprep.subr.bf16.mxu0 0
      %650 = vmatpush1.bf16.msra.mxu0 %v633
      %651 = vmatprep.subr.bf16.mxu0 0
      %652 = vmatpush2.bf16.msra.mxu0 0
      %653 = vmatprep.subr.bf16.mxu0 0
      %654 = vmatpush2.bf16.msra.mxu0 0
      %655 = vmatprep.subr.bf16.mxu0 0
      %656 = vmatpush2.bf16.msra.mxu0 0
      %657 = vmatprep.subr.bf16.mxu0 0
      %658 = vmatpush2.bf16.msra.mxu0 0
      %659 = vmatprep.subr.bf16.mxu0 0
      %660 = vmatpush2.bf16.msra.mxu0 0
      %661 = vmatprep.subr.bf16.mxu0 0
      %662 = vmatpush2.bf16.msra.mxu0 0
      %663 = vmatprep.subr.bf16.mxu0 0
      %664 = vmatpush2.bf16.msra.mxu0 0
      %665 = vmatprep.subr.bf16.mxu0 0
      %666 = vmatpush2.bf16.msra.mxu0 0
      %667 = vmatprep.mubr.bf16.mxu0 0
      %668 = vmatmul.mubr.bf16.gmra.mxu0 %v621
      %v669 = vpop.f32.mrf.mxu0
      %v670 = vadd.f32 0.0, %v669
      %v671 = vpop.f32.mrf.mxu0
      %v672 = vpop.f32.mrf.mxu0
      %v673 = vadd.f32 0.0, %v672
      %v674 = vpop.f32.mrf.mxu0
      %675 = vmatprep.mubr.bf16.mxu0 0
      %676 = vmatmul.mubr.bf16.gmra.mxu0 %v624
      %v677 = vpop.f32.mrf.mxu0
      %v678 = vadd.f32 0.0, %v677
      %v679 = vpop.f32.mrf.mxu0
      %v680 = vpop.f32.mrf.mxu0
      %v681 = vadd.f32 0.0, %v680
      %v682 = vpop.f32.mrf.mxu0
      %683 = vmatprep.mubr.bf16.mxu0 0
      %684 = vmatmul.mubr.bf16.gmra.mxu0 %v627
      %v685 = vpop.f32.mrf.mxu0
      %v686 = vadd.f32 0.0, %v685
      %v687 = vpop.f32.mrf.mxu0
      %v688 = vpop.f32.mrf.mxu0
      %v689 = vadd.f32 0.0, %v688
      %v690 = vpop.f32.mrf.mxu0
      %691 = vmatprep.mubr.bf16.mxu0 0
      %692 = vmatmul.mubr.bf16.gmra.mxu0 %v630
      %v693 = vpop.f32.mrf.mxu0
      %v694 = vadd.f32 0.0, %v693
      %v695 = vpop.f32.mrf.mxu0
      %v696 = vpop.f32.mrf.mxu0
      %v697 = vadd.f32 0.0, %v696
      %v698 = vpop.f32.mrf.mxu0
      %699 = vdwg.mxu0
      %v700 = vadd.f32 %v445, %v670
      %v701 = vadd.f32 %v448, %v673
      %v702 = vadd.f32 %v453, %v678
      %v703 = vadd.f32 %v456, %v681
      %v704 = vadd.f32 %v461, %v686
      %v705 = vadd.f32 %v464, %v689
      %v706 = vadd.f32 %v469, %v694
      %v707 = vadd.f32 %v472, %v697
      %s708 = scalar_lea.vmem %s246, 144
      %v709 = vld [vmem:[%s708] sm:$0xf]
      %v710 = vld [vmem:[%s708 + $0x8] sm:$0xf]
      %v711 = vld [vmem:[%s708 + $0x10] sm:$0xf]
      %v712 = vld [vmem:[%s708 + $0x18] sm:$0xf]
      %v713 = vld [vmem:[%s708 + $0x20] sm:$0xf]
      %v714 = vld [vmem:[%s708 + $0x28] sm:$0xf]
      %v715 = vld [vmem:[%s708 + $0x30] sm:$0xf]
      %v716 = vld [vmem:[%s708 + $0x38] sm:$0xf]
      %s717 = scalar_lea.vmem %s1, 12
      %v718 = vld [vmem:[%s717] sm:$0xf]
      %v727 = vunpack.c.l.b16 %v709
      %v728 = vunpack.c.l.b16 %v710
      %v729 = vunpack.c.l.b16 %v711
      %v730 = vunpack.c.l.b16 %v712
      %v731 = vunpack.c.l.b16 %v713
      %v732 = vunpack.c.l.b16 %v714
      %v733 = vunpack.c.l.b16 %v715
      %v734 = vunpack.c.l.b16 %v716
      %v735 = vpack.c.b16 %v728, %v727
      %v736 = vpack.c.b16 %v730, %v729
      %v737 = vpack.c.b16 %v732, %v731
      %v738 = vpack.c.b16 %v734, %v733
      %v740 = vsel %vm293, %v735, 0
      %v743 = vsel %vm293, %v736, 0
      %v746 = vsel %vm293, %v737, 0
      %v749 = vsel %vm293, %v738, 0
      %v752 = vsel %vm306, %v718, 0
      %754 = vmatprep.subr.bf16.mxu0 0
      %755 = vmatpush1.bf16.msra.mxu0 0
      %756 = vmatprep.subr.bf16.mxu0 0
      %757 = vmatpush1.bf16.msra.mxu0 0
      %758 = vmatprep.subr.bf16.mxu0 0
      %759 = vmatpush1.bf16.msra.mxu0 0
      %760 = vmatprep.subr.bf16.mxu0 0
      %761 = vmatpush1.bf16.msra.mxu0 0
      %762 = vmatprep.subr.bf16.mxu0 0
      %763 = vmatpush1.bf16.msra.mxu0 0
      %764 = vmatprep.subr.bf16.mxu0 0
      %765 = vmatpush1.bf16.msra.mxu0 0
      %766 = vmatprep.subr.bf16.mxu0 0
      %767 = vmatpush1.bf16.msra.mxu0 0
      %768 = vmatprep.subr.bf16.mxu0 0
      %769 = vmatpush1.bf16.msra.mxu0 %v752
      %770 = vmatprep.subr.bf16.mxu0 0
      %771 = vmatpush2.bf16.msra.mxu0 0
      %772 = vmatprep.subr.bf16.mxu0 0
      %773 = vmatpush2.bf16.msra.mxu0 0
      %774 = vmatprep.subr.bf16.mxu0 0
      %775 = vmatpush2.bf16.msra.mxu0 0
      %776 = vmatprep.subr.bf16.mxu0 0
      %777 = vmatpush2.bf16.msra.mxu0 0
      %778 = vmatprep.subr.bf16.mxu0 0
      %779 = vmatpush2.bf16.msra.mxu0 0
      %780 = vmatprep.subr.bf16.mxu0 0
      %781 = vmatpush2.bf16.msra.mxu0 0
      %782 = vmatprep.subr.bf16.mxu0 0
      %783 = vmatpush2.bf16.msra.mxu0 0
      %784 = vmatprep.subr.bf16.mxu0 0
      %785 = vmatpush2.bf16.msra.mxu0 0
      %786 = vmatprep.mubr.bf16.mxu0 0
      %787 = vmatmul.mubr.bf16.gmra.mxu0 %v740
      %v788 = vpop.f32.mrf.mxu0
      %v789 = vadd.f32 0.0, %v788
      %v790 = vpop.f32.mrf.mxu0
      %v791 = vpop.f32.mrf.mxu0
      %v792 = vadd.f32 0.0, %v791
      %v793 = vpop.f32.mrf.mxu0
      %794 = vmatprep.mubr.bf16.mxu0 0
      %795 = vmatmul.mubr.bf16.gmra.mxu0 %v743
      %v796 = vpop.f32.mrf.mxu0
      %v797 = vadd.f32 0.0, %v796
      %v798 = vpop.f32.mrf.mxu0
      %v799 = vpop.f32.mrf.mxu0
      %v800 = vadd.f32 0.0, %v799
      %v801 = vpop.f32.mrf.mxu0
      %802 = vmatprep.mubr.bf16.mxu0 0
      %803 = vmatmul.mubr.bf16.gmra.mxu0 %v746
      %v804 = vpop.f32.mrf.mxu0
      %v805 = vadd.f32 0.0, %v804
      %v806 = vpop.f32.mrf.mxu0
      %v807 = vpop.f32.mrf.mxu0
      %v808 = vadd.f32 0.0, %v807
      %v809 = vpop.f32.mrf.mxu0
      %810 = vmatprep.mubr.bf16.mxu0 0
      %811 = vmatmul.mubr.bf16.gmra.mxu0 %v749
      %v812 = vpop.f32.mrf.mxu0
      %v813 = vadd.f32 0.0, %v812
      %v814 = vpop.f32.mrf.mxu0
      %v815 = vpop.f32.mrf.mxu0
      %v816 = vadd.f32 0.0, %v815
      %v817 = vpop.f32.mrf.mxu0
      %818 = vdwg.mxu0
      %v819 = vadd.f32 %v700, %v789
      %v820 = vadd.f32 %v701, %v792
      %v821 = vadd.f32 %v702, %v797
      %v822 = vadd.f32 %v703, %v800
      %v823 = vadd.f32 %v704, %v805
      %v824 = vadd.f32 %v705, %v808
      %v825 = vadd.f32 %v706, %v813
      %v826 = vadd.f32 %v707, %v816
      %s827 = scalar_lea.vmem %s246, 216
      %v828 = vld [vmem:[%s827] sm:$0xf]
      %v829 = vld [vmem:[%s827 + $0x8] sm:$0xf]
      %v830 = vld [vmem:[%s827 + $0x10] sm:$0xf]
      %v831 = vld [vmem:[%s827 + $0x18] sm:$0xf]
      %v832 = vld [vmem:[%s827 + $0x20] sm:$0xf]
      %v833 = vld [vmem:[%s827 + $0x28] sm:$0xf]
      %v834 = vld [vmem:[%s827 + $0x30] sm:$0xf]
      %v835 = vld [vmem:[%s827 + $0x38] sm:$0xf]
      %s836 = scalar_lea.vmem %s1, 16
      %v837 = vld [vmem:[%s836] sm:$0xf]
      %v846 = vunpack.c.l.b16 %v828
      %v847 = vunpack.c.l.b16 %v829
      %v848 = vunpack.c.l.b16 %v830
      %v849 = vunpack.c.l.b16 %v831
      %v850 = vunpack.c.l.b16 %v832
      %v851 = vunpack.c.l.b16 %v833
      %v852 = vunpack.c.l.b16 %v834
      %v853 = vunpack.c.l.b16 %v835
      %v854 = vpack.c.b16 %v847, %v846
      %v855 = vpack.c.b16 %v849, %v848
      %v856 = vpack.c.b16 %v851, %v850
      %v857 = vpack.c.b16 %v853, %v852
      %v859 = vsel %vm293, %v854, 0
      %v862 = vsel %vm293, %v855, 0
      %v865 = vsel %vm293, %v856, 0
      %v868 = vsel %vm293, %v857, 0
      %v871 = vsel %vm306, %v837, 0
      %873 = vmatprep.subr.bf16.mxu0 0
      %874 = vmatpush1.bf16.msra.mxu0 0
      %875 = vmatprep.subr.bf16.mxu0 0
      %876 = vmatpush1.bf16.msra.mxu0 0
      %877 = vmatprep.subr.bf16.mxu0 0
      %878 = vmatpush1.bf16.msra.mxu0 0
      %879 = vmatprep.subr.bf16.mxu0 0
      %880 = vmatpush1.bf16.msra.mxu0 0
      %881 = vmatprep.subr.bf16.mxu0 0
      %882 = vmatpush1.bf16.msra.mxu0 0
      %883 = vmatprep.subr.bf16.mxu0 0
      %884 = vmatpush1.bf16.msra.mxu0 0
      %885 = vmatprep.subr.bf16.mxu0 0
      %886 = vmatpush1.bf16.msra.mxu0 0
      %887 = vmatprep.subr.bf16.mxu0 0
      %888 = vmatpush1.bf16.msra.mxu0 %v871
      %889 = vmatprep.subr.bf16.mxu0 0
      %890 = vmatpush2.bf16.msra.mxu0 0
      %891 = vmatprep.subr.bf16.mxu0 0
      %892 = vmatpush2.bf16.msra.mxu0 0
      %893 = vmatprep.subr.bf16.mxu0 0
      %894 = vmatpush2.bf16.msra.mxu0 0
      %895 = vmatprep.subr.bf16.mxu0 0
      %896 = vmatpush2.bf16.msra.mxu0 0
      %897 = vmatprep.subr.bf16.mxu0 0
      %898 = vmatpush2.bf16.msra.mxu0 0
      %899 = vmatprep.subr.bf16.mxu0 0
      %900 = vmatpush2.bf16.msra.mxu0 0
      %901 = vmatprep.subr.bf16.mxu0 0
      %902 = vmatpush2.bf16.msra.mxu0 0
      %903 = vmatprep.subr.bf16.mxu0 0
      %904 = vmatpush2.bf16.msra.mxu0 0
      %905 = vmatprep.mubr.bf16.mxu0 0
      %906 = vmatmul.mubr.bf16.gmra.mxu0 %v859
      %v907 = vpop.f32.mrf.mxu0
      %v908 = vadd.f32 0.0, %v907
      %v909 = vpop.f32.mrf.mxu0
      %v910 = vpop.f32.mrf.mxu0
      %v911 = vadd.f32 0.0, %v910
      %v912 = vpop.f32.mrf.mxu0
      %913 = vmatprep.mubr.bf16.mxu0 0
      %914 = vmatmul.mubr.bf16.gmra.mxu0 %v862
      %v915 = vpop.f32.mrf.mxu0
      %v916 = vadd.f32 0.0, %v915
      %v917 = vpop.f32.mrf.mxu0
      %v918 = vpop.f32.mrf.mxu0
      %v919 = vadd.f32 0.0, %v918
      %v920 = vpop.f32.mrf.mxu0
      %921 = vmatprep.mubr.bf16.mxu0 0
      %922 = vmatmul.mubr.bf16.gmra.mxu0 %v865
      %v923 = vpop.f32.mrf.mxu0
      %v924 = vadd.f32 0.0, %v923
      %v925 = vpop.f32.mrf.mxu0
      %v926 = vpop.f32.mrf.mxu0
      %v927 = vadd.f32 0.0, %v926
      %v928 = vpop.f32.mrf.mxu0
      %929 = vmatprep.mubr.bf16.mxu0 0
      %930 = vmatmul.mubr.bf16.gmra.mxu0 %v868
      %v931 = vpop.f32.mrf.mxu0
      %v932 = vadd.f32 0.0, %v931
      %v933 = vpop.f32.mrf.mxu0
      %v934 = vpop.f32.mrf.mxu0
      %v935 = vadd.f32 0.0, %v934
      %v936 = vpop.f32.mrf.mxu0
      %937 = vdwg.mxu0
      %v938 = vadd.f32 %v819, %v908
      %v939 = vadd.f32 %v820, %v911
      %v940 = vadd.f32 %v821, %v916
      %v941 = vadd.f32 %v822, %v919
      %v942 = vadd.f32 %v823, %v924
      %v943 = vadd.f32 %v824, %v927
      %v944 = vadd.f32 %v825, %v932
      %v945 = vadd.f32 %v826, %v935
      %v946 = vld [vmem:[%s708] sm:$0xf]
      %v947 = vld [vmem:[%s708 + $0x4] sm:$0x1]
      %v948 = vld [vmem:[%s708 + $0x8] sm:$0xf]
      %v949 = vld [vmem:[%s708 + $0xc] sm:$0x1]
      %v950 = vld [vmem:[%s708 + $0x10] sm:$0xf]
      %v951 = vld [vmem:[%s708 + $0x14] sm:$0x1]
      %v952 = vld [vmem:[%s708 + $0x18] sm:$0xf]
      %v953 = vld [vmem:[%s708 + $0x1c] sm:$0x1]
      %v954 = vld [vmem:[%s708 + $0x20] sm:$0xf]
      %v955 = vld [vmem:[%s708 + $0x24] sm:$0x1]
      %v956 = vld [vmem:[%s708 + $0x28] sm:$0xf]
      %v957 = vld [vmem:[%s708 + $0x2c] sm:$0x1]
      %v958 = vld [vmem:[%s708 + $0x30] sm:$0xf]
      %v959 = vld [vmem:[%s708 + $0x34] sm:$0x1]
      %v960 = vld [vmem:[%s708 + $0x38] sm:$0xf]
      %v961 = vld [vmem:[%s708 + $0x3c] sm:$0x1]
      %v963 = vshrl.u32 %v946, 16
      %v965 = vrot.slane %v963, 4
      %v966 = vshll.u32 %v946, 16
      %v968 = vrot.slane %v966, 5
      %v969 = vor.u32 %v965, %v968
      %v970 = vrot.slane %v969, 4
      %v972 = vshll.u32 %v947, 16
      %v974 = vrot.slane %v972, 5
      %v975 = vsel %vm493, %v970, %v974
      %v977 = vshrl.u32 %v948, 16
      %v979 = vrot.slane %v977, 4
      %v980 = vshll.u32 %v948, 16
      %v982 = vrot.slane %v980, 5
      %v983 = vor.u32 %v979, %v982
      %v984 = vrot.slane %v983, 4
      %v986 = vshll.u32 %v949, 16
      %v988 = vrot.slane %v986, 5
      %v989 = vsel %vm493, %v984, %v988
      %v991 = vshrl.u32 %v950, 16
      %v993 = vrot.slane %v991, 4
      %v994 = vshll.u32 %v950, 16
      %v996 = vrot.slane %v994, 5
      %v997 = vor.u32 %v993, %v996
      %v998 = vrot.slane %v997, 4
      %v1000 = vshll.u32 %v951, 16
      %v1002 = vrot.slane %v1000, 5
      %v1003 = vsel %vm493, %v998, %v1002
      %v1005 = vshrl.u32 %v952, 16
      %v1007 = vrot.slane %v1005, 4
      %v1008 = vshll.u32 %v952, 16
      %v1010 = vrot.slane %v1008, 5
      %v1011 = vor.u32 %v1007, %v1010
      %v1012 = vrot.slane %v1011, 4
      %v1014 = vshll.u32 %v953, 16
      %v1016 = vrot.slane %v1014, 5
      %v1017 = vsel %vm493, %v1012, %v1016
      %v1019 = vshrl.u32 %v954, 16
      %v1021 = vrot.slane %v1019, 4
      %v1022 = vshll.u32 %v954, 16
      %v1024 = vrot.slane %v1022, 5
      %v1025 = vor.u32 %v1021, %v1024
      %v1026 = vrot.slane %v1025, 4
      %v1028 = vshll.u32 %v955, 16
      %v1030 = vrot.slane %v1028, 5
      %v1031 = vsel %vm493, %v1026, %v1030
      %v1033 = vshrl.u32 %v956, 16
      %v1035 = vrot.slane %v1033, 4
      %v1036 = vshll.u32 %v956, 16
      %v1038 = vrot.slane %v1036, 5
      %v1039 = vor.u32 %v1035, %v1038
      %v1040 = vrot.slane %v1039, 4
      %v1042 = vshll.u32 %v957, 16
      %v1044 = vrot.slane %v1042, 5
      %v1045 = vsel %vm493, %v1040, %v1044
      %v1047 = vshrl.u32 %v958, 16
      %v1049 = vrot.slane %v1047, 4
      %v1050 = vshll.u32 %v958, 16
      %v1052 = vrot.slane %v1050, 5
      %v1053 = vor.u32 %v1049, %v1052
      %v1054 = vrot.slane %v1053, 4
      %v1056 = vshll.u32 %v959, 16
      %v1058 = vrot.slane %v1056, 5
      %v1059 = vsel %vm493, %v1054, %v1058
      %v1061 = vshrl.u32 %v960, 16
      %v1063 = vrot.slane %v1061, 4
      %v1064 = vshll.u32 %v960, 16
      %v1066 = vrot.slane %v1064, 5
      %v1067 = vor.u32 %v1063, %v1066
      %v1068 = vrot.slane %v1067, 4
      %v1070 = vshll.u32 %v961, 16
      %v1072 = vrot.slane %v1070, 5
      %v1073 = vsel %vm493, %v1068, %v1072
      %s1074 = scalar_lea.vmem %s1, 20
      %v1075 = vld [vmem:[%s1074] sm:$0xf]
      %v1076 = vunpack.c.l.b16 %v975
      %v1077 = vunpack.c.l.b16 %v989
      %v1078 = vunpack.c.l.b16 %v1003
      %v1079 = vunpack.c.l.b16 %v1017
      %v1080 = vunpack.c.l.b16 %v1031
      %v1081 = vunpack.c.l.b16 %v1045
      %v1082 = vunpack.c.l.b16 %v1059
      %v1083 = vunpack.c.l.b16 %v1073
      %v1084 = vpack.c.b16 %v1077, %v1076
      %v1085 = vpack.c.b16 %v1079, %v1078
      %v1086 = vpack.c.b16 %v1081, %v1080
      %v1087 = vpack.c.b16 %v1083, %v1082
      %v1089 = vsel %vm293, %v1084, 0
      %v1092 = vsel %vm293, %v1085, 0
      %v1095 = vsel %vm293, %v1086, 0
      %v1098 = vsel %vm293, %v1087, 0
      %v1101 = vsel %vm306, %v1075, 0
      %1103 = vmatprep.subr.bf16.mxu0 0
      %1104 = vmatpush1.bf16.msra.mxu0 0
      %1105 = vmatprep.subr.bf16.mxu0 0
      %1106 = vmatpush1.bf16.msra.mxu0 0
      %1107 = vmatprep.subr.bf16.mxu0 0
      %1108 = vmatpush1.bf16.msra.mxu0 0
      %1109 = vmatprep.subr.bf16.mxu0 0
      %1110 = vmatpush1.bf16.msra.mxu0 0
      %1111 = vmatprep.subr.bf16.mxu0 0
      %1112 = vmatpush1.bf16.msra.mxu0 0
      %1113 = vmatprep.subr.bf16.mxu0 0
      %1114 = vmatpush1.bf16.msra.mxu0 0
      %1115 = vmatprep.subr.bf16.mxu0 0
      %1116 = vmatpush1.bf16.msra.mxu0 0
      %1117 = vmatprep.subr.bf16.mxu0 0
      %1118 = vmatpush1.bf16.msra.mxu0 %v1101
      %1119 = vmatprep.subr.bf16.mxu0 0
      %1120 = vmatpush2.bf16.msra.mxu0 0
      %1121 = vmatprep.subr.bf16.mxu0 0
      %1122 = vmatpush2.bf16.msra.mxu0 0
      %1123 = vmatprep.subr.bf16.mxu0 0
      %1124 = vmatpush2.bf16.msra.mxu0 0
      %1125 = vmatprep.subr.bf16.mxu0 0
      %1126 = vmatpush2.bf16.msra.mxu0 0
      %1127 = vmatprep.subr.bf16.mxu0 0
      %1128 = vmatpush2.bf16.msra.mxu0 0
      %1129 = vmatprep.subr.bf16.mxu0 0
      %1130 = vmatpush2.bf16.msra.mxu0 0
      %1131 = vmatprep.subr.bf16.mxu0 0
      %1132 = vmatpush2.bf16.msra.mxu0 0
      %1133 = vmatprep.subr.bf16.mxu0 0
      %1134 = vmatpush2.bf16.msra.mxu0 0
      %1135 = vmatprep.mubr.bf16.mxu0 0
      %1136 = vmatmul.mubr.bf16.gmra.mxu0 %v1089
      %v1137 = vpop.f32.mrf.mxu0
      %v1138 = vadd.f32 0.0, %v1137
      %v1139 = vpop.f32.mrf.mxu0
      %v1140 = vpop.f32.mrf.mxu0
      %v1141 = vadd.f32 0.0, %v1140
      %v1142 = vpop.f32.mrf.mxu0
      %1143 = vmatprep.mubr.bf16.mxu0 0
      %1144 = vmatmul.mubr.bf16.gmra.mxu0 %v1092
      %v1145 = vpop.f32.mrf.mxu0
      %v1146 = vadd.f32 0.0, %v1145
      %v1147 = vpop.f32.mrf.mxu0
      %v1148 = vpop.f32.mrf.mxu0
      %v1149 = vadd.f32 0.0, %v1148
      %v1150 = vpop.f32.mrf.mxu0
      %1151 = vmatprep.mubr.bf16.mxu0 0
      %1152 = vmatmul.mubr.bf16.gmra.mxu0 %v1095
      %v1153 = vpop.f32.mrf.mxu0
      %v1154 = vadd.f32 0.0, %v1153
      %v1155 = vpop.f32.mrf.mxu0
      %v1156 = vpop.f32.mrf.mxu0
      %v1157 = vadd.f32 0.0, %v1156
      %v1158 = vpop.f32.mrf.mxu0
      %1159 = vmatprep.mubr.bf16.mxu0 0
      %1160 = vmatmul.mubr.bf16.gmra.mxu0 %v1098
      %v1161 = vpop.f32.mrf.mxu0
      %v1162 = vadd.f32 0.0, %v1161
      %v1163 = vpop.f32.mrf.mxu0
      %v1164 = vpop.f32.mrf.mxu0
      %v1165 = vadd.f32 0.0, %v1164
      %v1166 = vpop.f32.mrf.mxu0
      %1167 = vdwg.mxu0
      %v1168 = vadd.f32 %v938, %v1138
      %v1169 = vadd.f32 %v939, %v1141
      %v1170 = vadd.f32 %v940, %v1146
      %v1171 = vadd.f32 %v941, %v1149
      %v1172 = vadd.f32 %v942, %v1154
      %v1173 = vadd.f32 %v943, %v1157
      %v1174 = vadd.f32 %v944, %v1162
      %v1175 = vadd.f32 %v945, %v1165
      %s1176 = scalar_lea.vmem %s246, 8
      %v1177 = vld [vmem:[%s1176] sm:$0xf]
      %v1178 = vld [vmem:[%s1176 + $0x8] sm:$0xf]
      %v1179 = vld [vmem:[%s1176 + $0x10] sm:$0xf]
      %v1180 = vld [vmem:[%s1176 + $0x18] sm:$0xf]
      %v1181 = vld [vmem:[%s1176 + $0x20] sm:$0xf]
      %v1182 = vld [vmem:[%s1176 + $0x28] sm:$0xf]
      %v1183 = vld [vmem:[%s1176 + $0x30] sm:$0xf]
      %v1184 = vld [vmem:[%s1176 + $0x38] sm:$0xf]
      %s1185 = scalar_lea.vmem %s1, 24
      %v1186 = vld [vmem:[%s1185] sm:$0xf]
      %v1195 = vunpack.c.l.b16 %v1177
      %v1196 = vunpack.c.l.b16 %v1178
      %v1197 = vunpack.c.l.b16 %v1179
      %v1198 = vunpack.c.l.b16 %v1180
      %v1199 = vunpack.c.l.b16 %v1181
      %v1200 = vunpack.c.l.b16 %v1182
      %v1201 = vunpack.c.l.b16 %v1183
      %v1202 = vunpack.c.l.b16 %v1184
      %v1203 = vpack.c.b16 %v1196, %v1195
      %v1204 = vpack.c.b16 %v1198, %v1197
      %v1205 = vpack.c.b16 %v1200, %v1199
      %v1206 = vpack.c.b16 %v1202, %v1201
      %v1208 = vsel %vm293, %v1203, 0
      %v1211 = vsel %vm293, %v1204, 0
      %v1214 = vsel %vm293, %v1205, 0
      %v1217 = vsel %vm293, %v1206, 0
      %v1220 = vsel %vm306, %v1186, 0
      %1222 = vmatprep.subr.bf16.mxu0 0
      %1223 = vmatpush1.bf16.msra.mxu0 0
      %1224 = vmatprep.subr.bf16.mxu0 0
      %1225 = vmatpush1.bf16.msra.mxu0 0
      %1226 = vmatprep.subr.bf16.mxu0 0
      %1227 = vmatpush1.bf16.msra.mxu0 0
      %1228 = vmatprep.subr.bf16.mxu0 0
      %1229 = vmatpush1.bf16.msra.mxu0 0
      %1230 = vmatprep.subr.bf16.mxu0 0
      %1231 = vmatpush1.bf16.msra.mxu0 0
      %1232 = vmatprep.subr.bf16.mxu0 0
      %1233 = vmatpush1.bf16.msra.mxu0 0
      %1234 = vmatprep.subr.bf16.mxu0 0
      %1235 = vmatpush1.bf16.msra.mxu0 0
      %1236 = vmatprep.subr.bf16.mxu0 0
      %1237 = vmatpush1.bf16.msra.mxu0 %v1220
      %1238 = vmatprep.subr.bf16.mxu0 0
      %1239 = vmatpush2.bf16.msra.mxu0 0
      %1240 = vmatprep.subr.bf16.mxu0 0
      %1241 = vmatpush2.bf16.msra.mxu0 0
      %1242 = vmatprep.subr.bf16.mxu0 0
      %1243 = vmatpush2.bf16.msra.mxu0 0
      %1244 = vmatprep.subr.bf16.mxu0 0
      %1245 = vmatpush2.bf16.msra.mxu0 0
      %1246 = vmatprep.subr.bf16.mxu0 0
      %1247 = vmatpush2.bf16.msra.mxu0 0
      %1248 = vmatprep.subr.bf16.mxu0 0
      %1249 = vmatpush2.bf16.msra.mxu0 0
      %1250 = vmatprep.subr.bf16.mxu0 0
      %1251 = vmatpush2.bf16.msra.mxu0 0
      %1252 = vmatprep.subr.bf16.mxu0 0
      %1253 = vmatpush2.bf16.msra.mxu0 0
      %1254 = vmatprep.mubr.bf16.mxu0 0
      %1255 = vmatmul.mubr.bf16.gmra.mxu0 %v1208
      %v1256 = vpop.f32.mrf.mxu0
      %v1257 = vadd.f32 0.0, %v1256
      %v1258 = vpop.f32.mrf.mxu0
      %v1259 = vpop.f32.mrf.mxu0
      %v1260 = vadd.f32 0.0, %v1259
      %v1261 = vpop.f32.mrf.mxu0
      %1262 = vmatprep.mubr.bf16.mxu0 0
      %1263 = vmatmul.mubr.bf16.gmra.mxu0 %v1211
      %v1264 = vpop.f32.mrf.mxu0
      %v1265 = vadd.f32 0.0, %v1264
      %v1266 = vpop.f32.mrf.mxu0
      %v1267 = vpop.f32.mrf.mxu0
      %v1268 = vadd.f32 0.0, %v1267
      %v1269 = vpop.f32.mrf.mxu0
      %1270 = vmatprep.mubr.bf16.mxu0 0
      %1271 = vmatmul.mubr.bf16.gmra.mxu0 %v1214
      %v1272 = vpop.f32.mrf.mxu0
      %v1273 = vadd.f32 0.0, %v1272
      %v1274 = vpop.f32.mrf.mxu0
      %v1275 = vpop.f32.mrf.mxu0
      %v1276 = vadd.f32 0.0, %v1275
      %v1277 = vpop.f32.mrf.mxu0
      %1278 = vmatprep.mubr.bf16.mxu0 0
      %1279 = vmatmul.mubr.bf16.gmra.mxu0 %v1217
      %v1280 = vpop.f32.mrf.mxu0
      %v1281 = vadd.f32 0.0, %v1280
      %v1282 = vpop.f32.mrf.mxu0
      %v1283 = vpop.f32.mrf.mxu0
      %v1284 = vadd.f32 0.0, %v1283
      %v1285 = vpop.f32.mrf.mxu0
      %1286 = vdwg.mxu0
      %v1287 = vadd.f32 %v1168, %v1257
      %v1288 = vadd.f32 %v1169, %v1260
      %v1289 = vadd.f32 %v1170, %v1265
      %v1290 = vadd.f32 %v1171, %v1268
      %v1291 = vadd.f32 %v1172, %v1273
      %v1292 = vadd.f32 %v1173, %v1276
      %v1293 = vadd.f32 %v1174, %v1281
      %v1294 = vadd.f32 %v1175, %v1284
      %s1295 = scalar_lea.vmem %s246, 80
      %v1296 = vld [vmem:[%s1295] sm:$0xf]
      %v1297 = vld [vmem:[%s1295 + $0x8] sm:$0xf]
      %v1298 = vld [vmem:[%s1295 + $0x10] sm:$0xf]
      %v1299 = vld [vmem:[%s1295 + $0x18] sm:$0xf]
      %v1300 = vld [vmem:[%s1295 + $0x20] sm:$0xf]
      %v1301 = vld [vmem:[%s1295 + $0x28] sm:$0xf]
      %v1302 = vld [vmem:[%s1295 + $0x30] sm:$0xf]
      %v1303 = vld [vmem:[%s1295 + $0x38] sm:$0xf]
      %s1304 = scalar_lea.vmem %s1, 28
      %v1305 = vld [vmem:[%s1304] sm:$0xf]
      %v1314 = vunpack.c.l.b16 %v1296
      %v1315 = vunpack.c.l.b16 %v1297
      %v1316 = vunpack.c.l.b16 %v1298
      %v1317 = vunpack.c.l.b16 %v1299
      %v1318 = vunpack.c.l.b16 %v1300
      %v1319 = vunpack.c.l.b16 %v1301
      %v1320 = vunpack.c.l.b16 %v1302
      %v1321 = vunpack.c.l.b16 %v1303
      %v1322 = vpack.c.b16 %v1315, %v1314
      %v1323 = vpack.c.b16 %v1317, %v1316
      %v1324 = vpack.c.b16 %v1319, %v1318
      %v1325 = vpack.c.b16 %v1321, %v1320
      %v1327 = vsel %vm293, %v1322, 0
      %v1330 = vsel %vm293, %v1323, 0
      %v1333 = vsel %vm293, %v1324, 0
      %v1336 = vsel %vm293, %v1325, 0
      %v1339 = vsel %vm306, %v1305, 0
      %1341 = vmatprep.subr.bf16.mxu0 0
      %1342 = vmatpush1.bf16.msra.mxu0 0
      %1343 = vmatprep.subr.bf16.mxu0 0
      %1344 = vmatpush1.bf16.msra.mxu0 0
      %1345 = vmatprep.subr.bf16.mxu0 0
      %1346 = vmatpush1.bf16.msra.mxu0 0
      %1347 = vmatprep.subr.bf16.mxu0 0
      %1348 = vmatpush1.bf16.msra.mxu0 0
      %1349 = vmatprep.subr.bf16.mxu0 0
      %1350 = vmatpush1.bf16.msra.mxu0 0
      %1351 = vmatprep.subr.bf16.mxu0 0
      %1352 = vmatpush1.bf16.msra.mxu0 0
      %1353 = vmatprep.subr.bf16.mxu0 0
      %1354 = vmatpush1.bf16.msra.mxu0 0
      %1355 = vmatprep.subr.bf16.mxu0 0
      %1356 = vmatpush1.bf16.msra.mxu0 %v1339
      %1357 = vmatprep.subr.bf16.mxu0 0
      %1358 = vmatpush2.bf16.msra.mxu0 0
      %1359 = vmatprep.subr.bf16.mxu0 0
      %1360 = vmatpush2.bf16.msra.mxu0 0
      %1361 = vmatprep.subr.bf16.mxu0 0
      %1362 = vmatpush2.bf16.msra.mxu0 0
      %1363 = vmatprep.subr.bf16.mxu0 0
      %1364 = vmatpush2.bf16.msra.mxu0 0
      %1365 = vmatprep.subr.bf16.mxu0 0
      %1366 = vmatpush2.bf16.msra.mxu0 0
      %1367 = vmatprep.subr.bf16.mxu0 0
      %1368 = vmatpush2.bf16.msra.mxu0 0
      %1369 = vmatprep.subr.bf16.mxu0 0
      %1370 = vmatpush2.bf16.msra.mxu0 0
      %1371 = vmatprep.subr.bf16.mxu0 0
      %1372 = vmatpush2.bf16.msra.mxu0 0
      %1373 = vmatprep.mubr.bf16.mxu0 0
      %1374 = vmatmul.mubr.bf16.gmra.mxu0 %v1327
      %v1375 = vpop.f32.mrf.mxu0
      %v1376 = vadd.f32 0.0, %v1375
      %v1377 = vpop.f32.mrf.mxu0
      %v1378 = vpop.f32.mrf.mxu0
      %v1379 = vadd.f32 0.0, %v1378
      %v1380 = vpop.f32.mrf.mxu0
      %1381 = vmatprep.mubr.bf16.mxu0 0
      %1382 = vmatmul.mubr.bf16.gmra.mxu0 %v1330
      %v1383 = vpop.f32.mrf.mxu0
      %v1384 = vadd.f32 0.0, %v1383
      %v1385 = vpop.f32.mrf.mxu0
      %v1386 = vpop.f32.mrf.mxu0
      %v1387 = vadd.f32 0.0, %v1386
      %v1388 = vpop.f32.mrf.mxu0
      %1389 = vmatprep.mubr.bf16.mxu0 0
      %1390 = vmatmul.mubr.bf16.gmra.mxu0 %v1333
      %v1391 = vpop.f32.mrf.mxu0
      %v1392 = vadd.f32 0.0, %v1391
      %v1393 = vpop.f32.mrf.mxu0
      %v1394 = vpop.f32.mrf.mxu0
      %v1395 = vadd.f32 0.0, %v1394
      %v1396 = vpop.f32.mrf.mxu0
      %1397 = vmatprep.mubr.bf16.mxu0 0
      %1398 = vmatmul.mubr.bf16.gmra.mxu0 %v1336
      %v1399 = vpop.f32.mrf.mxu0
      %v1400 = vadd.f32 0.0, %v1399
      %v1401 = vpop.f32.mrf.mxu0
      %v1402 = vpop.f32.mrf.mxu0
      %v1403 = vadd.f32 0.0, %v1402
      %v1404 = vpop.f32.mrf.mxu0
      %1405 = vdwg.mxu0
      %v1406 = vadd.f32 %v1287, %v1376
      %v1407 = vadd.f32 %v1288, %v1379
      %v1408 = vadd.f32 %v1289, %v1384
      %v1409 = vadd.f32 %v1290, %v1387
      %v1410 = vadd.f32 %v1291, %v1392
      %v1411 = vadd.f32 %v1292, %v1395
      %v1412 = vadd.f32 %v1293, %v1400
      %v1413 = vadd.f32 %v1294, %v1403
      %v1414 = vld [vmem:[%s1176] sm:$0xf]
      %v1415 = vld [vmem:[%s1176 + $0x4] sm:$0x1]
      %v1416 = vld [vmem:[%s1176 + $0x8] sm:$0xf]
      %v1417 = vld [vmem:[%s1176 + $0xc] sm:$0x1]
      %v1418 = vld [vmem:[%s1176 + $0x10] sm:$0xf]
      %v1419 = vld [vmem:[%s1176 + $0x14] sm:$0x1]
      %v1420 = vld [vmem:[%s1176 + $0x18] sm:$0xf]
      %v1421 = vld [vmem:[%s1176 + $0x1c] sm:$0x1]
      %v1422 = vld [vmem:[%s1176 + $0x20] sm:$0xf]
      %v1423 = vld [vmem:[%s1176 + $0x24] sm:$0x1]
      %v1424 = vld [vmem:[%s1176 + $0x28] sm:$0xf]
      %v1425 = vld [vmem:[%s1176 + $0x2c] sm:$0x1]
      %v1426 = vld [vmem:[%s1176 + $0x30] sm:$0xf]
      %v1427 = vld [vmem:[%s1176 + $0x34] sm:$0x1]
      %v1428 = vld [vmem:[%s1176 + $0x38] sm:$0xf]
      %v1429 = vld [vmem:[%s1176 + $0x3c] sm:$0x1]
      %v1431 = vshrl.u32 %v1414, 16
      %v1433 = vrot.slane %v1431, 4
      %v1434 = vshll.u32 %v1414, 16
      %v1436 = vrot.slane %v1434, 5
      %v1437 = vor.u32 %v1433, %v1436
      %v1438 = vrot.slane %v1437, 4
      %v1440 = vshll.u32 %v1415, 16
      %v1442 = vrot.slane %v1440, 5
      %v1443 = vsel %vm493, %v1438, %v1442
      %v1445 = vshrl.u32 %v1416, 16
      %v1447 = vrot.slane %v1445, 4
      %v1448 = vshll.u32 %v1416, 16
      %v1450 = vrot.slane %v1448, 5
      %v1451 = vor.u32 %v1447, %v1450
      %v1452 = vrot.slane %v1451, 4
      %v1454 = vshll.u32 %v1417, 16
      %v1456 = vrot.slane %v1454, 5
      %v1457 = vsel %vm493, %v1452, %v1456
      %v1459 = vshrl.u32 %v1418, 16
      %v1461 = vrot.slane %v1459, 4
      %v1462 = vshll.u32 %v1418, 16
      %v1464 = vrot.slane %v1462, 5
      %v1465 = vor.u32 %v1461, %v1464
      %v1466 = vrot.slane %v1465, 4
      %v1468 = vshll.u32 %v1419, 16
      %v1470 = vrot.slane %v1468, 5
      %v1471 = vsel %vm493, %v1466, %v1470
      %v1473 = vshrl.u32 %v1420, 16
      %v1475 = vrot.slane %v1473, 4
      %v1476 = vshll.u32 %v1420, 16
      %v1478 = vrot.slane %v1476, 5
      %v1479 = vor.u32 %v1475, %v1478
      %v1480 = vrot.slane %v1479, 4
      %v1482 = vshll.u32 %v1421, 16
      %v1484 = vrot.slane %v1482, 5
      %v1485 = vsel %vm493, %v1480, %v1484
      %v1487 = vshrl.u32 %v1422, 16
      %v1489 = vrot.slane %v1487, 4
      %v1490 = vshll.u32 %v1422, 16
      %v1492 = vrot.slane %v1490, 5
      %v1493 = vor.u32 %v1489, %v1492
      %v1494 = vrot.slane %v1493, 4
      %v1496 = vshll.u32 %v1423, 16
      %v1498 = vrot.slane %v1496, 5
      %v1499 = vsel %vm493, %v1494, %v1498
      %v1501 = vshrl.u32 %v1424, 16
      %v1503 = vrot.slane %v1501, 4
      %v1504 = vshll.u32 %v1424, 16
      %v1506 = vrot.slane %v1504, 5
      %v1507 = vor.u32 %v1503, %v1506
      %v1508 = vrot.slane %v1507, 4
      %v1510 = vshll.u32 %v1425, 16
      %v1512 = vrot.slane %v1510, 5
      %v1513 = vsel %vm493, %v1508, %v1512
      %v1515 = vshrl.u32 %v1426, 16
      %v1517 = vrot.slane %v1515, 4
      %v1518 = vshll.u32 %v1426, 16
      %v1520 = vrot.slane %v1518, 5
      %v1521 = vor.u32 %v1517, %v1520
      %v1522 = vrot.slane %v1521, 4
      %v1524 = vshll.u32 %v1427, 16
      %v1526 = vrot.slane %v1524, 5
      %v1527 = vsel %vm493, %v1522, %v1526
      %v1529 = vshrl.u32 %v1428, 16
      %v1531 = vrot.slane %v1529, 4
      %v1532 = vshll.u32 %v1428, 16
      %v1534 = vrot.slane %v1532, 5
      %v1535 = vor.u32 %v1531, %v1534
      %v1536 = vrot.slane %v1535, 4
      %v1538 = vshll.u32 %v1429, 16
      %v1540 = vrot.slane %v1538, 5
      %v1541 = vsel %vm493, %v1536, %v1540
      %s1542 = scalar_lea.vmem %s1, 32
      %v1543 = vld [vmem:[%s1542] sm:$0xf]
      %v1544 = vunpack.c.l.b16 %v1443
      %v1545 = vunpack.c.l.b16 %v1457
      %v1546 = vunpack.c.l.b16 %v1471
      %v1547 = vunpack.c.l.b16 %v1485
      %v1548 = vunpack.c.l.b16 %v1499
      %v1549 = vunpack.c.l.b16 %v1513
      %v1550 = vunpack.c.l.b16 %v1527
      %v1551 = vunpack.c.l.b16 %v1541
      %v1552 = vpack.c.b16 %v1545, %v1544
      %v1553 = vpack.c.b16 %v1547, %v1546
      %v1554 = vpack.c.b16 %v1549, %v1548
      %v1555 = vpack.c.b16 %v1551, %v1550
      %v1557 = vsel %vm293, %v1552, 0
      %v1560 = vsel %vm293, %v1553, 0
      %v1563 = vsel %vm293, %v1554, 0
      %v1566 = vsel %vm293, %v1555, 0
      %v1569 = vsel %vm306, %v1543, 0
      %1571 = vmatprep.subr.bf16.mxu0 0
      %1572 = vmatpush1.bf16.msra.mxu0 0
      %1573 = vmatprep.subr.bf16.mxu0 0
      %1574 = vmatpush1.bf16.msra.mxu0 0
      %1575 = vmatprep.subr.bf16.mxu0 0
      %1576 = vmatpush1.bf16.msra.mxu0 0
      %1577 = vmatprep.subr.bf16.mxu0 0
      %1578 = vmatpush1.bf16.msra.mxu0 0
      %1579 = vmatprep.subr.bf16.mxu0 0
      %1580 = vmatpush1.bf16.msra.mxu0 0
      %1581 = vmatprep.subr.bf16.mxu0 0
      %1582 = vmatpush1.bf16.msra.mxu0 0
      %1583 = vmatprep.subr.bf16.mxu0 0
      %1584 = vmatpush1.bf16.msra.mxu0 0
      %1585 = vmatprep.subr.bf16.mxu0 0
      %1586 = vmatpush1.bf16.msra.mxu0 %v1569
      %1587 = vmatprep.subr.bf16.mxu0 0
      %1588 = vmatpush2.bf16.msra.mxu0 0
      %1589 = vmatprep.subr.bf16.mxu0 0
      %1590 = vmatpush2.bf16.msra.mxu0 0
      %1591 = vmatprep.subr.bf16.mxu0 0
      %1592 = vmatpush2.bf16.msra.mxu0 0
      %1593 = vmatprep.subr.bf16.mxu0 0
      %1594 = vmatpush2.bf16.msra.mxu0 0
      %1595 = vmatprep.subr.bf16.mxu0 0
      %1596 = vmatpush2.bf16.msra.mxu0 0
      %1597 = vmatprep.subr.bf16.mxu0 0
      %1598 = vmatpush2.bf16.msra.mxu0 0
      %1599 = vmatprep.subr.bf16.mxu0 0
      %1600 = vmatpush2.bf16.msra.mxu0 0
      %1601 = vmatprep.subr.bf16.mxu0 0
      %1602 = vmatpush2.bf16.msra.mxu0 0
      %1603 = vmatprep.mubr.bf16.mxu0 0
      %1604 = vmatmul.mubr.bf16.gmra.mxu0 %v1557
      %v1605 = vpop.f32.mrf.mxu0
      %v1606 = vadd.f32 0.0, %v1605
      %v1607 = vpop.f32.mrf.mxu0
      %v1608 = vpop.f32.mrf.mxu0
      %v1609 = vadd.f32 0.0, %v1608
      %v1610 = vpop.f32.mrf.mxu0
      %1611 = vmatprep.mubr.bf16.mxu0 0
      %1612 = vmatmul.mubr.bf16.gmra.mxu0 %v1560
      %v1613 = vpop.f32.mrf.mxu0
      %v1614 = vadd.f32 0.0, %v1613
      %v1615 = vpop.f32.mrf.mxu0
      %v1616 = vpop.f32.mrf.mxu0
      %v1617 = vadd.f32 0.0, %v1616
      %v1618 = vpop.f32.mrf.mxu0
      %1619 = vmatprep.mubr.bf16.mxu0 0
      %1620 = vmatmul.mubr.bf16.gmra.mxu0 %v1563
      %v1621 = vpop.f32.mrf.mxu0
      %v1622 = vadd.f32 0.0, %v1621
      %v1623 = vpop.f32.mrf.mxu0
      %v1624 = vpop.f32.mrf.mxu0
      %v1625 = vadd.f32 0.0, %v1624
      %v1626 = vpop.f32.mrf.mxu0
      %1627 = vmatprep.mubr.bf16.mxu0 0
      %1628 = vmatmul.mubr.bf16.gmra.mxu0 %v1566
      %v1629 = vpop.f32.mrf.mxu0
      %v1630 = vadd.f32 0.0, %v1629
      %v1631 = vpop.f32.mrf.mxu0
      %v1632 = vpop.f32.mrf.mxu0
      %v1633 = vadd.f32 0.0, %v1632
      %v1634 = vpop.f32.mrf.mxu0
      %1635 = vdwg.mxu0
      %v1636 = vadd.f32 %v1406, %v1606
      %v1637 = vadd.f32 %v1407, %v1609
      %v1638 = vadd.f32 %v1408, %v1614
      %v1639 = vadd.f32 %v1409, %v1617
      %v1640 = vadd.f32 %v1410, %v1622
      %v1641 = vadd.f32 %v1411, %v1625
      %v1642 = vadd.f32 %v1412, %v1630
      %v1643 = vadd.f32 %v1413, %v1633
      %v1644 = vld [vmem:[%s2] sm:$0x1]
      %v1646 = vlaneseq
      %v1647 = vshrl.u32 %v1646, 7
      %v1648 = vsub.s32 0, %v1647
      %v1649 = vrot.slane %v1644, %v1648
      %v1651 = vadd.f32 %v1636, %v1649
      %v1652 = vadd.f32 %v1637, %v1649
      %v1653 = vadd.f32 %v1638, %v1649
      %v1654 = vadd.f32 %v1639, %v1649
      %v1655 = vadd.f32 %v1640, %v1649
      %v1656 = vadd.f32 %v1641, %v1649
      %v1657 = vadd.f32 %v1642, %v1649
      %v1658 = vadd.f32 %v1643, %v1649
      %v1659 = vmax.f32 %v1651, 0.0
      %v1660 = vmax.f32 %v1652, 0.0
      %v1661 = vmax.f32 %v1653, 0.0
      %v1662 = vmax.f32 %v1654, 0.0
      %v1663 = vmax.f32 %v1655, 0.0
      %v1664 = vmax.f32 %v1656, 0.0
      %v1665 = vmax.f32 %v1657, 0.0
      %v1666 = vmax.f32 %v1658, 0.0
      %1667 = vst [vmem:[#allocation2] sm:$0xff] 0.0
      %1668 = vst [vmem:[#allocation2 + $0x8] sm:$0xff] 0.0
      %1669 = vst [vmem:[#allocation2 + $0x10] sm:$0xff] 0.0
      %1670 = vst [vmem:[#allocation2 + $0x18] sm:$0xff] 0.0
      %1671 = vst [vmem:[#allocation2 + $0x20] sm:$0xff] 0.0
      %1672 = vst [vmem:[#allocation2 + $0x28] sm:$0xff] 0.0
      %1673 = vst [vmem:[#allocation2 + $0x30] sm:$0xff] 0.0
      %1674 = vst [vmem:[#allocation2 + $0x38] sm:$0xff] 0.0
      %1675 = vst [vmem:[#allocation2 + $0x40] sm:$0xff] 0.0
      %1676 = vst [vmem:[#allocation2 + $0x48] sm:$0xff] 0.0
      %1677 = vst [vmem:[#allocation2 + $0x50] sm:$0xff] 0.0
      %1678 = vst [vmem:[#allocation2 + $0x58] sm:$0xff] 0.0
      %1679 = vst [vmem:[#allocation2 + $0x60] sm:$0xff] 0.0
      %1680 = vst [vmem:[#allocation2 + $0x68] sm:$0xff] 0.0
      %1681 = vst [vmem:[#allocation2 + $0x70] sm:$0xff] 0.0
      %1682 = vst [vmem:[#allocation2 + $0x78] sm:$0xff] 0.0
      %1683 = vst [vmem:[#allocation2 + $0x80] sm:$0xff] 0.0
      %1684 = vst [vmem:[#allocation2 + $0x88] sm:$0xff] 0.0
      %1685 = vst [vmem:[#allocation2 + $0x90] sm:$0xff] 0.0
      %1686 = vst [vmem:[#allocation2 + $0x98] sm:$0xff] 0.0
      %1687 = vst [vmem:[#allocation2 + $0xa0] sm:$0xff] 0.0
      %1688 = vst [vmem:[#allocation2 + $0xa8] sm:$0xff] 0.0
      %1689 = vst [vmem:[#allocation2 + $0xb0] sm:$0xff] 0.0
      %1690 = vst [vmem:[#allocation2 + $0xb8] sm:$0xff] 0.0
      %1691 = vst [vmem:[#allocation2 + $0xc0] sm:$0xff] 0.0
      %1692 = vst [vmem:[#allocation2 + $0xc8] sm:$0xff] 0.0
      %1693 = vst [vmem:[#allocation2 + $0xd0] sm:$0xff] 0.0
      %1694 = vst [vmem:[#allocation2 + $0xd8] sm:$0xff] 0.0
      %1695 = vst [vmem:[#allocation2 + $0xe0] sm:$0xff] 0.0
      %1696 = vst [vmem:[#allocation2 + $0xe8] sm:$0xff] 0.0
      %s1697 = scalar_lea.vmem [#allocation2], 24
      %1698 = vst [vmem:[%s1697 + $0x8] sm:$0xff] %v1659
      %1699 = vst [vmem:[%s1697 + $0x20] sm:$0xff] %v1660
      %1700 = vst [vmem:[%s1697 + $0x38] sm:$0xff] %v1661
      %1701 = vst [vmem:[%s1697 + $0x50] sm:$0xff] %v1662
      %1702 = vst [vmem:[%s1697 + $0x68] sm:$0xff] %v1663
      %1703 = vst [vmem:[%s1697 + $0x80] sm:$0xff] %v1664
      %1704 = vst [vmem:[%s1697 + $0x98] sm:$0xff] %v1665
      %1705 = vst [vmem:[%s1697 + $0xb0] sm:$0xff] %v1666
      %v1706 = vld [vmem:[#allocation2 + $0x7] sm:$0xff]
      %v1707 = vld [vmem:[#allocation2 + $0x1f] sm:$0xff]
      %v1708 = vld [vmem:[#allocation2 + $0x37] sm:$0xff]
      %v1709 = vld [vmem:[#allocation2 + $0x4f] sm:$0xff]
      %v1710 = vld [vmem:[#allocation2 + $0x67] sm:$0xff]
      %v1711 = vld [vmem:[#allocation2 + $0x7f] sm:$0xff]
      %v1712 = vld [vmem:[#allocation2 + $0x97] sm:$0xff]
      %v1713 = vld [vmem:[#allocation2 + $0xaf] sm:$0xff]
      %v1714 = vpack.c.bf16 %v1707, %v1706
      %v1715 = vpack.c.bf16 %v1709, %v1708
      %v1716 = vpack.c.bf16 %v1711, %v1710
      %v1717 = vpack.c.bf16 %v1713, %v1712
      %v1722 = vunpack.c.l.b16 %v1714
      %v1723 = vunpack.c.h.b16 %v1714
      %v1724 = vunpack.c.l.b16 %v1715
      %v1725 = vunpack.c.h.b16 %v1715
      %v1726 = vunpack.c.l.b16 %v1716
      %v1727 = vunpack.c.h.b16 %v1716
      %v1728 = vunpack.c.l.b16 %v1717
      %v1729 = vunpack.c.h.b16 %v1717
      %v1730 = vpack.c.b16 %v1722, %v1722
      %v1731 = vpack.c.b16 %v1723, %v1723
      %v1732 = vpack.c.b16 %v1724, %v1724
      %v1733 = vpack.c.b16 %v1725, %v1725
      %v1734 = vpack.c.b16 %v1726, %v1726
      %v1735 = vpack.c.b16 %v1727, %v1727
      %v1736 = vpack.c.b16 %v1728, %v1728
      %v1737 = vpack.c.b16 %v1729, %v1729
      %1746 = vst [vmem:[#allocation3] sm:$0xf] %v1730
      %1747 = vst [vmem:[#allocation3 + $0x24] sm:$0xf] %v1731
      %1748 = vst [vmem:[#allocation3 + $0x48] sm:$0xf] %v1732
      %1749 = vst [vmem:[#allocation3 + $0x6c] sm:$0xf] %v1733
      %1750 = vst [vmem:[#allocation3 + $0x90] sm:$0xf] %v1734
      %1751 = vst [vmem:[#allocation3 + $0xb4] sm:$0xf] %v1735
      %1752 = vst [vmem:[#allocation3 + $0xd8] sm:$0xf] %v1736
      %1753 = vst [vmem:[#allocation3 + $0xfc] sm:$0xf] %v1737
      %v1754 = vld [vmem:[#allocation2 + $0x8] sm:$0xff]
      %v1755 = vld [vmem:[#allocation2 + $0x20] sm:$0xff]
      %v1756 = vld [vmem:[#allocation2 + $0x38] sm:$0xff]
      %v1757 = vld [vmem:[#allocation2 + $0x50] sm:$0xff]
      %v1758 = vld [vmem:[#allocation2 + $0x68] sm:$0xff]
      %v1759 = vld [vmem:[#allocation2 + $0x80] sm:$0xff]
      %v1760 = vld [vmem:[#allocation2 + $0x98] sm:$0xff]
      %v1761 = vld [vmem:[#allocation2 + $0xb0] sm:$0xff]
      %v1762 = vpack.c.bf16 %v1755, %v1754
      %v1763 = vpack.c.bf16 %v1757, %v1756
      %v1764 = vpack.c.bf16 %v1759, %v1758
      %v1765 = vpack.c.bf16 %v1761, %v1760
      %v1770 = vunpack.c.l.b16 %v1762
      %v1771 = vunpack.c.h.b16 %v1762
      %v1772 = vunpack.c.l.b16 %v1763
      %v1773 = vunpack.c.h.b16 %v1763
      %v1774 = vunpack.c.l.b16 %v1764
      %v1775 = vunpack.c.h.b16 %v1764
      %v1776 = vunpack.c.l.b16 %v1765
      %v1777 = vunpack.c.h.b16 %v1765
      %v1778 = vpack.c.b16 %v1770, %v1770
      %v1779 = vpack.c.b16 %v1771, %v1771
      %v1780 = vpack.c.b16 %v1772, %v1772
      %v1781 = vpack.c.b16 %v1773, %v1773
      %v1782 = vpack.c.b16 %v1774, %v1774
      %v1783 = vpack.c.b16 %v1775, %v1775
      %v1784 = vpack.c.b16 %v1776, %v1776
      %v1785 = vpack.c.b16 %v1777, %v1777
      %1794 = vst [vmem:[#allocation3 + $0x4] sm:$0xf] %v1778
      %1795 = vst [vmem:[#allocation3 + $0x28] sm:$0xf] %v1779
      %1796 = vst [vmem:[#allocation3 + $0x4c] sm:$0xf] %v1780
      %1797 = vst [vmem:[#allocation3 + $0x70] sm:$0xf] %v1781
      %1798 = vst [vmem:[#allocation3 + $0x94] sm:$0xf] %v1782
      %1799 = vst [vmem:[#allocation3 + $0xb8] sm:$0xf] %v1783
      %1800 = vst [vmem:[#allocation3 + $0xdc] sm:$0xf] %v1784
      %1801 = vst [vmem:[#allocation3 + $0x100] sm:$0xf] %v1785
      %v1802 = vld [vmem:[#allocation2 + $0x9] sm:$0xff]
      %v1803 = vld [vmem:[#allocation2 + $0x21] sm:$0xff]
      %v1804 = vld [vmem:[#allocation2 + $0x39] sm:$0xff]
      %v1805 = vld [vmem:[#allocation2 + $0x51] sm:$0xff]
      %v1806 = vld [vmem:[#allocation2 + $0x69] sm:$0xff]
      %v1807 = vld [vmem:[#allocation2 + $0x81] sm:$0xff]
      %v1808 = vld [vmem:[#allocation2 + $0x99] sm:$0xff]
      %v1809 = vld [vmem:[#allocation2 + $0xb1] sm:$0xff]
      %v1810 = vpack.c.bf16 %v1803, %v1802
      %v1811 = vpack.c.bf16 %v1805, %v1804
      %v1812 = vpack.c.bf16 %v1807, %v1806
      %v1813 = vpack.c.bf16 %v1809, %v1808
      %v1818 = vunpack.c.l.b16 %v1810
      %v1819 = vunpack.c.h.b16 %v1810
      %v1820 = vunpack.c.l.b16 %v1811
      %v1821 = vunpack.c.h.b16 %v1811
      %v1822 = vunpack.c.l.b16 %v1812
      %v1823 = vunpack.c.h.b16 %v1812
      %v1824 = vunpack.c.l.b16 %v1813
      %v1825 = vunpack.c.h.b16 %v1813
      %v1826 = vpack.c.b16 %v1818, %v1818
      %v1827 = vpack.c.b16 %v1819, %v1819
      %v1828 = vpack.c.b16 %v1820, %v1820
      %v1829 = vpack.c.b16 %v1821, %v1821
      %v1830 = vpack.c.b16 %v1822, %v1822
      %v1831 = vpack.c.b16 %v1823, %v1823
      %v1832 = vpack.c.b16 %v1824, %v1824
      %v1833 = vpack.c.b16 %v1825, %v1825
      %1842 = vst [vmem:[#allocation3 + $0x8] sm:$0xf] %v1826
      %1843 = vst [vmem:[#allocation3 + $0x2c] sm:$0xf] %v1827
      %1844 = vst [vmem:[#allocation3 + $0x50] sm:$0xf] %v1828
      %1845 = vst [vmem:[#allocation3 + $0x74] sm:$0xf] %v1829
      %1846 = vst [vmem:[#allocation3 + $0x98] sm:$0xf] %v1830
      %1847 = vst [vmem:[#allocation3 + $0xbc] sm:$0xf] %v1831
      %1848 = vst [vmem:[#allocation3 + $0xe0] sm:$0xf] %v1832
      %1849 = vst [vmem:[#allocation3 + $0x104] sm:$0xf] %v1833
      %v1850 = vld [vmem:[%s1697 + $0x7] sm:$0xff]
      %v1851 = vld [vmem:[%s1697 + $0x1f] sm:$0xff]
      %v1852 = vld [vmem:[%s1697 + $0x37] sm:$0xff]
      %v1853 = vld [vmem:[%s1697 + $0x4f] sm:$0xff]
      %v1854 = vld [vmem:[%s1697 + $0x67] sm:$0xff]
      %v1855 = vld [vmem:[%s1697 + $0x7f] sm:$0xff]
      %v1856 = vld [vmem:[%s1697 + $0x97] sm:$0xff]
      %v1857 = vld [vmem:[%s1697 + $0xaf] sm:$0xff]
      %v1858 = vpack.c.bf16 %v1851, %v1850
      %v1859 = vpack.c.bf16 %v1853, %v1852
      %v1860 = vpack.c.bf16 %v1855, %v1854
      %v1861 = vpack.c.bf16 %v1857, %v1856
      %v1866 = vunpack.c.l.b16 %v1858
      %v1867 = vunpack.c.h.b16 %v1858
      %v1868 = vunpack.c.l.b16 %v1859
      %v1869 = vunpack.c.h.b16 %v1859
      %v1870 = vunpack.c.l.b16 %v1860
      %v1871 = vunpack.c.h.b16 %v1860
      %v1872 = vunpack.c.l.b16 %v1861
      %v1873 = vunpack.c.h.b16 %v1861
      %v1874 = vpack.c.b16 %v1866, %v1866
      %v1875 = vpack.c.b16 %v1867, %v1867
      %v1876 = vpack.c.b16 %v1868, %v1868
      %v1877 = vpack.c.b16 %v1869, %v1869
      %v1878 = vpack.c.b16 %v1870, %v1870
      %v1879 = vpack.c.b16 %v1871, %v1871
      %v1880 = vpack.c.b16 %v1872, %v1872
      %v1881 = vpack.c.b16 %v1873, %v1873
      %1890 = vst [vmem:[#allocation3 + $0xc] sm:$0xf] %v1874
      %1891 = vst [vmem:[#allocation3 + $0x30] sm:$0xf] %v1875
      %1892 = vst [vmem:[#allocation3 + $0x54] sm:$0xf] %v1876
      %1893 = vst [vmem:[#allocation3 + $0x78] sm:$0xf] %v1877
      %1894 = vst [vmem:[#allocation3 + $0x9c] sm:$0xf] %v1878
      %1895 = vst [vmem:[#allocation3 + $0xc0] sm:$0xf] %v1879
      %1896 = vst [vmem:[#allocation3 + $0xe4] sm:$0xf] %v1880
      %1897 = vst [vmem:[#allocation3 + $0x108] sm:$0xf] %v1881
      %v1898 = vld [vmem:[%s1697 + $0x8] sm:$0xff]
      %v1899 = vld [vmem:[%s1697 + $0x20] sm:$0xff]
      %v1900 = vld [vmem:[%s1697 + $0x38] sm:$0xff]
      %v1901 = vld [vmem:[%s1697 + $0x50] sm:$0xff]
      %v1902 = vld [vmem:[%s1697 + $0x68] sm:$0xff]
      %v1903 = vld [vmem:[%s1697 + $0x80] sm:$0xff]
      %v1904 = vld [vmem:[%s1697 + $0x98] sm:$0xff]
      %v1905 = vld [vmem:[%s1697 + $0xb0] sm:$0xff]
      %v1906 = vpack.c.bf16 %v1899, %v1898
      %v1907 = vpack.c.bf16 %v1901, %v1900
      %v1908 = vpack.c.bf16 %v1903, %v1902
      %v1909 = vpack.c.bf16 %v1905, %v1904
      %v1914 = vunpack.c.l.b16 %v1906
      %v1915 = vunpack.c.h.b16 %v1906
      %v1916 = vunpack.c.l.b16 %v1907
      %v1917 = vunpack.c.h.b16 %v1907
      %v1918 = vunpack.c.l.b16 %v1908
      %v1919 = vunpack.c.h.b16 %v1908
      %v1920 = vunpack.c.l.b16 %v1909
      %v1921 = vunpack.c.h.b16 %v1909
      %v1922 = vpack.c.b16 %v1914, %v1914
      %v1923 = vpack.c.b16 %v1915, %v1915
      %v1924 = vpack.c.b16 %v1916, %v1916
      %v1925 = vpack.c.b16 %v1917, %v1917
      %v1926 = vpack.c.b16 %v1918, %v1918
      %v1927 = vpack.c.b16 %v1919, %v1919
      %v1928 = vpack.c.b16 %v1920, %v1920
      %v1929 = vpack.c.b16 %v1921, %v1921
      %1938 = vst [vmem:[#allocation3 + $0x10] sm:$0xf] %v1922
      %1939 = vst [vmem:[#allocation3 + $0x34] sm:$0xf] %v1923
      %1940 = vst [vmem:[#allocation3 + $0x58] sm:$0xf] %v1924
      %1941 = vst [vmem:[#allocation3 + $0x7c] sm:$0xf] %v1925
      %1942 = vst [vmem:[#allocation3 + $0xa0] sm:$0xf] %v1926
      %1943 = vst [vmem:[#allocation3 + $0xc4] sm:$0xf] %v1927
      %1944 = vst [vmem:[#allocation3 + $0xe8] sm:$0xf] %v1928
      %1945 = vst [vmem:[#allocation3 + $0x10c] sm:$0xf] %v1929
      %v1946 = vld [vmem:[%s1697 + $0x9] sm:$0xff]
      %v1947 = vld [vmem:[%s1697 + $0x21] sm:$0xff]
      %v1948 = vld [vmem:[%s1697 + $0x39] sm:$0xff]
      %v1949 = vld [vmem:[%s1697 + $0x51] sm:$0xff]
      %v1950 = vld [vmem:[%s1697 + $0x69] sm:$0xff]
      %v1951 = vld [vmem:[%s1697 + $0x81] sm:$0xff]
      %v1952 = vld [vmem:[%s1697 + $0x99] sm:$0xff]
      %v1953 = vld [vmem:[%s1697 + $0xb1] sm:$0xff]
      %v1954 = vpack.c.bf16 %v1947, %v1946
      %v1955 = vpack.c.bf16 %v1949, %v1948
      %v1956 = vpack.c.bf16 %v1951, %v1950
      %v1957 = vpack.c.bf16 %v1953, %v1952
      %v1962 = vunpack.c.l.b16 %v1954
      %v1963 = vunpack.c.h.b16 %v1954
      %v1964 = vunpack.c.l.b16 %v1955
      %v1965 = vunpack.c.h.b16 %v1955
      %v1966 = vunpack.c.l.b16 %v1956
      %v1967 = vunpack.c.h.b16 %v1956
      %v1968 = vunpack.c.l.b16 %v1957
      %v1969 = vunpack.c.h.b16 %v1957
      %v1970 = vpack.c.b16 %v1962, %v1962
      %v1971 = vpack.c.b16 %v1963, %v1963
      %v1972 = vpack.c.b16 %v1964, %v1964
      %v1973 = vpack.c.b16 %v1965, %v1965
      %v1974 = vpack.c.b16 %v1966, %v1966
      %v1975 = vpack.c.b16 %v1967, %v1967
      %v1976 = vpack.c.b16 %v1968, %v1968
      %v1977 = vpack.c.b16 %v1969, %v1969
      %1986 = vst [vmem:[#allocation3 + $0x14] sm:$0xf] %v1970
      %1987 = vst [vmem:[#allocation3 + $0x38] sm:$0xf] %v1971
      %1988 = vst [vmem:[#allocation3 + $0x5c] sm:$0xf] %v1972
      %1989 = vst [vmem:[#allocation3 + $0x80] sm:$0xf] %v1973
      %1990 = vst [vmem:[#allocation3 + $0xa4] sm:$0xf] %v1974
      %1991 = vst [vmem:[#allocation3 + $0xc8] sm:$0xf] %v1975
      %1992 = vst [vmem:[#allocation3 + $0xec] sm:$0xf] %v1976
      %1993 = vst [vmem:[#allocation3 + $0x110] sm:$0xf] %v1977
      %s1994 = scalar_lea.vmem [#allocation2], 48
      %v1995 = vld [vmem:[%s1994 + $0x7] sm:$0xff]
      %v1996 = vld [vmem:[%s1994 + $0x1f] sm:$0xff]
      %v1997 = vld [vmem:[%s1994 + $0x37] sm:$0xff]
      %v1998 = vld [vmem:[%s1994 + $0x4f] sm:$0xff]
      %v1999 = vld [vmem:[%s1994 + $0x67] sm:$0xff]
      %v2000 = vld [vmem:[%s1994 + $0x7f] sm:$0xff]
      %v2001 = vld [vmem:[%s1994 + $0x97] sm:$0xff]
      %v2002 = vld [vmem:[%s1994 + $0xaf] sm:$0xff]
      %v2003 = vpack.c.bf16 %v1996, %v1995
      %v2004 = vpack.c.bf16 %v1998, %v1997
      %v2005 = vpack.c.bf16 %v2000, %v1999
      %v2006 = vpack.c.bf16 %v2002, %v2001
      %v2011 = vunpack.c.l.b16 %v2003
      %v2012 = vunpack.c.h.b16 %v2003
      %v2013 = vunpack.c.l.b16 %v2004
      %v2014 = vunpack.c.h.b16 %v2004
      %v2015 = vunpack.c.l.b16 %v2005
      %v2016 = vunpack.c.h.b16 %v2005
      %v2017 = vunpack.c.l.b16 %v2006
      %v2018 = vunpack.c.h.b16 %v2006
      %v2019 = vpack.c.b16 %v2011, %v2011
      %v2020 = vpack.c.b16 %v2012, %v2012
      %v2021 = vpack.c.b16 %v2013, %v2013
      %v2022 = vpack.c.b16 %v2014, %v2014
      %v2023 = vpack.c.b16 %v2015, %v2015
      %v2024 = vpack.c.b16 %v2016, %v2016
      %v2025 = vpack.c.b16 %v2017, %v2017
      %v2026 = vpack.c.b16 %v2018, %v2018
      %2035 = vst [vmem:[#allocation3 + $0x18] sm:$0xf] %v2019
      %2036 = vst [vmem:[#allocation3 + $0x3c] sm:$0xf] %v2020
      %2037 = vst [vmem:[#allocation3 + $0x60] sm:$0xf] %v2021
      %2038 = vst [vmem:[#allocation3 + $0x84] sm:$0xf] %v2022
      %2039 = vst [vmem:[#allocation3 + $0xa8] sm:$0xf] %v2023
      %2040 = vst [vmem:[#allocation3 + $0xcc] sm:$0xf] %v2024
      %2041 = vst [vmem:[#allocation3 + $0xf0] sm:$0xf] %v2025
      %2042 = vst [vmem:[#allocation3 + $0x114] sm:$0xf] %v2026
      %v2043 = vld [vmem:[%s1994 + $0x8] sm:$0xff]
      %v2044 = vld [vmem:[%s1994 + $0x20] sm:$0xff]
      %v2045 = vld [vmem:[%s1994 + $0x38] sm:$0xff]
      %v2046 = vld [vmem:[%s1994 + $0x50] sm:$0xff]
      %v2047 = vld [vmem:[%s1994 + $0x68] sm:$0xff]
      %v2048 = vld [vmem:[%s1994 + $0x80] sm:$0xff]
      %v2049 = vld [vmem:[%s1994 + $0x98] sm:$0xff]
      %v2050 = vld [vmem:[%s1994 + $0xb0] sm:$0xff]
      %v2051 = vpack.c.bf16 %v2044, %v2043
      %v2052 = vpack.c.bf16 %v2046, %v2045
      %v2053 = vpack.c.bf16 %v2048, %v2047
      %v2054 = vpack.c.bf16 %v2050, %v2049
      %v2059 = vunpack.c.l.b16 %v2051
      %v2060 = vunpack.c.h.b16 %v2051
      %v2061 = vunpack.c.l.b16 %v2052
      %v2062 = vunpack.c.h.b16 %v2052
      %v2063 = vunpack.c.l.b16 %v2053
      %v2064 = vunpack.c.h.b16 %v2053
      %v2065 = vunpack.c.l.b16 %v2054
      %v2066 = vunpack.c.h.b16 %v2054
      %v2067 = vpack.c.b16 %v2059, %v2059
      %v2068 = vpack.c.b16 %v2060, %v2060
      %v2069 = vpack.c.b16 %v2061, %v2061
      %v2070 = vpack.c.b16 %v2062, %v2062
      %v2071 = vpack.c.b16 %v2063, %v2063
      %v2072 = vpack.c.b16 %v2064, %v2064
      %v2073 = vpack.c.b16 %v2065, %v2065
      %v2074 = vpack.c.b16 %v2066, %v2066
      %2083 = vst [vmem:[#allocation3 + $0x1c] sm:$0xf] %v2067
      %2084 = vst [vmem:[#allocation3 + $0x40] sm:$0xf] %v2068
      %2085 = vst [vmem:[#allocation3 + $0x64] sm:$0xf] %v2069
      %2086 = vst [vmem:[#allocation3 + $0x88] sm:$0xf] %v2070
      %2087 = vst [vmem:[#allocation3 + $0xac] sm:$0xf] %v2071
      %2088 = vst [vmem:[#allocation3 + $0xd0] sm:$0xf] %v2072
      %2089 = vst [vmem:[#allocation3 + $0xf4] sm:$0xf] %v2073
      %2090 = vst [vmem:[#allocation3 + $0x118] sm:$0xf] %v2074
      %v2091 = vld [vmem:[%s1994 + $0x9] sm:$0xff]
      %v2092 = vld [vmem:[%s1994 + $0x21] sm:$0xff]
      %v2093 = vld [vmem:[%s1994 + $0x39] sm:$0xff]
      %v2094 = vld [vmem:[%s1994 + $0x51] sm:$0xff]
      %v2095 = vld [vmem:[%s1994 + $0x69] sm:$0xff]
      %v2096 = vld [vmem:[%s1994 + $0x81] sm:$0xff]
      %v2097 = vld [vmem:[%s1994 + $0x99] sm:$0xff]
      %v2098 = vld [vmem:[%s1994 + $0xb1] sm:$0xff]
      %v2099 = vpack.c.bf16 %v2092, %v2091
      %v2100 = vpack.c.bf16 %v2094, %v2093
      %v2101 = vpack.c.bf16 %v2096, %v2095
      %v2102 = vpack.c.bf16 %v2098, %v2097
      %v2107 = vunpack.c.l.b16 %v2099
      %v2108 = vunpack.c.h.b16 %v2099
      %v2109 = vunpack.c.l.b16 %v2100
      %v2110 = vunpack.c.h.b16 %v2100
      %v2111 = vunpack.c.l.b16 %v2101
      %v2112 = vunpack.c.h.b16 %v2101
      %v2113 = vunpack.c.l.b16 %v2102
      %v2114 = vunpack.c.h.b16 %v2102
      %v2115 = vpack.c.b16 %v2107, %v2107
      %v2116 = vpack.c.b16 %v2108, %v2108
      %v2117 = vpack.c.b16 %v2109, %v2109
      %v2118 = vpack.c.b16 %v2110, %v2110
      %v2119 = vpack.c.b16 %v2111, %v2111
      %v2120 = vpack.c.b16 %v2112, %v2112
      %v2121 = vpack.c.b16 %v2113, %v2113
      %v2122 = vpack.c.b16 %v2114, %v2114
      %2131 = vst [vmem:[#allocation3 + $0x20] sm:$0xf] %v2115
      %2132 = vst [vmem:[#allocation3 + $0x44] sm:$0xf] %v2116
      %2133 = vst [vmem:[#allocation3 + $0x68] sm:$0xf] %v2117
      %2134 = vst [vmem:[#allocation3 + $0x8c] sm:$0xf] %v2118
      %2135 = vst [vmem:[#allocation3 + $0xb0] sm:$0xf] %v2119
      %2136 = vst [vmem:[#allocation3 + $0xd4] sm:$0xf] %v2120
      %2137 = vst [vmem:[#allocation3 + $0xf8] sm:$0xf] %v2121
      %2138 = vst [vmem:[#allocation3 + $0x11c] sm:$0xf] %v2122
      %v2139 = vld [vmem:[#allocation3] sm:$0xff]
      %v2140 = vld [vmem:[#allocation3 + $0x8] sm:$0xff]
      %v2141 = vld [vmem:[#allocation3 + $0x10] sm:$0xff]
      %v2142 = vld [vmem:[#allocation3 + $0x18] sm:$0xff]
      %v2143 = vld [vmem:[#allocation3 + $0x20] sm:$0xf]
      %v2144 = vld [vmem:[#allocation3 + $0x24] sm:$0xff]
      %v2145 = vld [vmem:[#allocation3 + $0x2c] sm:$0xff]
      %v2146 = vld [vmem:[#allocation3 + $0x34] sm:$0xff]
      %v2147 = vld [vmem:[#allocation3 + $0x3c] sm:$0xff]
      %v2148 = vld [vmem:[#allocation3 + $0x44] sm:$0xf]
      %v2149 = vld [vmem:[#allocation3 + $0x48] sm:$0xff]
      %v2150 = vld [vmem:[#allocation3 + $0x50] sm:$0xff]
      %v2151 = vld [vmem:[#allocation3 + $0x58] sm:$0xff]
      %v2152 = vld [vmem:[#allocation3 + $0x60] sm:$0xff]
      %v2153 = vld [vmem:[#allocation3 + $0x68] sm:$0xf]
      %v2154 = vld [vmem:[#allocation3 + $0x6c] sm:$0xff]
      %v2155 = vld [vmem:[#allocation3 + $0x74] sm:$0xff]
      %v2156 = vld [vmem:[#allocation3 + $0x7c] sm:$0xff]
      %v2157 = vld [vmem:[#allocation3 + $0x84] sm:$0xff]
      %v2158 = vld [vmem:[#allocation3 + $0x8c] sm:$0xf]
      %v2159 = vld [vmem:[#allocation3 + $0x90] sm:$0xff]
      %v2160 = vld [vmem:[#allocation3 + $0x98] sm:$0xff]
      %v2161 = vld [vmem:[#allocation3 + $0xa0] sm:$0xff]
      %v2162 = vld [vmem:[#allocation3 + $0xa8] sm:$0xff]
      %v2163 = vld [vmem:[#allocation3 + $0xb0] sm:$0xf]
      %v2164 = vld [vmem:[#allocation3 + $0xb4] sm:$0xff]
      %v2165 = vld [vmem:[#allocation3 + $0xbc] sm:$0xff]
      %v2166 = vld [vmem:[#allocation3 + $0xc4] sm:$0xff]
      %v2167 = vld [vmem:[#allocation3 + $0xcc] sm:$0xff]
      %v2168 = vld [vmem:[#allocation3 + $0xd4] sm:$0xf]
      %v2169 = vld [vmem:[#allocation3 + $0xd8] sm:$0xff]
      %v2170 = vld [vmem:[#allocation3 + $0xe0] sm:$0xff]
      %v2171 = vld [vmem:[#allocation3 + $0xe8] sm:$0xff]
      %v2172 = vld [vmem:[#allocation3 + $0xf0] sm:$0xff]
      %v2173 = vld [vmem:[#allocation3 + $0xf8] sm:$0xf]
      %v2174 = vld [vmem:[#allocation3 + $0xfc] sm:$0xff]
      %v2175 = vld [vmem:[#allocation3 + $0x104] sm:$0xff]
      %v2176 = vld [vmem:[#allocation3 + $0x10c] sm:$0xff]
      %v2177 = vld [vmem:[#allocation3 + $0x114] sm:$0xff]
      %v2178 = vld [vmem:[#allocation3 + $0x11c] sm:$0xf]
      %v2179 = vld [vmem:[%s3] sm:$0xf]
      %v2180 = vld [vmem:[%s3 + $0x4] sm:$0xf]
      %v2181 = vld [vmem:[%s3 + $0x8] sm:$0xf]
      %v2182 = vld [vmem:[%s3 + $0xc] sm:$0xf]
      %v2183 = vld [vmem:[%s3 + $0x10] sm:$0xf]
      %v2184 = vld [vmem:[%s3 + $0x14] sm:$0xf]
      %v2185 = vld [vmem:[%s3 + $0x18] sm:$0xf]
      %v2186 = vld [vmem:[%s3 + $0x1c] sm:$0xf]
      %v2187 = vld [vmem:[%s3 + $0x20] sm:$0xf]
      %v2188 = vld [vmem:[%s3 + $0x24] sm:$0xf]
      %v2189 = vld [vmem:[%s3 + $0x28] sm:$0xf]
      %v2190 = vld [vmem:[%s3 + $0x2c] sm:$0xf]
      %v2191 = vld [vmem:[%s3 + $0x30] sm:$0xf]
      %v2192 = vld [vmem:[%s3 + $0x34] sm:$0xf]
      %v2193 = vld [vmem:[%s3 + $0x38] sm:$0xf]
      %v2194 = vld [vmem:[%s3 + $0x3c] sm:$0xf]
      %v2195 = vld [vmem:[%s3 + $0x40] sm:$0xf]
      %v2196 = vld [vmem:[%s3 + $0x44] sm:$0xf]
      %v2197 = vld [vmem:[%s3 + $0x48] sm:$0xf]
      %v2198 = vld [vmem:[%s3 + $0x4c] sm:$0xf]
      %v2199 = vld [vmem:[%s3 + $0x50] sm:$0xf]
      %v2200 = vld [vmem:[%s3 + $0x54] sm:$0xf]
      %v2201 = vld [vmem:[%s3 + $0x58] sm:$0xf]
      %v2202 = vld [vmem:[%s3 + $0x5c] sm:$0xf]
      %v2203 = vld [vmem:[%s3 + $0x60] sm:$0xf]
      %v2204 = vld [vmem:[%s3 + $0x64] sm:$0xf]
      %v2205 = vld [vmem:[%s3 + $0x68] sm:$0xf]
      %v2206 = vld [vmem:[%s3 + $0x6c] sm:$0xf]
      %v2207 = vld [vmem:[%s3 + $0x70] sm:$0xf]
      %v2208 = vld [vmem:[%s3 + $0x74] sm:$0xf]
      %v2209 = vld [vmem:[%s3 + $0x78] sm:$0xf]
      %v2210 = vld [vmem:[%s3 + $0x7c] sm:$0xf]
      %v2211 = vld [vmem:[%s3 + $0x80] sm:$0xf]
      %v2212 = vld [vmem:[%s3 + $0x84] sm:$0xf]
      %v2213 = vld [vmem:[%s3 + $0x88] sm:$0xf]
      %v2214 = vld [vmem:[%s3 + $0x8c] sm:$0xf]
      %v2215 = vld [vmem:[%s3 + $0x90] sm:$0xf]
      %v2216 = vld [vmem:[%s3 + $0x94] sm:$0xf]
      %v2217 = vld [vmem:[%s3 + $0x98] sm:$0xf]
      %v2218 = vld [vmem:[%s3 + $0x9c] sm:$0xf]
      %v2219 = vld [vmem:[%s3 + $0xa0] sm:$0xf]
      %v2220 = vld [vmem:[%s3 + $0xa4] sm:$0xf]
      %v2221 = vld [vmem:[%s3 + $0xa8] sm:$0xf]
      %v2222 = vld [vmem:[%s3 + $0xac] sm:$0xf]
      %v2223 = vld [vmem:[%s3 + $0xb0] sm:$0xf]
      %v2224 = vld [vmem:[%s3 + $0xb4] sm:$0xf]
      %v2225 = vld [vmem:[%s3 + $0xb8] sm:$0xf]
      %v2226 = vld [vmem:[%s3 + $0xbc] sm:$0xf]
      %v2227 = vld [vmem:[%s3 + $0xc0] sm:$0xf]
      %v2228 = vld [vmem:[%s3 + $0xc4] sm:$0xf]
      %v2229 = vld [vmem:[%s3 + $0xc8] sm:$0xf]
      %v2230 = vld [vmem:[%s3 + $0xcc] sm:$0xf]
      %v2231 = vld [vmem:[%s3 + $0xd0] sm:$0xf]
      %v2232 = vld [vmem:[%s3 + $0xd4] sm:$0xf]
      %v2233 = vld [vmem:[%s3 + $0xd8] sm:$0xf]
      %v2234 = vld [vmem:[%s3 + $0xdc] sm:$0xf]
      %v2235 = vld [vmem:[%s3 + $0xe0] sm:$0xf]
      %v2236 = vld [vmem:[%s3 + $0xe4] sm:$0xf]
      %v2237 = vld [vmem:[%s3 + $0xe8] sm:$0xf]
      %v2238 = vld [vmem:[%s3 + $0xec] sm:$0xf]
      %v2239 = vld [vmem:[%s3 + $0xf0] sm:$0xf]
      %v2240 = vld [vmem:[%s3 + $0xf4] sm:$0xf]
      %v2241 = vld [vmem:[%s3 + $0xf8] sm:$0xf]
      %v2242 = vld [vmem:[%s3 + $0xfc] sm:$0xf]
      %v2243 = vld [vmem:[%s3 + $0x100] sm:$0xf]
      %v2244 = vld [vmem:[%s3 + $0x104] sm:$0xf]
      %v2245 = vld [vmem:[%s3 + $0x108] sm:$0xf]
      %v2246 = vld [vmem:[%s3 + $0x10c] sm:$0xf]
      %v2247 = vld [vmem:[%s3 + $0x110] sm:$0xf]
      %v2248 = vld [vmem:[%s3 + $0x114] sm:$0xf]
      %v2249 = vld [vmem:[%s3 + $0x118] sm:$0xf]
      %v2250 = vld [vmem:[%s3 + $0x11c] sm:$0xf]
      %v2251 = vld [vmem:[%s3 + $0x120] sm:$0xf]
      %v2252 = vld [vmem:[%s3 + $0x124] sm:$0xf]
      %v2253 = vld [vmem:[%s3 + $0x128] sm:$0xf]
      %v2254 = vld [vmem:[%s3 + $0x12c] sm:$0xf]
      %v2255 = vld [vmem:[%s3 + $0x130] sm:$0xf]
      %v2256 = vld [vmem:[%s3 + $0x134] sm:$0xf]
      %v2257 = vld [vmem:[%s3 + $0x138] sm:$0xf]
      %v2258 = vld [vmem:[%s3 + $0x13c] sm:$0xf]
      %v2259 = vld [vmem:[%s3 + $0x140] sm:$0xf]
      %v2260 = vld [vmem:[%s3 + $0x144] sm:$0xf]
      %v2261 = vld [vmem:[%s3 + $0x148] sm:$0xf]
      %v2262 = vld [vmem:[%s3 + $0x14c] sm:$0xf]
      %v2263 = vld [vmem:[%s3 + $0x150] sm:$0xf]
      %v2264 = vld [vmem:[%s3 + $0x154] sm:$0xf]
      %v2265 = vld [vmem:[%s3 + $0x158] sm:$0xf]
      %v2266 = vld [vmem:[%s3 + $0x15c] sm:$0xf]
      %v2267 = vld [vmem:[%s3 + $0x160] sm:$0xf]
      %v2268 = vld [vmem:[%s3 + $0x164] sm:$0xf]
      %v2269 = vld [vmem:[%s3 + $0x168] sm:$0xf]
      %v2270 = vld [vmem:[%s3 + $0x16c] sm:$0xf]
      %v2271 = vld [vmem:[%s3 + $0x170] sm:$0xf]
      %v2272 = vld [vmem:[%s3 + $0x174] sm:$0xf]
      %v2273 = vld [vmem:[%s3 + $0x178] sm:$0xf]
      %v2274 = vld [vmem:[%s3 + $0x17c] sm:$0xf]
      %v2275 = vld [vmem:[%s3 + $0x180] sm:$0xf]
      %v2276 = vld [vmem:[%s3 + $0x184] sm:$0xf]
      %v2277 = vld [vmem:[%s3 + $0x188] sm:$0xf]
      %v2278 = vld [vmem:[%s3 + $0x18c] sm:$0xf]
      %v2279 = vld [vmem:[%s3 + $0x190] sm:$0xf]
      %v2280 = vld [vmem:[%s3 + $0x194] sm:$0xf]
      %v2281 = vld [vmem:[%s3 + $0x198] sm:$0xf]
      %v2282 = vld [vmem:[%s3 + $0x19c] sm:$0xf]
      %v2283 = vld [vmem:[%s3 + $0x1a0] sm:$0xf]
      %v2284 = vld [vmem:[%s3 + $0x1a4] sm:$0xf]
      %v2285 = vld [vmem:[%s3 + $0x1a8] sm:$0xf]
      %v2286 = vld [vmem:[%s3 + $0x1ac] sm:$0xf]
      %v2287 = vld [vmem:[%s3 + $0x1b0] sm:$0xf]
      %v2288 = vld [vmem:[%s3 + $0x1b4] sm:$0xf]
      %v2289 = vld [vmem:[%s3 + $0x1b8] sm:$0xf]
      %v2290 = vld [vmem:[%s3 + $0x1bc] sm:$0xf]
      %v2291 = vld [vmem:[%s3 + $0x1c0] sm:$0xf]
      %v2292 = vld [vmem:[%s3 + $0x1c4] sm:$0xf]
      %v2293 = vld [vmem:[%s3 + $0x1c8] sm:$0xf]
      %v2294 = vld [vmem:[%s3 + $0x1cc] sm:$0xf]
      %v2295 = vld [vmem:[%s3 + $0x1d0] sm:$0xf]
      %v2296 = vld [vmem:[%s3 + $0x1d4] sm:$0xf]
      %v2297 = vld [vmem:[%s3 + $0x1d8] sm:$0xf]
      %v2298 = vld [vmem:[%s3 + $0x1dc] sm:$0xf]
      %v2299 = vld [vmem:[%s3 + $0x1e0] sm:$0xf]
      %v2300 = vld [vmem:[%s3 + $0x1e4] sm:$0xf]
      %v2301 = vld [vmem:[%s3 + $0x1e8] sm:$0xf]
      %v2302 = vld [vmem:[%s3 + $0x1ec] sm:$0xf]
      %v2303 = vld [vmem:[%s3 + $0x1f0] sm:$0xf]
      %v2304 = vld [vmem:[%s3 + $0x1f4] sm:$0xf]
      %v2305 = vld [vmem:[%s3 + $0x1f8] sm:$0xf]
      %v2306 = vld [vmem:[%s3 + $0x1fc] sm:$0xf]
      %v2307 = vld [vmem:[%s3 + $0x200] sm:$0xf]
      %v2308 = vld [vmem:[%s3 + $0x204] sm:$0xf]
      %v2309 = vld [vmem:[%s3 + $0x208] sm:$0xf]
      %v2310 = vld [vmem:[%s3 + $0x20c] sm:$0xf]
      %v2311 = vld [vmem:[%s3 + $0x210] sm:$0xf]
      %v2312 = vld [vmem:[%s3 + $0x214] sm:$0xf]
      %v2313 = vld [vmem:[%s3 + $0x218] sm:$0xf]
      %v2314 = vld [vmem:[%s3 + $0x21c] sm:$0xf]
      %v2315 = vld [vmem:[%s3 + $0x220] sm:$0xf]
      %v2316 = vld [vmem:[%s3 + $0x224] sm:$0xf]
      %v2317 = vld [vmem:[%s3 + $0x228] sm:$0xf]
      %v2318 = vld [vmem:[%s3 + $0x22c] sm:$0xf]
      %v2319 = vld [vmem:[%s3 + $0x230] sm:$0xf]
      %v2320 = vld [vmem:[%s3 + $0x234] sm:$0xf]
      %v2321 = vld [vmem:[%s3 + $0x238] sm:$0xf]
      %v2322 = vld [vmem:[%s3 + $0x23c] sm:$0xf]
      %v2323 = vld [vmem:[%s827] sm:$0xf]
      %v2324 = vld [vmem:[%s827 + $0x8] sm:$0xf]
      %v2325 = vld [vmem:[%s827 + $0x10] sm:$0xf]
      %v2326 = vld [vmem:[%s827 + $0x18] sm:$0xf]
      %v2327 = vld [vmem:[%s827 + $0x20] sm:$0xf]
      %v2328 = vld [vmem:[%s827 + $0x28] sm:$0xf]
      %v2329 = vld [vmem:[%s827 + $0x30] sm:$0xf]
      %v2330 = vld [vmem:[%s827 + $0x38] sm:$0xf]
      %v2331 = vld [vmem:[%s4] sm:$0xf]
      %v2340 = vunpack.c.l.b16 %v2323
      %v2341 = vunpack.c.l.b16 %v2324
      %v2342 = vunpack.c.l.b16 %v2325
      %v2343 = vunpack.c.l.b16 %v2326
      %v2344 = vunpack.c.l.b16 %v2327
      %v2345 = vunpack.c.l.b16 %v2328
      %v2346 = vunpack.c.l.b16 %v2329
      %v2347 = vunpack.c.l.b16 %v2330
      %v2348 = vpack.c.b16 %v2341, %v2340
      %v2349 = vpack.c.b16 %v2343, %v2342
      %v2350 = vpack.c.b16 %v2345, %v2344
      %v2351 = vpack.c.b16 %v2347, %v2346
      %v2353 = vsel %vm293, %v2348, 0
      %v2356 = vsel %vm293, %v2349, 0
      %v2359 = vsel %vm293, %v2350, 0
      %v2362 = vsel %vm293, %v2351, 0
      %v2365 = vsel %vm306, %v2331, 0
      %2367 = vmatprep.subr.bf16.mxu0 0
      %2368 = vmatpush1.bf16.msra.mxu0 0
      %2369 = vmatprep.subr.bf16.mxu0 0
      %2370 = vmatpush1.bf16.msra.mxu0 0
      %2371 = vmatprep.subr.bf16.mxu0 0
      %2372 = vmatpush1.bf16.msra.mxu0 0
      %2373 = vmatprep.subr.bf16.mxu0 0
      %2374 = vmatpush1.bf16.msra.mxu0 0
      %2375 = vmatprep.subr.bf16.mxu0 0
      %2376 = vmatpush1.bf16.msra.mxu0 0
      %2377 = vmatprep.subr.bf16.mxu0 0
      %2378 = vmatpush1.bf16.msra.mxu0 0
      %2379 = vmatprep.subr.bf16.mxu0 0
      %2380 = vmatpush1.bf16.msra.mxu0 0
      %2381 = vmatprep.subr.bf16.mxu0 0
      %2382 = vmatpush1.bf16.msra.mxu0 %v2365
      %2383 = vmatprep.subr.bf16.mxu0 0
      %2384 = vmatpush2.bf16.msra.mxu0 0
      %2385 = vmatprep.subr.bf16.mxu0 0
      %2386 = vmatpush2.bf16.msra.mxu0 0
      %2387 = vmatprep.subr.bf16.mxu0 0
      %2388 = vmatpush2.bf16.msra.mxu0 0
      %2389 = vmatprep.subr.bf16.mxu0 0
      %2390 = vmatpush2.bf16.msra.mxu0 0
      %2391 = vmatprep.subr.bf16.mxu0 0
      %2392 = vmatpush2.bf16.msra.mxu0 0
      %2393 = vmatprep.subr.bf16.mxu0 0
      %2394 = vmatpush2.bf16.msra.mxu0 0
      %2395 = vmatprep.subr.bf16.mxu0 0
      %2396 = vmatpush2.bf16.msra.mxu0 0
      %2397 = vmatprep.subr.bf16.mxu0 0
      %2398 = vmatpush2.bf16.msra.mxu0 0
      %2399 = vmatprep.mubr.bf16.mxu0 0
      %2400 = vmatmul.mubr.bf16.gmra.mxu0 %v2353
      %v2401 = vpop.f32.mrf.mxu0
      %v2402 = vadd.f32 0.0, %v2401
      %v2403 = vpop.f32.mrf.mxu0
      %v2404 = vpop.f32.mrf.mxu0
      %v2405 = vadd.f32 0.0, %v2404
      %v2406 = vpop.f32.mrf.mxu0
      %2407 = vmatprep.mubr.bf16.mxu0 0
      %2408 = vmatmul.mubr.bf16.gmra.mxu0 %v2356
      %v2409 = vpop.f32.mrf.mxu0
      %v2410 = vadd.f32 0.0, %v2409
      %v2411 = vpop.f32.mrf.mxu0
      %v2412 = vpop.f32.mrf.mxu0
      %v2413 = vadd.f32 0.0, %v2412
      %v2414 = vpop.f32.mrf.mxu0
      %2415 = vmatprep.mubr.bf16.mxu0 0
      %2416 = vmatmul.mubr.bf16.gmra.mxu0 %v2359
      %v2417 = vpop.f32.mrf.mxu0
      %v2418 = vadd.f32 0.0, %v2417
      %v2419 = vpop.f32.mrf.mxu0
      %v2420 = vpop.f32.mrf.mxu0
      %v2421 = vadd.f32 0.0, %v2420
      %v2422 = vpop.f32.mrf.mxu0
      %2423 = vmatprep.mubr.bf16.mxu0 0
      %2424 = vmatmul.mubr.bf16.gmra.mxu0 %v2362
      %v2425 = vpop.f32.mrf.mxu0
      %v2426 = vadd.f32 0.0, %v2425
      %v2427 = vpop.f32.mrf.mxu0
      %v2428 = vpop.f32.mrf.mxu0
      %v2429 = vadd.f32 0.0, %v2428
      %v2430 = vpop.f32.mrf.mxu0
      %2431 = vdwg.mxu0
      %v2472 = vunpack.c.l.b16 %v2139
      %v2473 = vunpack.c.h.b16 %v2139
      %v2474 = vunpack.c.l.b16 %v2140
      %v2475 = vunpack.c.h.b16 %v2140
      %v2476 = vunpack.c.l.b16 %v2141
      %v2477 = vunpack.c.h.b16 %v2141
      %v2478 = vunpack.c.l.b16 %v2142
      %v2479 = vunpack.c.h.b16 %v2142
      %v2480 = vunpack.c.l.b16 %v2143
      %v2481 = vunpack.c.l.b16 %v2144
      %v2482 = vunpack.c.h.b16 %v2144
      %v2483 = vunpack.c.l.b16 %v2145
      %v2484 = vunpack.c.h.b16 %v2145
      %v2485 = vunpack.c.l.b16 %v2146
      %v2486 = vunpack.c.h.b16 %v2146
      %v2487 = vunpack.c.l.b16 %v2147
      %v2488 = vunpack.c.h.b16 %v2147
      %v2489 = vunpack.c.l.b16 %v2148
      %v2490 = vunpack.c.l.b16 %v2149
      %v2491 = vunpack.c.h.b16 %v2149
      %v2492 = vunpack.c.l.b16 %v2150
      %v2493 = vunpack.c.h.b16 %v2150
      %v2494 = vunpack.c.l.b16 %v2151
      %v2495 = vunpack.c.h.b16 %v2151
      %v2496 = vunpack.c.l.b16 %v2152
      %v2497 = vunpack.c.h.b16 %v2152
      %v2498 = vunpack.c.l.b16 %v2153
      %v2499 = vunpack.c.l.b16 %v2154
      %v2500 = vunpack.c.h.b16 %v2154
      %v2501 = vunpack.c.l.b16 %v2155
      %v2502 = vunpack.c.h.b16 %v2155
      %v2503 = vunpack.c.l.b16 %v2156
      %v2504 = vunpack.c.h.b16 %v2156
      %v2505 = vunpack.c.l.b16 %v2157
      %v2506 = vunpack.c.h.b16 %v2157
      %v2507 = vunpack.c.l.b16 %v2158
      %v2508 = vunpack.c.l.b16 %v2159
      %v2509 = vunpack.c.h.b16 %v2159
      %v2510 = vunpack.c.l.b16 %v2160
      %v2511 = vunpack.c.h.b16 %v2160
      %v2512 = vunpack.c.l.b16 %v2161
      %v2513 = vunpack.c.h.b16 %v2161
      %v2514 = vunpack.c.l.b16 %v2162
      %v2515 = vunpack.c.h.b16 %v2162
      %v2516 = vunpack.c.l.b16 %v2163
      %v2517 = vunpack.c.l.b16 %v2164
      %v2518 = vunpack.c.h.b16 %v2164
      %v2519 = vunpack.c.l.b16 %v2165
      %v2520 = vunpack.c.h.b16 %v2165
      %v2521 = vunpack.c.l.b16 %v2166
      %v2522 = vunpack.c.h.b16 %v2166
      %v2523 = vunpack.c.l.b16 %v2167
      %v2524 = vunpack.c.h.b16 %v2167
      %v2525 = vunpack.c.l.b16 %v2168
      %v2526 = vunpack.c.l.b16 %v2169
      %v2527 = vunpack.c.h.b16 %v2169
      %v2528 = vunpack.c.l.b16 %v2170
      %v2529 = vunpack.c.h.b16 %v2170
      %v2530 = vunpack.c.l.b16 %v2171
      %v2531 = vunpack.c.h.b16 %v2171
      %v2532 = vunpack.c.l.b16 %v2172
      %v2533 = vunpack.c.h.b16 %v2172
      %v2534 = vunpack.c.l.b16 %v2173
      %v2535 = vunpack.c.l.b16 %v2174
      %v2536 = vunpack.c.h.b16 %v2174
      %v2537 = vunpack.c.l.b16 %v2175
      %v2538 = vunpack.c.h.b16 %v2175
      %v2539 = vunpack.c.l.b16 %v2176
      %v2540 = vunpack.c.h.b16 %v2176
      %v2541 = vunpack.c.l.b16 %v2177
      %v2542 = vunpack.c.h.b16 %v2177
      %v2543 = vunpack.c.l.b16 %v2178
      %v2544 = vpack.c.b16 %v2481, %v2472
      %v2545 = vpack.c.b16 %v2482, %v2473
      %v2546 = vpack.c.b16 %v2483, %v2474
      %v2547 = vpack.c.b16 %v2484, %v2475
      %v2548 = vpack.c.b16 %v2485, %v2476
      %v2549 = vpack.c.b16 %v2486, %v2477
      %v2550 = vpack.c.b16 %v2487, %v2478
      %v2551 = vpack.c.b16 %v2488, %v2479
      %v2552 = vpack.c.b16 %v2489, %v2480
      %v2553 = vpack.c.b16 %v2499, %v2490
      %v2554 = vpack.c.b16 %v2500, %v2491
      %v2555 = vpack.c.b16 %v2501, %v2492
      %v2556 = vpack.c.b16 %v2502, %v2493
      %v2557 = vpack.c.b16 %v2503, %v2494
      %v2558 = vpack.c.b16 %v2504, %v2495
      %v2559 = vpack.c.b16 %v2505, %v2496
      %v2560 = vpack.c.b16 %v2506, %v2497
      %v2561 = vpack.c.b16 %v2507, %v2498
      %v2562 = vpack.c.b16 %v2517, %v2508
      %v2563 = vpack.c.b16 %v2518, %v2509
      %v2564 = vpack.c.b16 %v2519, %v2510
      %v2565 = vpack.c.b16 %v2520, %v2511
      %v2566 = vpack.c.b16 %v2521, %v2512
      %v2567 = vpack.c.b16 %v2522, %v2513
      %v2568 = vpack.c.b16 %v2523, %v2514
      %v2569 = vpack.c.b16 %v2524, %v2515
      %v2570 = vpack.c.b16 %v2525, %v2516
      %v2571 = vpack.c.b16 %v2535, %v2526
      %v2572 = vpack.c.b16 %v2536, %v2527
      %v2573 = vpack.c.b16 %v2537, %v2528
      %v2574 = vpack.c.b16 %v2538, %v2529
      %v2575 = vpack.c.b16 %v2539, %v2530
      %v2576 = vpack.c.b16 %v2540, %v2531
      %v2577 = vpack.c.b16 %v2541, %v2532
      %v2578 = vpack.c.b16 %v2542, %v2533
      %v2579 = vpack.c.b16 %v2543, %v2534
      %v2760 = vunpack.c.l.b16 %v2179
      %v2761 = vunpack.c.l.b16 %v2180
      %v2762 = vunpack.c.l.b16 %v2181
      %v2763 = vunpack.c.l.b16 %v2182
      %v2764 = vunpack.c.l.b16 %v2183
      %v2765 = vunpack.c.l.b16 %v2184
      %v2766 = vunpack.c.l.b16 %v2185
      %v2767 = vunpack.c.l.b16 %v2186
      %v2768 = vunpack.c.l.b16 %v2187
      %v2769 = vunpack.c.l.b16 %v2188
      %v2770 = vunpack.c.l.b16 %v2189
      %v2771 = vunpack.c.l.b16 %v2190
      %v2772 = vunpack.c.l.b16 %v2191
      %v2773 = vunpack.c.l.b16 %v2192
      %v2774 = vunpack.c.l.b16 %v2193
      %v2775 = vunpack.c.l.b16 %v2194
      %v2776 = vunpack.c.l.b16 %v2195
      %v2777 = vunpack.c.l.b16 %v2196
      %v2778 = vunpack.c.l.b16 %v2197
      %v2779 = vunpack.c.l.b16 %v2198
      %v2780 = vunpack.c.l.b16 %v2199
      %v2781 = vunpack.c.l.b16 %v2200
      %v2782 = vunpack.c.l.b16 %v2201
      %v2783 = vunpack.c.l.b16 %v2202
      %v2784 = vunpack.c.l.b16 %v2203
      %v2785 = vunpack.c.l.b16 %v2204
      %v2786 = vunpack.c.l.b16 %v2205
      %v2787 = vunpack.c.l.b16 %v2206
      %v2788 = vunpack.c.l.b16 %v2207
      %v2789 = vunpack.c.l.b16 %v2208
      %v2790 = vunpack.c.l.b16 %v2209
      %v2791 = vunpack.c.l.b16 %v2210
      %v2792 = vunpack.c.l.b16 %v2211
      %v2793 = vunpack.c.l.b16 %v2212
      %v2794 = vunpack.c.l.b16 %v2213
      %v2795 = vunpack.c.l.b16 %v2214
      %v2796 = vunpack.c.l.b16 %v2215
      %v2797 = vunpack.c.l.b16 %v2216
      %v2798 = vunpack.c.l.b16 %v2217
      %v2799 = vunpack.c.l.b16 %v2218
      %v2800 = vunpack.c.l.b16 %v2219
      %v2801 = vunpack.c.l.b16 %v2220
      %v2802 = vunpack.c.l.b16 %v2221
      %v2803 = vunpack.c.l.b16 %v2222
      %v2804 = vunpack.c.l.b16 %v2223
      %v2805 = vunpack.c.l.b16 %v2224
      %v2806 = vunpack.c.l.b16 %v2225
      %v2807 = vunpack.c.l.b16 %v2226
      %v2808 = vunpack.c.l.b16 %v2227
      %v2809 = vunpack.c.l.b16 %v2228
      %v2810 = vunpack.c.l.b16 %v2229
      %v2811 = vunpack.c.l.b16 %v2230
      %v2812 = vunpack.c.l.b16 %v2231
      %v2813 = vunpack.c.l.b16 %v2232
      %v2814 = vunpack.c.l.b16 %v2233
      %v2815 = vunpack.c.l.b16 %v2234
      %v2816 = vunpack.c.l.b16 %v2235
      %v2817 = vunpack.c.l.b16 %v2236
      %v2818 = vunpack.c.l.b16 %v2237
      %v2819 = vunpack.c.l.b16 %v2238
      %v2820 = vunpack.c.l.b16 %v2239
      %v2821 = vunpack.c.l.b16 %v2240
      %v2822 = vunpack.c.l.b16 %v2241
      %v2823 = vunpack.c.l.b16 %v2242
      %v2824 = vunpack.c.l.b16 %v2243
      %v2825 = vunpack.c.l.b16 %v2244
      %v2826 = vunpack.c.l.b16 %v2245
      %v2827 = vunpack.c.l.b16 %v2246
      %v2828 = vunpack.c.l.b16 %v2247
      %v2829 = vunpack.c.l.b16 %v2248
      %v2830 = vunpack.c.l.b16 %v2249
      %v2831 = vunpack.c.l.b16 %v2250
      %v2832 = vunpack.c.l.b16 %v2251
      %v2833 = vunpack.c.l.b16 %v2252
      %v2834 = vunpack.c.l.b16 %v2253
      %v2835 = vunpack.c.l.b16 %v2254
      %v2836 = vunpack.c.l.b16 %v2255
      %v2837 = vunpack.c.l.b16 %v2256
      %v2838 = vunpack.c.l.b16 %v2257
      %v2839 = vunpack.c.l.b16 %v2258
      %v2840 = vunpack.c.l.b16 %v2259
      %v2841 = vunpack.c.l.b16 %v2260
      %v2842 = vunpack.c.l.b16 %v2261
      %v2843 = vunpack.c.l.b16 %v2262
      %v2844 = vunpack.c.l.b16 %v2263
      %v2845 = vunpack.c.l.b16 %v2264
      %v2846 = vunpack.c.l.b16 %v2265
      %v2847 = vunpack.c.l.b16 %v2266
      %v2848 = vunpack.c.l.b16 %v2267
      %v2849 = vunpack.c.l.b16 %v2268
      %v2850 = vunpack.c.l.b16 %v2269
      %v2851 = vunpack.c.l.b16 %v2270
      %v2852 = vunpack.c.l.b16 %v2271
      %v2853 = vunpack.c.l.b16 %v2272
      %v2854 = vunpack.c.l.b16 %v2273
      %v2855 = vunpack.c.l.b16 %v2274
      %v2856 = vunpack.c.l.b16 %v2275
      %v2857 = vunpack.c.l.b16 %v2276
      %v2858 = vunpack.c.l.b16 %v2277
      %v2859 = vunpack.c.l.b16 %v2278
      %v2860 = vunpack.c.l.b16 %v2279
      %v2861 = vunpack.c.l.b16 %v2280
      %v2862 = vunpack.c.l.b16 %v2281
      %v2863 = vunpack.c.l.b16 %v2282
      %v2864 = vunpack.c.l.b16 %v2283
      %v2865 = vunpack.c.l.b16 %v2284
      %v2866 = vunpack.c.l.b16 %v2285
      %v2867 = vunpack.c.l.b16 %v2286
      %v2868 = vunpack.c.l.b16 %v2287
      %v2869 = vunpack.c.l.b16 %v2288
      %v2870 = vunpack.c.l.b16 %v2289
      %v2871 = vunpack.c.l.b16 %v2290
      %v2872 = vunpack.c.l.b16 %v2291
      %v2873 = vunpack.c.l.b16 %v2292
      %v2874 = vunpack.c.l.b16 %v2293
      %v2875 = vunpack.c.l.b16 %v2294
      %v2876 = vunpack.c.l.b16 %v2295
      %v2877 = vunpack.c.l.b16 %v2296
      %v2878 = vunpack.c.l.b16 %v2297
      %v2879 = vunpack.c.l.b16 %v2298
      %v2880 = vunpack.c.l.b16 %v2299
      %v2881 = vunpack.c.l.b16 %v2300
      %v2882 = vunpack.c.l.b16 %v2301
      %v2883 = vunpack.c.l.b16 %v2302
      %v2884 = vunpack.c.l.b16 %v2303
      %v2885 = vunpack.c.l.b16 %v2304
      %v2886 = vunpack.c.l.b16 %v2305
      %v2887 = vunpack.c.l.b16 %v2306
      %v2888 = vunpack.c.l.b16 %v2307
      %v2889 = vunpack.c.l.b16 %v2308
      %v2890 = vunpack.c.l.b16 %v2309
      %v2891 = vunpack.c.l.b16 %v2310
      %v2892 = vunpack.c.l.b16 %v2311
      %v2893 = vunpack.c.l.b16 %v2312
      %v2894 = vunpack.c.l.b16 %v2313
      %v2895 = vunpack.c.l.b16 %v2314
      %v2896 = vunpack.c.l.b16 %v2315
      %v2897 = vunpack.c.l.b16 %v2316
      %v2898 = vunpack.c.l.b16 %v2317
      %v2899 = vunpack.c.l.b16 %v2318
      %v2900 = vunpack.c.l.b16 %v2319
      %v2901 = vunpack.c.l.b16 %v2320
      %v2902 = vunpack.c.l.b16 %v2321
      %v2903 = vunpack.c.l.b16 %v2322
      %v2904 = vpack.c.b16 %v2761, %v2760
      %v2905 = vpack.c.b16 %v2763, %v2762
      %v2906 = vpack.c.b16 %v2765, %v2764
      %v2907 = vpack.c.b16 %v2767, %v2766
      %v2908 = vpack.c.b16 %v2769, %v2768
      %v2909 = vpack.c.b16 %v2771, %v2770
      %v2910 = vpack.c.b16 %v2773, %v2772
      %v2911 = vpack.c.b16 %v2775, %v2774
      %v2912 = vpack.c.b16 %v2777, %v2776
      %v2913 = vpack.c.b16 %v2779, %v2778
      %v2914 = vpack.c.b16 %v2781, %v2780
      %v2915 = vpack.c.b16 %v2783, %v2782
      %v2916 = vpack.c.b16 %v2785, %v2784
      %v2917 = vpack.c.b16 %v2787, %v2786
      %v2918 = vpack.c.b16 %v2789, %v2788
      %v2919 = vpack.c.b16 %v2791, %v2790
      %v2920 = vpack.c.b16 %v2793, %v2792
      %v2921 = vpack.c.b16 %v2795, %v2794
      %v2922 = vpack.c.b16 %v2797, %v2796
      %v2923 = vpack.c.b16 %v2799, %v2798
      %v2924 = vpack.c.b16 %v2801, %v2800
      %v2925 = vpack.c.b16 %v2803, %v2802
      %v2926 = vpack.c.b16 %v2805, %v2804
      %v2927 = vpack.c.b16 %v2807, %v2806
      %v2928 = vpack.c.b16 %v2809, %v2808
      %v2929 = vpack.c.b16 %v2811, %v2810
      %v2930 = vpack.c.b16 %v2813, %v2812
      %v2931 = vpack.c.b16 %v2815, %v2814
      %v2932 = vpack.c.b16 %v2817, %v2816
      %v2933 = vpack.c.b16 %v2819, %v2818
      %v2934 = vpack.c.b16 %v2821, %v2820
      %v2935 = vpack.c.b16 %v2823, %v2822
      %v2936 = vpack.c.b16 %v2825, %v2824
      %v2937 = vpack.c.b16 %v2827, %v2826
      %v2938 = vpack.c.b16 %v2829, %v2828
      %v2939 = vpack.c.b16 %v2831, %v2830
      %v2940 = vpack.c.b16 %v2833, %v2832
      %v2941 = vpack.c.b16 %v2835, %v2834
      %v2942 = vpack.c.b16 %v2837, %v2836
      %v2943 = vpack.c.b16 %v2839, %v2838
      %v2944 = vpack.c.b16 %v2841, %v2840
      %v2945 = vpack.c.b16 %v2843, %v2842
      %v2946 = vpack.c.b16 %v2845, %v2844
      %v2947 = vpack.c.b16 %v2847, %v2846
      %v2948 = vpack.c.b16 %v2849, %v2848
      %v2949 = vpack.c.b16 %v2851, %v2850
      %v2950 = vpack.c.b16 %v2853, %v2852
      %v2951 = vpack.c.b16 %v2855, %v2854
      %v2952 = vpack.c.b16 %v2857, %v2856
      %v2953 = vpack.c.b16 %v2859, %v2858
      %v2954 = vpack.c.b16 %v2861, %v2860
      %v2955 = vpack.c.b16 %v2863, %v2862
      %v2956 = vpack.c.b16 %v2865, %v2864
      %v2957 = vpack.c.b16 %v2867, %v2866
      %v2958 = vpack.c.b16 %v2869, %v2868
      %v2959 = vpack.c.b16 %v2871, %v2870
      %v2960 = vpack.c.b16 %v2873, %v2872
      %v2961 = vpack.c.b16 %v2875, %v2874
      %v2962 = vpack.c.b16 %v2877, %v2876
      %v2963 = vpack.c.b16 %v2879, %v2878
      %v2964 = vpack.c.b16 %v2881, %v2880
      %v2965 = vpack.c.b16 %v2883, %v2882
      %v2966 = vpack.c.b16 %v2885, %v2884
      %v2967 = vpack.c.b16 %v2887, %v2886
      %v2968 = vpack.c.b16 %v2889, %v2888
      %v2969 = vpack.c.b16 %v2891, %v2890
      %v2970 = vpack.c.b16 %v2893, %v2892
      %v2971 = vpack.c.b16 %v2895, %v2894
      %v2972 = vpack.c.b16 %v2897, %v2896
      %v2973 = vpack.c.b16 %v2899, %v2898
      %v2974 = vpack.c.b16 %v2901, %v2900
      %v2975 = vpack.c.b16 %v2903, %v2902
      %3048 = vmatprep.subr.bf16.mxu0 0
      %3049 = vmatpush1.bf16.msra.mxu0 %v2911
      %3050 = vmatprep.subr.bf16.mxu0 0
      %3051 = vmatpush1.bf16.msra.mxu0 %v2910
      %3052 = vmatprep.subr.bf16.mxu0 0
      %3053 = vmatpush1.bf16.msra.mxu0 %v2909
      %3054 = vmatprep.subr.bf16.mxu0 0
      %3055 = vmatpush1.bf16.msra.mxu0 %v2908
      %3056 = vmatprep.subr.bf16.mxu0 0
      %3057 = vmatpush1.bf16.msra.mxu0 %v2907
      %3058 = vmatprep.subr.bf16.mxu0 0
      %3059 = vmatpush1.bf16.msra.mxu0 %v2906
      %3060 = vmatprep.subr.bf16.mxu0 0
      %3061 = vmatpush1.bf16.msra.mxu0 %v2905
      %3062 = vmatprep.subr.bf16.mxu0 0
      %3063 = vmatpush1.bf16.msra.mxu0 %v2904
      %3064 = vmatprep.subr.bf16.mxu0 0
      %3065 = vmatpush2.bf16.msra.mxu0 %v2919
      %3066 = vmatprep.subr.bf16.mxu0 0
      %3067 = vmatpush2.bf16.msra.mxu0 %v2918
      %3068 = vmatprep.subr.bf16.mxu0 0
      %3069 = vmatpush2.bf16.msra.mxu0 %v2917
      %3070 = vmatprep.subr.bf16.mxu0 0
      %3071 = vmatpush2.bf16.msra.mxu0 %v2916
      %3072 = vmatprep.subr.bf16.mxu0 0
      %3073 = vmatpush2.bf16.msra.mxu0 %v2915
      %3074 = vmatprep.subr.bf16.mxu0 0
      %3075 = vmatpush2.bf16.msra.mxu0 %v2914
      %3076 = vmatprep.subr.bf16.mxu0 0
      %3077 = vmatpush2.bf16.msra.mxu0 %v2913
      %3078 = vmatprep.subr.bf16.mxu0 0
      %3079 = vmatpush2.bf16.msra.mxu0 %v2912
      %3080 = vmatprep.mubr.bf16.mxu0 %v2545
      %3081 = vmatmul.mubr.bf16.gmra.mxu0 %v2544
      %v3082 = vpop.f32.mrf.mxu0
      %v3083 = vadd.f32 %v2402, %v3082
      %v3084 = vpop.f32.mrf.mxu0
      %v3085 = vpop.f32.mrf.mxu0
      %v3086 = vadd.f32 %v2405, %v3085
      %v3087 = vpop.f32.mrf.mxu0
      %3088 = vmatprep.mubr.bf16.mxu0 %v2554
      %3089 = vmatmul.mubr.bf16.gmra.mxu0 %v2553
      %v3090 = vpop.f32.mrf.mxu0
      %v3091 = vadd.f32 %v2410, %v3090
      %v3092 = vpop.f32.mrf.mxu0
      %v3093 = vpop.f32.mrf.mxu0
      %v3094 = vadd.f32 %v2413, %v3093
      %v3095 = vpop.f32.mrf.mxu0
      %3096 = vmatprep.mubr.bf16.mxu0 %v2563
      %3097 = vmatmul.mubr.bf16.gmra.mxu0 %v2562
      %v3098 = vpop.f32.mrf.mxu0
      %v3099 = vadd.f32 %v2418, %v3098
      %v3100 = vpop.f32.mrf.mxu0
      %v3101 = vpop.f32.mrf.mxu0
      %v3102 = vadd.f32 %v2421, %v3101
      %v3103 = vpop.f32.mrf.mxu0
      %3104 = vmatprep.mubr.bf16.mxu0 %v2572
      %3105 = vmatmul.mubr.bf16.gmra.mxu0 %v2571
      %v3106 = vpop.f32.mrf.mxu0
      %v3107 = vadd.f32 %v2426, %v3106
      %v3108 = vpop.f32.mrf.mxu0
      %v3109 = vpop.f32.mrf.mxu0
      %v3110 = vadd.f32 %v2429, %v3109
      %v3111 = vpop.f32.mrf.mxu0
      %3112 = vdwg.mxu0
      %3113 = vmatprep.subr.bf16.mxu0 0
      %3114 = vmatpush1.bf16.msra.mxu0 %v2927
      %3115 = vmatprep.subr.bf16.mxu0 0
      %3116 = vmatpush1.bf16.msra.mxu0 %v2926
      %3117 = vmatprep.subr.bf16.mxu0 0
      %3118 = vmatpush1.bf16.msra.mxu0 %v2925
      %3119 = vmatprep.subr.bf16.mxu0 0
      %3120 = vmatpush1.bf16.msra.mxu0 %v2924
      %3121 = vmatprep.subr.bf16.mxu0 0
      %3122 = vmatpush1.bf16.msra.mxu0 %v2923
      %3123 = vmatprep.subr.bf16.mxu0 0
      %3124 = vmatpush1.bf16.msra.mxu0 %v2922
      %3125 = vmatprep.subr.bf16.mxu0 0
      %3126 = vmatpush1.bf16.msra.mxu0 %v2921
      %3127 = vmatprep.subr.bf16.mxu0 0
      %3128 = vmatpush1.bf16.msra.mxu0 %v2920
      %3129 = vmatprep.subr.bf16.mxu0 0
      %3130 = vmatpush2.bf16.msra.mxu0 %v2935
      %3131 = vmatprep.subr.bf16.mxu0 0
      %3132 = vmatpush2.bf16.msra.mxu0 %v2934
      %3133 = vmatprep.subr.bf16.mxu0 0
      %3134 = vmatpush2.bf16.msra.mxu0 %v2933
      %3135 = vmatprep.subr.bf16.mxu0 0
      %3136 = vmatpush2.bf16.msra.mxu0 %v2932
      %3137 = vmatprep.subr.bf16.mxu0 0
      %3138 = vmatpush2.bf16.msra.mxu0 %v2931
      %3139 = vmatprep.subr.bf16.mxu0 0
      %3140 = vmatpush2.bf16.msra.mxu0 %v2930
      %3141 = vmatprep.subr.bf16.mxu0 0
      %3142 = vmatpush2.bf16.msra.mxu0 %v2929
      %3143 = vmatprep.subr.bf16.mxu0 0
      %3144 = vmatpush2.bf16.msra.mxu0 %v2928
      %3145 = vmatprep.mubr.bf16.mxu0 %v2547
      %3146 = vmatmul.mubr.bf16.gmra.mxu0 %v2546
      %v3147 = vpop.f32.mrf.mxu0
      %v3148 = vadd.f32 %v3083, %v3147
      %v3149 = vpop.f32.mrf.mxu0
      %v3150 = vpop.f32.mrf.mxu0
      %v3151 = vadd.f32 %v3086, %v3150
      %v3152 = vpop.f32.mrf.mxu0
      %3153 = vmatprep.mubr.bf16.mxu0 %v2556
      %3154 = vmatmul.mubr.bf16.gmra.mxu0 %v2555
      %v3155 = vpop.f32.mrf.mxu0
      %v3156 = vadd.f32 %v3091, %v3155
      %v3157 = vpop.f32.mrf.mxu0
      %v3158 = vpop.f32.mrf.mxu0
      %v3159 = vadd.f32 %v3094, %v3158
      %v3160 = vpop.f32.mrf.mxu0
      %3161 = vmatprep.mubr.bf16.mxu0 %v2565
      %3162 = vmatmul.mubr.bf16.gmra.mxu0 %v2564
      %v3163 = vpop.f32.mrf.mxu0
      %v3164 = vadd.f32 %v3099, %v3163
      %v3165 = vpop.f32.mrf.mxu0
      %v3166 = vpop.f32.mrf.mxu0
      %v3167 = vadd.f32 %v3102, %v3166
      %v3168 = vpop.f32.mrf.mxu0
      %3169 = vmatprep.mubr.bf16.mxu0 %v2574
      %3170 = vmatmul.mubr.bf16.gmra.mxu0 %v2573
      %v3171 = vpop.f32.mrf.mxu0
      %v3172 = vadd.f32 %v3107, %v3171
      %v3173 = vpop.f32.mrf.mxu0
      %v3174 = vpop.f32.mrf.mxu0
      %v3175 = vadd.f32 %v3110, %v3174
      %v3176 = vpop.f32.mrf.mxu0
      %3177 = vdwg.mxu0
      %3178 = vmatprep.subr.bf16.mxu0 0
      %3179 = vmatpush1.bf16.msra.mxu0 %v2943
      %3180 = vmatprep.subr.bf16.mxu0 0
      %3181 = vmatpush1.bf16.msra.mxu0 %v2942
      %3182 = vmatprep.subr.bf16.mxu0 0
      %3183 = vmatpush1.bf16.msra.mxu0 %v2941
      %3184 = vmatprep.subr.bf16.mxu0 0
      %3185 = vmatpush1.bf16.msra.mxu0 %v2940
      %3186 = vmatprep.subr.bf16.mxu0 0
      %3187 = vmatpush1.bf16.msra.mxu0 %v2939
      %3188 = vmatprep.subr.bf16.mxu0 0
      %3189 = vmatpush1.bf16.msra.mxu0 %v2938
      %3190 = vmatprep.subr.bf16.mxu0 0
      %3191 = vmatpush1.bf16.msra.mxu0 %v2937
      %3192 = vmatprep.subr.bf16.mxu0 0
      %3193 = vmatpush1.bf16.msra.mxu0 %v2936
      %3194 = vmatprep.subr.bf16.mxu0 0
      %3195 = vmatpush2.bf16.msra.mxu0 %v2951
      %3196 = vmatprep.subr.bf16.mxu0 0
      %3197 = vmatpush2.bf16.msra.mxu0 %v2950
      %3198 = vmatprep.subr.bf16.mxu0 0
      %3199 = vmatpush2.bf16.msra.mxu0 %v2949
      %3200 = vmatprep.subr.bf16.mxu0 0
      %3201 = vmatpush2.bf16.msra.mxu0 %v2948
      %3202 = vmatprep.subr.bf16.mxu0 0
      %3203 = vmatpush2.bf16.msra.mxu0 %v2947
      %3204 = vmatprep.subr.bf16.mxu0 0
      %3205 = vmatpush2.bf16.msra.mxu0 %v2946
      %3206 = vmatprep.subr.bf16.mxu0 0
      %3207 = vmatpush2.bf16.msra.mxu0 %v2945
      %3208 = vmatprep.subr.bf16.mxu0 0
      %3209 = vmatpush2.bf16.msra.mxu0 %v2944
      %3210 = vmatprep.mubr.bf16.mxu0 %v2549
      %3211 = vmatmul.mubr.bf16.gmra.mxu0 %v2548
      %v3212 = vpop.f32.mrf.mxu0
      %v3213 = vadd.f32 %v3148, %v3212
      %v3214 = vpop.f32.mrf.mxu0
      %v3215 = vpop.f32.mrf.mxu0
      %v3216 = vadd.f32 %v3151, %v3215
      %v3217 = vpop.f32.mrf.mxu0
      %3218 = vmatprep.mubr.bf16.mxu0 %v2558
      %3219 = vmatmul.mubr.bf16.gmra.mxu0 %v2557
      %v3220 = vpop.f32.mrf.mxu0
      %v3221 = vadd.f32 %v3156, %v3220
      %v3222 = vpop.f32.mrf.mxu0
      %v3223 = vpop.f32.mrf.mxu0
      %v3224 = vadd.f32 %v3159, %v3223
      %v3225 = vpop.f32.mrf.mxu0
      %3226 = vmatprep.mubr.bf16.mxu0 %v2567
      %3227 = vmatmul.mubr.bf16.gmra.mxu0 %v2566
      %v3228 = vpop.f32.mrf.mxu0
      %v3229 = vadd.f32 %v3164, %v3228
      %v3230 = vpop.f32.mrf.mxu0
      %v3231 = vpop.f32.mrf.mxu0
      %v3232 = vadd.f32 %v3167, %v3231
      %v3233 = vpop.f32.mrf.mxu0
      %3234 = vmatprep.mubr.bf16.mxu0 %v2576
      %3235 = vmatmul.mubr.bf16.gmra.mxu0 %v2575
      %v3236 = vpop.f32.mrf.mxu0
      %v3237 = vadd.f32 %v3172, %v3236
      %v3238 = vpop.f32.mrf.mxu0
      %v3239 = vpop.f32.mrf.mxu0
      %v3240 = vadd.f32 %v3175, %v3239
      %v3241 = vpop.f32.mrf.mxu0
      %3242 = vdwg.mxu0
      %3243 = vmatprep.subr.bf16.mxu0 0
      %3244 = vmatpush1.bf16.msra.mxu0 %v2959
      %3245 = vmatprep.subr.bf16.mxu0 0
      %3246 = vmatpush1.bf16.msra.mxu0 %v2958
      %3247 = vmatprep.subr.bf16.mxu0 0
      %3248 = vmatpush1.bf16.msra.mxu0 %v2957
      %3249 = vmatprep.subr.bf16.mxu0 0
      %3250 = vmatpush1.bf16.msra.mxu0 %v2956
      %3251 = vmatprep.subr.bf16.mxu0 0
      %3252 = vmatpush1.bf16.msra.mxu0 %v2955
      %3253 = vmatprep.subr.bf16.mxu0 0
      %3254 = vmatpush1.bf16.msra.mxu0 %v2954
      %3255 = vmatprep.subr.bf16.mxu0 0
      %3256 = vmatpush1.bf16.msra.mxu0 %v2953
      %3257 = vmatprep.subr.bf16.mxu0 0
      %3258 = vmatpush1.bf16.msra.mxu0 %v2952
      %3259 = vmatprep.subr.bf16.mxu0 0
      %3260 = vmatpush2.bf16.msra.mxu0 %v2967
      %3261 = vmatprep.subr.bf16.mxu0 0
      %3262 = vmatpush2.bf16.msra.mxu0 %v2966
      %3263 = vmatprep.subr.bf16.mxu0 0
      %3264 = vmatpush2.bf16.msra.mxu0 %v2965
      %3265 = vmatprep.subr.bf16.mxu0 0
      %3266 = vmatpush2.bf16.msra.mxu0 %v2964
      %3267 = vmatprep.subr.bf16.mxu0 0
      %3268 = vmatpush2.bf16.msra.mxu0 %v2963
      %3269 = vmatprep.subr.bf16.mxu0 0
      %3270 = vmatpush2.bf16.msra.mxu0 %v2962
      %3271 = vmatprep.subr.bf16.mxu0 0
      %3272 = vmatpush2.bf16.msra.mxu0 %v2961
      %3273 = vmatprep.subr.bf16.mxu0 0
      %3274 = vmatpush2.bf16.msra.mxu0 %v2960
      %3275 = vmatprep.mubr.bf16.mxu0 %v2551
      %3276 = vmatmul.mubr.bf16.gmra.mxu0 %v2550
      %v3277 = vpop.f32.mrf.mxu0
      %v3278 = vadd.f32 %v3213, %v3277
      %v3279 = vpop.f32.mrf.mxu0
      %v3280 = vpop.f32.mrf.mxu0
      %v3281 = vadd.f32 %v3216, %v3280
      %v3282 = vpop.f32.mrf.mxu0
      %3283 = vmatprep.mubr.bf16.mxu0 %v2560
      %3284 = vmatmul.mubr.bf16.gmra.mxu0 %v2559
      %v3285 = vpop.f32.mrf.mxu0
      %v3286 = vadd.f32 %v3221, %v3285
      %v3287 = vpop.f32.mrf.mxu0
      %v3288 = vpop.f32.mrf.mxu0
      %v3289 = vadd.f32 %v3224, %v3288
      %v3290 = vpop.f32.mrf.mxu0
      %3291 = vmatprep.mubr.bf16.mxu0 %v2569
      %3292 = vmatmul.mubr.bf16.gmra.mxu0 %v2568
      %v3293 = vpop.f32.mrf.mxu0
      %v3294 = vadd.f32 %v3229, %v3293
      %v3295 = vpop.f32.mrf.mxu0
      %v3296 = vpop.f32.mrf.mxu0
      %v3297 = vadd.f32 %v3232, %v3296
      %v3298 = vpop.f32.mrf.mxu0
      %3299 = vmatprep.mubr.bf16.mxu0 %v2578
      %3300 = vmatmul.mubr.bf16.gmra.mxu0 %v2577
      %v3301 = vpop.f32.mrf.mxu0
      %v3302 = vadd.f32 %v3237, %v3301
      %v3303 = vpop.f32.mrf.mxu0
      %v3304 = vpop.f32.mrf.mxu0
      %v3305 = vadd.f32 %v3240, %v3304
      %v3306 = vpop.f32.mrf.mxu0
      %3307 = vdwg.mxu0
      %3308 = vmatprep.subr.bf16.mxu0 0
      %3309 = vmatpush1.bf16.msra.mxu0 %v2975
      %3310 = vmatprep.subr.bf16.mxu0 0
      %3311 = vmatpush1.bf16.msra.mxu0 %v2974
      %3312 = vmatprep.subr.bf16.mxu0 0
      %3313 = vmatpush1.bf16.msra.mxu0 %v2973
      %3314 = vmatprep.subr.bf16.mxu0 0
      %3315 = vmatpush1.bf16.msra.mxu0 %v2972
      %3316 = vmatprep.subr.bf16.mxu0 0
      %3317 = vmatpush1.bf16.msra.mxu0 %v2971
      %3318 = vmatprep.subr.bf16.mxu0 0
      %3319 = vmatpush1.bf16.msra.mxu0 %v2970
      %3320 = vmatprep.subr.bf16.mxu0 0
      %3321 = vmatpush1.bf16.msra.mxu0 %v2969
      %3322 = vmatprep.subr.bf16.mxu0 0
      %3323 = vmatpush1.bf16.msra.mxu0 %v2968
      %3324 = vmatprep.subr.bf16.mxu0 0
      %3325 = vmatpush2.bf16.msra.mxu0 0
      %3326 = vmatprep.subr.bf16.mxu0 0
      %3327 = vmatpush2.bf16.msra.mxu0 0
      %3328 = vmatprep.subr.bf16.mxu0 0
      %3329 = vmatpush2.bf16.msra.mxu0 0
      %3330 = vmatprep.subr.bf16.mxu0 0
      %3331 = vmatpush2.bf16.msra.mxu0 0
      %3332 = vmatprep.subr.bf16.mxu0 0
      %3333 = vmatpush2.bf16.msra.mxu0 0
      %3334 = vmatprep.subr.bf16.mxu0 0
      %3335 = vmatpush2.bf16.msra.mxu0 0
      %3336 = vmatprep.subr.bf16.mxu0 0
      %3337 = vmatpush2.bf16.msra.mxu0 0
      %3338 = vmatprep.subr.bf16.mxu0 0
      %3339 = vmatpush2.bf16.msra.mxu0 0
      %3340 = vmatprep.mubr.bf16.mxu0 0
      %3341 = vmatmul.mubr.bf16.gmra.mxu0 %v2552
      %v3342 = vpop.f32.mrf.mxu0
      %v3343 = vadd.f32 %v3278, %v3342
      %v3344 = vpop.f32.mrf.mxu0
      %v3345 = vpop.f32.mrf.mxu0
      %v3346 = vadd.f32 %v3281, %v3345
      %v3347 = vpop.f32.mrf.mxu0
      %3348 = vmatprep.mubr.bf16.mxu0 0
      %3349 = vmatmul.mubr.bf16.gmra.mxu0 %v2561
      %v3350 = vpop.f32.mrf.mxu0
      %v3351 = vadd.f32 %v3286, %v3350
      %v3352 = vpop.f32.mrf.mxu0
      %v3353 = vpop.f32.mrf.mxu0
      %v3354 = vadd.f32 %v3289, %v3353
      %v3355 = vpop.f32.mrf.mxu0
      %3356 = vmatprep.mubr.bf16.mxu0 0
      %3357 = vmatmul.mubr.bf16.gmra.mxu0 %v2570
      %v3358 = vpop.f32.mrf.mxu0
      %v3359 = vadd.f32 %v3294, %v3358
      %v3360 = vpop.f32.mrf.mxu0
      %v3361 = vpop.f32.mrf.mxu0
      %v3362 = vadd.f32 %v3297, %v3361
      %v3363 = vpop.f32.mrf.mxu0
      %3364 = vmatprep.mubr.bf16.mxu0 0
      %3365 = vmatmul.mubr.bf16.gmra.mxu0 %v2579
      %v3366 = vpop.f32.mrf.mxu0
      %v3367 = vadd.f32 %v3302, %v3366
      %v3368 = vpop.f32.mrf.mxu0
      %v3369 = vpop.f32.mrf.mxu0
      %v3370 = vadd.f32 %v3305, %v3369
      %v3371 = vpop.f32.mrf.mxu0
      %3372 = vdwg.mxu0
      %v3373 = vld [vmem:[%s5] sm:$0x1]
      %v3375 = vlaneseq
      %v3376 = vshrl.u32 %v3375, 7
      %v3377 = vsub.s32 0, %v3376
      %v3378 = vrot.slane %v3373, %v3377
      %v3380 = vadd.f32 %v3343, %v3378
      %v3381 = vadd.f32 %v3346, %v3378
      %v3382 = vadd.f32 %v3351, %v3378
      %v3383 = vadd.f32 %v3354, %v3378
      %v3384 = vadd.f32 %v3359, %v3378
      %v3385 = vadd.f32 %v3362, %v3378
      %v3386 = vadd.f32 %v3367, %v3378
      %v3387 = vadd.f32 %v3370, %v3378
      %v3388 = vmax.f32 %v3380, 0.0
      %v3389 = vmax.f32 %v3381, 0.0
      %v3390 = vmax.f32 %v3382, 0.0
      %v3391 = vmax.f32 %v3383, 0.0
      %v3392 = vmax.f32 %v3384, 0.0
      %v3393 = vmax.f32 %v3385, 0.0
      %v3394 = vmax.f32 %v3386, 0.0
      %v3395 = vmax.f32 %v3387, 0.0
      %3396 = vst [vmem:[%s251] sm:$0xff] %v3388
      %3397 = vst [vmem:[%s251 + $0x8] sm:$0xff] %v3389
      %3398 = vst [vmem:[%s251 + $0x10] sm:$0xff] %v3390
      %3399 = vst [vmem:[%s251 + $0x18] sm:$0xff] %v3391
      %3400 = vst [vmem:[%s251 + $0x20] sm:$0xff] %v3392
      %3401 = vst [vmem:[%s251 + $0x28] sm:$0xff] %v3393
      %3402 = vst [vmem:[%s251 + $0x30] sm:$0xff] %v3394
      %3403 = vst [vmem:[%s251 + $0x38] sm:$0xff] %v3395
      %p3404 = scmp.lt.s32.totalorder %s17, 1
      %s3405 = scalar_select %p3404, %s17, 1
      %s3406 = smul.addr %s3405, 8
      %s3407 = smul.addr %s3406, 8
      %s3408 = scalar_lea.vmem %s6, %s3407
      // Predicated region
      $region45: #{basic_block_forward.1} parent=43 // pred_check
        %p3409 = pneg %p166
      $region46: #{basic_block_forward.1} parent=43 // pred_check_branch
        %3411 = sbr.rel (%p3409) target = $region48
      $region47: #{basic_block_forward.1} parent=43 // pred_region
        _
      $region48: #{basic_block_forward.1} parent=43 // pred_fallthru
        _
    $region44: #{basic_block_forward.1} parent=5 // pred_fallthru
      _
    %p3412 = scmp.le.s32.totalorder 2, %s12
    // Predicated region
    $region49: #{basic_block_forward.1} parent=5 // pred_check
      %p3413 = pneg %p3412
    $region50: #{basic_block_forward.1} parent=5 // pred_check_branch
      %3415 = sbr.rel (%p3413) target = $region52
    $region51: #{basic_block_forward.1} parent=5 // pred_region
      %s3416 = ssub.s32 %s12, 2
      // Predicated region
      $region53: #{basic_block_forward.1} parent=51 // pred_check
        %p3417 = pneg %p172
      $region54: #{basic_block_forward.1} parent=51 // pred_check_branch
        %3419 = sbr.rel (%p3417) target = $region56
      $region55: #{basic_block_forward.1} parent=51 // pred_region
        %p3420 = scmp.lt.s32.totalorder %s18, 1
        %s3421 = scalar_select %p3420, %s18, 1
        %s3422 = smul.addr %s3421, 8
        %s3423 = smul.addr %s3422, 8
        %s3424 = scalar_lea.vmem %s6, %s3423
      $region56: #{basic_block_forward.1} parent=51 // pred_fallthru
        _
    $region52: #{basic_block_forward.1} parent=5 // pred_fallthru
      _
  $region6: #{basic_block_forward.1} parent=0 // loop_footer
    %s16 = sadd.s32 1, %s12
  $region7: #{basic_block_forward.1} parent=0 // loop_footer_branch
    %11 = sbr.rel target = $region3
  $region8: #{basic_block_forward.1} parent=0 // loop_exit
    _

</llo_original>
